<compile_context>
chip_gen: v7x
topology: tpu7x:2x2x1
jax: 0.10.0
libtpu: 0.0.40
codegen_flags: <defaults>
</compile_context>

<pallas_src>
import functools
import numpy as np

import jax
import jax.numpy as jnp
from jax.experimental import pallas as pl
from jax.experimental.pallas import tpu as pltpu  # noqa: F401  (kept for memory-space use if scaled up)


# ----------------------------------------------------------------------------
# The single fused kernel
# ----------------------------------------------------------------------------

def _circuit_builder_kernel(
        # GNN encoder
        A_ref, x_ref, w1_ref, b1_ref, w2_ref, b2_ref, w3_ref, b3_ref,
        pool_ref, poly_ref, pw_ref, pb_ref,
        # memory-assembly constants (selection matmuls, token table + PE, pad mask)
        sel_g_ref, sel_p_ref, tok_mem_ref, table_aug_ref, negb_ref,
        # decoder constants
        tgt0_ref, hm_en_ref, hm_ne_ref, eye_ref,
        # stacked per-layer decoder weights
        w_sa_ref, b_sa_ref,
        wq_ref, bq_ref, wk_ref, bk_ref, wv_ref, bv_ref, wo_ref, bo_ref,
        ln1g_ref, ln1b_ref, ln2g_ref, ln2b_ref, ln3g_ref, ln3b_ref,
        fw1_ref, fb1_ref, fw2_ref, fb2_ref,
        # fused heads + action mask
        wh_ref, bh_ref, mask_ref,
        # output: lane-dense [B, 128] slab (action logits | value | padding)
        out_ref,
        *, num_layers, num_heads, mem_pad, eps):
    f32 = jnp.float32
    B, E = tgt0_ref.shape
    Mp = mem_pad
    dh = E // num_heads
    scale = 1.0 / float(np.sqrt(dh))

    def ln(x, g, b):
        mu = jnp.mean(x, axis=-1, keepdims=True)
        xc = x - mu
        var = jnp.mean(xc * xc, axis=-1, keepdims=True)
        return xc * jax.lax.rsqrt(var + eps) * g + b

    # ---- GNN: 3x GCNConv (relu, relu, linear) ----
    A = A_ref[...]                                                           # [N, N] normalized adj
    h = jnp.dot(x_ref[...], w1_ref[...], preferred_element_type=f32)
    h = jnp.maximum(jnp.dot(A, h, preferred_element_type=f32) + b1_ref[...], 0.0)
    h = jnp.dot(h, w2_ref[...], preferred_element_type=f32)
    h = jnp.maximum(jnp.dot(A, h, preferred_element_type=f32) + b2_ref[...], 0.0)
    h = jnp.dot(h, w3_ref[...], preferred_element_type=f32)
    node_emb = jnp.dot(A, h, preferred_element_type=f32) + b3_ref[...]       # [N, E]

    # ---- global_mean_pool as [B, N] @ [N, E]  (pool rows = 1/count per graph) ----
    graph_emb = jnp.dot(pool_ref[...], node_emb, preferred_element_type=f32)  # [B, E]

    # ---- polynomial embedding ----
    poly_emb = jnp.dot(poly_ref[...], pw_ref[...], preferred_element_type=f32) + pb_ref[...]  # [B, E]

    # ---- memory assembly: rows per batch = [graph | poly | token-emb + PE | zero padding] ----
    # scatter-free: selection matmuls place rows; token table & sinusoidal PE share one matmul.
    mem = (jnp.dot(sel_g_ref[...], graph_emb, preferred_element_type=f32)
           + jnp.dot(sel_p_ref[...], poly_emb, preferred_element_type=f32)
           + jnp.dot(tok_mem_ref[...], table_aug_ref[...], preferred_element_type=f32))  # [B*Mp, E]

    hm_en = hm_en_ref[...]        # [E, nh]  (1 where lane e belongs to head h)
    hm_ne = hm_ne_ref[...]        # [nh, E]
    eye_b = eye_ref[...]          # [B, B]
    negb = negb_ref[...]          # [B*Mp, 1] additive score bias (-1e30 on padding rows)
    tgt = tgt0_ref[...]           # [B, E]

    for l in range(num_layers):
        # ---- self-attention (seq_len == 1 -> softmax == 1; v/out projections pre-fused) ----
        sa = jnp.dot(tgt, w_sa_ref[l], preferred_element_type=f32) + b_sa_ref[l]
        tgt = ln(tgt + sa, ln1g_ref[l], ln1b_ref[l])

        # ---- multi-head cross-attention over memory (no per-head loop) ----
        q = jnp.dot(tgt, wq_ref[l], preferred_element_type=f32) + bq_ref[l]     # [B, E]
        K = jnp.dot(mem, wk_ref[l], preferred_element_type=f32) + bk_ref[l]     # [B*Mp, E]
        V = jnp.dot(mem, wv_ref[l], preferred_element_type=f32) + bv_ref[l]     # [B*Mp, E]
        ctx = jnp.zeros((B, E), f32)
        for b in range(B):                                    # static, tiny B
            k_b = K[b * Mp:(b + 1) * Mp, :]                   # sublane-aligned static slice
            v_b = V[b * Mp:(b + 1) * Mp, :]
            nb_b = negb[b * Mp:(b + 1) * Mp, :]
            q_b = q[b:b + 1, :]                               # [1, E]
            # per-head scores via block-diagonal head-mask matmul: s[m,h] = sum_{e in head h} q[e] k[m,e]
            s = jnp.dot(q_b * k_b, hm_en, preferred_element_type=f32) * scale + nb_b   # [Mp, nh]
            s = s - jnp.max(s, axis=0, keepdims=True)
            p = jnp.exp(s)
            p = p / jnp.sum(p, axis=0, keepdims=True)         # softmax over memory positions
            p_exp = jnp.dot(p, hm_ne, preferred_element_type=f32)                      # [Mp, E]
            ctx_b = jnp.sum(p_exp * v_b, axis=0, keepdims=True)                        # [1, E]
            ctx = ctx + eye_b[:, b:b + 1] * ctx_b             # place row b without sublane stores
        ca = jnp.dot(ctx, wo_ref[l], preferred_element_type=f32) + bo_ref[l]
        tgt = ln(tgt + ca, ln2g_ref[l], ln2b_ref[l])

        # ---- feed-forward ----
        h1 = jnp.maximum(jnp.dot(tgt, fw1_ref[l], preferred_element_type=f32) + fb1_ref[l], 0.0)
        ff = jnp.dot(h1, fw2_ref[l], preferred_element_type=f32) + fb2_ref[l]
        tgt = ln(tgt + ff, ln3g_ref[l], ln3b_ref[l])

    # ---- fused action/value heads + action mask: single lane-dense [B, 128] store ----
    out = jnp.dot(tgt, wh_ref[...], preferred_element_type=f32) + bh_ref[...]
    out_ref[...] = jnp.where(mask_ref[...] > 0.0, out, -jnp.inf)


def circuit_builder_fused(A, x, gcn, pool_mat, target_polys, poly_w, poly_b,
                          sel_g, sel_p, tok_mem, table_aug, negb,
                          tgt0, hm_en, hm_ne, eye_b, dec,
                          w_head, b_head, head_mask, num_heads, mem_pad):
    B = tgt0.shape[0]
    L = dec["wq_c"].shape[0]
    return pl.pallas_call(
        functools.partial(_circuit_builder_kernel, num_layers=L, num_heads=num_heads,
                          mem_pad=mem_pad, eps=1e-5),
        out_shape=jax.ShapeDtypeStruct((B, w_head.shape[1]), jnp.float32),
    )(A, x, gcn["w1"], gcn["b1"], gcn["w2"], gcn["b2"], gcn["w3"], gcn["b3"],
      pool_mat, target_polys, poly_w, poly_b,
      sel_g, sel_p, tok_mem, table_aug, negb,
      tgt0, hm_en, hm_ne, eye_b,
      dec["w_sa"], dec["b_sa"],
      dec["wq_c"], dec["bq_c"], dec["wk_c"], dec["bk_c"],
      dec["wv_c"], dec["bv_c"], dec["wo_c"], dec["bo_c"],
      dec["ln1_g"], dec["ln1_b"], dec["ln2_g"], dec["ln2_b"], dec["ln3_g"], dec["ln3_b"],
      dec["ff_w1"], dec["ff_b1"], dec["ff_w2"], dec["ff_b2"],
      w_head, b_head, head_mask)


# ----------------------------------------------------------------------------
# Glue (graph preprocessing, PE table, parameter setup) — tiny XLA side
# ----------------------------------------------------------------------------

def gcn_norm_adj(edge_index, num_nodes):
    """Symmetrically-normalized adjacency with self-loops (PyG GCNConv default).
    Row = destination, column = source (messages flow src -> dst)."""
    A = jnp.zeros((num_nodes, num_nodes), jnp.float32)
    A = A.at[edge_index[1], edge_index[0]].set(1.0)
    A = A + jnp.eye(num_nodes, dtype=jnp.float32)
    deg = jnp.sum(A, axis=1)
    dinv = 1.0 / jnp.sqrt(deg)
    return A * dinv[:, None] * dinv[None, :]


def sinusoidal_pe(max_len, d_model):
    pos = np.arange(max_len, dtype=np.float32)[:, None]
    div = np.exp(np.arange(0, d_model, 2, dtype=np.float32) * (-np.log(10000.0) / d_model))
    pe = np.zeros((max_len, d_model), np.float32)
    pe[:, 0::2] = np.sin(pos * div)
    pe[:, 1::2] = np.cos(pos * div)
    return jnp.asarray(pe)


class Config:
    def __init__(self):
        self.n_variables = 3
        self.max_complexity = 5
        self.hidden_dim = 32              # small demo sizes (GCN hidden & FFN width)
        self.embedding_dim = 64           # d_model
        self.num_transformer_layers = 2
        self.transformer_heads = 4        # head_dim = 16
        self.max_circuit_length = 16


def init_params(key, cfg, max_poly_vector_size, vocab_size, max_actions):
    E, H, L = cfg.embedding_dim, cfg.hidden_dim, cfg.num_transformer_layers
    keys = iter(jax.random.split(key, 64))

    def w(shape, scale=0.02):
        return jax.random.normal(next(keys), shape, jnp.float32) * scale

    def zeros(shape):
        return jnp.zeros(shape, jnp.float32)

    def ones(shape):
        return jnp.ones(shape, jnp.float32)

    params = {
        "gcn": {
            "w1": w((4, H)), "b1": zeros((1, H)),
            "w2": w((H, H)), "b2": zeros((1, H)),
            "w3": w((H, E)), "b3": zeros((1, E)),
        },
        "poly": {"w": w((max_poly_vector_size, E)), "b": zeros((1, E))},
        # TODO(synk): CircuitHistoryEncoder is not defined in the reference source;
        # approximated as a deterministic token-embedding table lookup (+ sinusoidal PE).
        "circ_table": w((vocab_size, E)),
        "output_token": jax.random.normal(next(keys), (1, 1, E), jnp.float32),
        # decoder weights stacked per-layer on a leading L axis (single fused kernel)
        "dec": {
            "wv_s": w((L, E, E)), "bv_s": zeros((L, 1, E)),
            "wo_s": w((L, E, E)), "bo_s": zeros((L, 1, E)),
            "wq_c": w((L, E, E)), "bq_c": zeros((L, 1, E)),
            "wk_c": w((L, E, E)), "bk_c": zeros((L, 1, E)),
            "wv_c": w((L, E, E)), "bv_c": zeros((L, 1, E)),
            "wo_c": w((L, E, E)), "bo_c": zeros((L, 1, E)),
            "ln1_g": ones((L, 1, E)), "ln1_b": zeros((L, 1, E)),
            "ln2_g": ones((L, 1, E)), "ln2_b": zeros((L, 1, E)),
            "ln3_g": ones((L, 1, E)), "ln3_b": zeros((L, 1, E)),
            "ff_w1": w((L, E, H)), "ff_b1": zeros((L, 1, H)),
            "ff_w2": w((L, H, E)), "ff_b2": zeros((L, 1, E)),
        },
        "act_w": w((E, max_actions)), "act_b": zeros((1, max_actions)),
        "val_w": w((E, 1)), "val_b": zeros((1, 1)),
    }
    return params


# ----------------------------------------------------------------------------
# CircuitBuilder forward  (exactly ONE Pallas launch)
# ----------------------------------------------------------------------------

@functools.partial(jax.jit, static_argnums=(1,))
def circuit_builder_forward(params, cfg, node_x, edge_index, batch_assign,
                            target_polys, circuit_tokens, action_mask):
    B = target_polys.shape[0]
    E = cfg.embedding_dim
    N = node_x.shape[0]
    nh = cfg.transformer_heads
    S = circuit_tokens.shape[1]
    V = params["circ_table"].shape[0]
    M = 2 + S                                   # graph row + poly row + circuit rows
    Mp = ((M + 7) // 8) * 8                     # sublane-aligned per-batch memory length
    BMp = B * Mp

    # --- graph preprocessing (data-dependent scatter; tiny XLA, not a kernel) ---
    # (edge_index.numel() == 0 early-exit branch is data-dependent; not taken here.)
    A = gcn_norm_adj(edge_index, N)
    onehot = (batch_assign[:, None] == jnp.arange(B)[None, :]).astype(jnp.float32)
    counts = jnp.maximum(jnp.sum(onehot, axis=0), 1.0)
    pool_mat = (onehot / counts[None, :]).T                                   # [B, N]

    # --- memory-assembly constants (scatter-free placement via selection matmuls) ---
    rows = (jnp.arange(B)[:, None] * Mp + 2 + jnp.arange(S)[None, :]).reshape(-1)   # circuit rows
    tok_onehot = jax.nn.one_hot(circuit_tokens.reshape(-1), V, dtype=jnp.float32)   # [B*S, V]
    pe_sel = jnp.tile(jnp.eye(S, dtype=jnp.float32), (B, 1))                        # [B*S, S]
    tok_mem = jnp.zeros((BMp, V + S), jnp.float32).at[rows].set(
        jnp.concatenate([tok_onehot, pe_sel], axis=1))                              # [B*Mp, V+S]
    table_aug = jnp.concatenate(
        [params["circ_table"], sinusoidal_pe(cfg.max_circuit_length, E)[:S]], axis=0)  # [V+S, E]
    sel_g = jnp.zeros((BMp, B), jnp.float32).at[jnp.arange(B) * Mp, jnp.arange(B)].set(1.0)
    sel_p = jnp.zeros((BMp, B), jnp.float32).at[jnp.arange(B) * Mp + 1, jnp.arange(B)].set(1.0)
    neg_col = jnp.where(jnp.arange(Mp) < M, 0.0, -1e30).astype(jnp.float32)
    negb = jnp.tile(neg_col, (B,))[:, None]                                          # [B*Mp, 1]

    # --- decoder constants ---
    tgt0 = jnp.broadcast_to(params["output_token"].reshape(1, E), (B, E))
    dh = E // nh
    head_id = jnp.arange(E) // dh
    hm_en = (head_id[:, None] == jnp.arange(nh)[None, :]).astype(jnp.float32)        # [E, nh]
    hm_ne = hm_en.T                                                                  # [nh, E]
    eye_b = jnp.eye(B, dtype=jnp.float32)

    # pre-fuse the length-1 self-attention (out_proj(v_proj(x)) == x @ (Wv Wo) + (bv Wo + bo))
    dec = dict(params["dec"])
    dec["w_sa"] = jnp.einsum("lij,ljk->lik", dec["wv_s"], dec["wo_s"])
    dec["b_sa"] = jnp.einsum("lij,ljk->lik", dec["bv_s"], dec["wo_s"]) + dec["bo_s"]

    # --- fused heads + mask: lane-dense [E, 128] / [B, 128] slabs ---
    n_actions = params["act_w"].shape[1]
    head_width = ((n_actions + 1 + 127) // 128) * 128
    pad = head_width - n_actions - 1
    w_head = jnp.concatenate(
        [params["act_w"], params["val_w"], jnp.zeros((E, pad), jnp.float32)], axis=1)
    b_head = jnp.concatenate(
        [params["act_b"], params["val_b"], jnp.zeros((1, pad), jnp.float32)], axis=1)
    if action_mask is not None:
        mask_f = action_mask.astype(jnp.float32)
    else:
        mask_f = jnp.ones((B, n_actions), jnp.float32)
    head_mask = jnp.concatenate([mask_f, jnp.ones((B, 1 + pad), jnp.float32)], axis=1)  # value+pad stay

    out = circuit_builder_fused(A, node_x, params["gcn"], pool_mat,
                                target_polys, params["poly"]["w"], params["poly"]["b"],
                                sel_g, sel_p, tok_mem, table_aug, negb,
                                tgt0, hm_en, hm_ne, eye_b, dec,
                                w_head, b_head, head_mask, nh, Mp)            # [B, head_width]

    action_logits = out[:, :n_actions]
    value_pred = out[:, n_actions]
    return action_logits, value_pred


# ----------------------------------------------------------------------------
# Demo
# ----------------------------------------------------------------------------

if __name__ == "__main__":
    cfg = Config()
    max_poly_vector_size = 16
    vocab_size = 16
    max_nodes = cfg.n_variables + cfg.max_complexity + 1     # 9
    max_actions = (max_nodes * (max_nodes + 1) // 2) * 2     # 90

    key = jax.random.PRNGKey(0)
    k_param, k_x, k_poly, k_tok, k_mask = jax.random.split(key, 5)
    params = init_params(k_param, cfg, max_poly_vector_size, vocab_size, max_actions)

    # Batched graph: 2 graphs of 6 nodes each (chain topology, bidirectional edges).
    B = 2
    nodes_per_graph = 6
    N = B * nodes_per_graph
    node_x = jax.random.normal(k_x, (N, 4), jnp.float32)
    edges = []
    for g in range(B):
        off = g * nodes_per_graph
        for i in range(nodes_per_graph - 1):
            edges.append((off + i, off + i + 1))
            edges.append((off + i + 1, off + i))
    edge_index = jnp.asarray(np.array(edges, np.int32).T)           # [2, 20]
    batch_assign = jnp.asarray(np.repeat(np.arange(B), nodes_per_graph).astype(np.int32))

    target_polys = jax.random.normal(k_poly, (B, max_poly_vector_size), jnp.float32)
    circuit_tokens = jax.random.randint(k_tok, (B, 8), 0, vocab_size, jnp.int32)
    action_mask = jax.random.bernoulli(k_mask, 0.7, (B, max_actions))
    action_mask = action_mask.at[:, 0].set(True)   # ensure at least one valid action

    action_logits, value_pred = circuit_builder_forward(
        params, cfg, node_x, edge_index, batch_assign,
        target_polys, circuit_tokens, action_mask)

    jax.block_until_ready(action_logits)
    jax.block_until_ready(value_pred)
    assert action_logits.shape == (B, max_actions)
    assert value_pred.shape == (B,)
    assert bool(jnp.all(jnp.isfinite(value_pred)))
    print("KERNEL_OK")
</pallas_src>

<mosaic_0001>
module attributes {stable_mosaic.version = 11 : i64} {
  func.func @_circuit_builder_kernel(%arg0: memref<12x12xf32, #tpu.memory_space<vmem>>, %arg1: memref<12x4xf32, #tpu.memory_space<vmem>>, %arg2: memref<4x32xf32, #tpu.memory_space<vmem>>, %arg3: memref<1x32xf32, #tpu.memory_space<vmem>>, %arg4: memref<32x32xf32, #tpu.memory_space<vmem>>, %arg5: memref<1x32xf32, #tpu.memory_space<vmem>>, %arg6: memref<32x64xf32, #tpu.memory_space<vmem>>, %arg7: memref<1x64xf32, #tpu.memory_space<vmem>>, %arg8: memref<2x12xf32, #tpu.memory_space<vmem>>, %arg9: memref<2x16xf32, #tpu.memory_space<vmem>>, %arg10: memref<16x64xf32, #tpu.memory_space<vmem>>, %arg11: memref<1x64xf32, #tpu.memory_space<vmem>>, %arg12: memref<32x2xf32, #tpu.memory_space<vmem>>, %arg13: memref<32x2xf32, #tpu.memory_space<vmem>>, %arg14: memref<32x24xf32, #tpu.memory_space<vmem>>, %arg15: memref<24x64xf32, #tpu.memory_space<vmem>>, %arg16: memref<32x1xf32, #tpu.memory_space<vmem>>, %arg17: memref<2x64xf32, #tpu.memory_space<vmem>>, %arg18: memref<64x4xf32, #tpu.memory_space<vmem>>, %arg19: memref<4x64xf32, #tpu.memory_space<vmem>>, %arg20: memref<2x2xf32, #tpu.memory_space<vmem>>, %arg21: memref<2x64x64xf32, #tpu.memory_space<vmem>>, %arg22: memref<2x1x64xf32, #tpu.memory_space<vmem>>, %arg23: memref<2x64x64xf32, #tpu.memory_space<vmem>>, %arg24: memref<2x1x64xf32, #tpu.memory_space<vmem>>, %arg25: memref<2x64x64xf32, #tpu.memory_space<vmem>>, %arg26: memref<2x1x64xf32, #tpu.memory_space<vmem>>, %arg27: memref<2x64x64xf32, #tpu.memory_space<vmem>>, %arg28: memref<2x1x64xf32, #tpu.memory_space<vmem>>, %arg29: memref<2x64x64xf32, #tpu.memory_space<vmem>>, %arg30: memref<2x1x64xf32, #tpu.memory_space<vmem>>, %arg31: memref<2x1x64xf32, #tpu.memory_space<vmem>>, %arg32: memref<2x1x64xf32, #tpu.memory_space<vmem>>, %arg33: memref<2x1x64xf32, #tpu.memory_space<vmem>>, %arg34: memref<2x1x64xf32, #tpu.memory_space<vmem>>, %arg35: memref<2x1x64xf32, #tpu.memory_space<vmem>>, %arg36: memref<2x1x64xf32, #tpu.memory_space<vmem>>, %arg37: memref<2x64x32xf32, #tpu.memory_space<vmem>>, %arg38: memref<2x1x32xf32, #tpu.memory_space<vmem>>, %arg39: memref<2x32x64xf32, #tpu.memory_space<vmem>>, %arg40: memref<2x1x64xf32, #tpu.memory_space<vmem>>, %arg41: memref<64x128xf32, #tpu.memory_space<vmem>>, %arg42: memref<1x128xf32, #tpu.memory_space<vmem>>, %arg43: memref<2x128xf32, #tpu.memory_space<vmem>>, %arg44: memref<2x128xf32, #tpu.memory_space<vmem>>) attributes {dimension_semantics = [], scalar_prefetch = 0 : i64, scratch_operands = 0 : i64, tpu.core_type = #tpu.core_type<tc>} {
    %c0 = arith.constant 0 : index
    %c0_0 = arith.constant 0 : index
    %0 = vector.load %arg0[%c0, %c0_0] : memref<12x12xf32, #tpu.memory_space<vmem>>, vector<12x12xf32>
    %c0_1 = arith.constant 0 : index
    %c0_2 = arith.constant 0 : index
    %1 = vector.load %arg1[%c0_1, %c0_2] : memref<12x4xf32, #tpu.memory_space<vmem>>, vector<12x4xf32>
    %c0_3 = arith.constant 0 : index
    %c0_4 = arith.constant 0 : index
    %2 = vector.load %arg2[%c0_3, %c0_4] : memref<4x32xf32, #tpu.memory_space<vmem>>, vector<4x32xf32>
    %cst = arith.constant dense<0.000000e+00> : vector<12x32xf32>
    %3 = tpu.matmul %1, %2, %cst {dimension_numbers = #tpu.dot_dimension_numbers<[1], [0], [0], [1], [0, 0, 1, 1], [], []>} : vector<12x4xf32>, vector<4x32xf32>, vector<12x32xf32> -> vector<12x32xf32>
    %cst_5 = arith.constant dense<0.000000e+00> : vector<12x32xf32>
    %4 = tpu.matmul %0, %3, %cst_5 {dimension_numbers = #tpu.dot_dimension_numbers<[1], [0], [0], [1], [0, 0, 1, 1], [], []>} : vector<12x12xf32>, vector<12x32xf32>, vector<12x32xf32> -> vector<12x32xf32>
    %c0_6 = arith.constant 0 : index
    %c0_7 = arith.constant 0 : index
    %5 = vector.load %arg3[%c0_6, %c0_7] : memref<1x32xf32, #tpu.memory_space<vmem>>, vector<1x32xf32>
    %6 = vector.broadcast %5 : vector<1x32xf32> to vector<12x32xf32>
    %7 = arith.addf %4, %6 : vector<12x32xf32>
    %cst_8 = arith.constant 0.000000e+00 : f32
    %8 = vector.broadcast %cst_8 : f32 to vector<12x32xf32>
    %9 = arith.maximumf %7, %8 : vector<12x32xf32>
    %c0_9 = arith.constant 0 : index
    %c0_10 = arith.constant 0 : index
    %10 = vector.load %arg4[%c0_9, %c0_10] : memref<32x32xf32, #tpu.memory_space<vmem>>, vector<32x32xf32>
    %cst_11 = arith.constant dense<0.000000e+00> : vector<12x32xf32>
    %11 = tpu.matmul %9, %10, %cst_11 {dimension_numbers = #tpu.dot_dimension_numbers<[1], [0], [0], [1], [0, 0, 1, 1], [], []>} : vector<12x32xf32>, vector<32x32xf32>, vector<12x32xf32> -> vector<12x32xf32>
    %cst_12 = arith.constant dense<0.000000e+00> : vector<12x32xf32>
    %12 = tpu.matmul %0, %11, %cst_12 {dimension_numbers = #tpu.dot_dimension_numbers<[1], [0], [0], [1], [0, 0, 1, 1], [], []>} : vector<12x12xf32>, vector<12x32xf32>, vector<12x32xf32> -> vector<12x32xf32>
    %c0_13 = arith.constant 0 : index
    %c0_14 = arith.constant 0 : index
    %13 = vector.load %arg5[%c0_13, %c0_14] : memref<1x32xf32, #tpu.memory_space<vmem>>, vector<1x32xf32>
    %14 = vector.broadcast %13 : vector<1x32xf32> to vector<12x32xf32>
    %15 = arith.addf %12, %14 : vector<12x32xf32>
    %cst_15 = arith.constant 0.000000e+00 : f32
    %16 = vector.broadcast %cst_15 : f32 to vector<12x32xf32>
    %17 = arith.maximumf %15, %16 : vector<12x32xf32>
    %c0_16 = arith.constant 0 : index
    %c0_17 = arith.constant 0 : index
    %18 = vector.load %arg6[%c0_16, %c0_17] : memref<32x64xf32, #tpu.memory_space<vmem>>, vector<32x64xf32>
    %cst_18 = arith.constant dense<0.000000e+00> : vector<12x64xf32>
    %19 = tpu.matmul %17, %18, %cst_18 {dimension_numbers = #tpu.dot_dimension_numbers<[1], [0], [0], [1], [0, 0, 1, 1], [], []>} : vector<12x32xf32>, vector<32x64xf32>, vector<12x64xf32> -> vector<12x64xf32>
    %cst_19 = arith.constant dense<0.000000e+00> : vector<12x64xf32>
    %20 = tpu.matmul %0, %19, %cst_19 {dimension_numbers = #tpu.dot_dimension_numbers<[1], [0], [0], [1], [0, 0, 1, 1], [], []>} : vector<12x12xf32>, vector<12x64xf32>, vector<12x64xf32> -> vector<12x64xf32>
    %c0_20 = arith.constant 0 : index
    %c0_21 = arith.constant 0 : index
    %21 = vector.load %arg7[%c0_20, %c0_21] : memref<1x64xf32, #tpu.memory_space<vmem>>, vector<1x64xf32>
    %22 = vector.broadcast %21 : vector<1x64xf32> to vector<12x64xf32>
    %23 = arith.addf %20, %22 : vector<12x64xf32>
    %c0_22 = arith.constant 0 : index
    %c0_23 = arith.constant 0 : index
    %24 = vector.load %arg8[%c0_22, %c0_23] : memref<2x12xf32, #tpu.memory_space<vmem>>, vector<2x12xf32>
    %cst_24 = arith.constant dense<0.000000e+00> : vector<2x64xf32>
    %25 = tpu.matmul %24, %23, %cst_24 {dimension_numbers = #tpu.dot_dimension_numbers<[1], [0], [0], [1], [0, 0, 1, 1], [], []>} : vector<2x12xf32>, vector<12x64xf32>, vector<2x64xf32> -> vector<2x64xf32>
    %c0_25 = arith.constant 0 : index
    %c0_26 = arith.constant 0 : index
    %26 = vector.load %arg9[%c0_25, %c0_26] : memref<2x16xf32, #tpu.memory_space<vmem>>, vector<2x16xf32>
    %c0_27 = arith.constant 0 : index
    %c0_28 = arith.constant 0 : index
    %27 = vector.load %arg10[%c0_27, %c0_28] : memref<16x64xf32, #tpu.memory_space<vmem>>, vector<16x64xf32>
    %cst_29 = arith.constant dense<0.000000e+00> : vector<2x64xf32>
    %28 = tpu.matmul %26, %27, %cst_29 {dimension_numbers = #tpu.dot_dimension_numbers<[1], [0], [0], [1], [0, 0, 1, 1], [], []>} : vector<2x16xf32>, vector<16x64xf32>, vector<2x64xf32> -> vector<2x64xf32>
    %c0_30 = arith.constant 0 : index
    %c0_31 = arith.constant 0 : index
    %29 = vector.load %arg11[%c0_30, %c0_31] : memref<1x64xf32, #tpu.memory_space<vmem>>, vector<1x64xf32>
    %30 = vector.broadcast %29 : vector<1x64xf32> to vector<2x64xf32>
    %31 = arith.addf %28, %30 : vector<2x64xf32>
    %c0_32 = arith.constant 0 : index
    %c0_33 = arith.constant 0 : index
    %32 = vector.load %arg12[%c0_32, %c0_33] : memref<32x2xf32, #tpu.memory_space<vmem>>, vector<32x2xf32>
    %cst_34 = arith.constant dense<0.000000e+00> : vector<32x64xf32>
    %33 = tpu.matmul %32, %25, %cst_34 {dimension_numbers = #tpu.dot_dimension_numbers<[1], [0], [0], [1], [0, 0, 1, 1], [], []>} : vector<32x2xf32>, vector<2x64xf32>, vector<32x64xf32> -> vector<32x64xf32>
    %c0_35 = arith.constant 0 : index
    %c0_36 = arith.constant 0 : index
    %34 = vector.load %arg13[%c0_35, %c0_36] : memref<32x2xf32, #tpu.memory_space<vmem>>, vector<32x2xf32>
    %cst_37 = arith.constant dense<0.000000e+00> : vector<32x64xf32>
    %35 = tpu.matmul %34, %31, %cst_37 {dimension_numbers = #tpu.dot_dimension_numbers<[1], [0], [0], [1], [0, 0, 1, 1], [], []>} : vector<32x2xf32>, vector<2x64xf32>, vector<32x64xf32> -> vector<32x64xf32>
    %36 = arith.addf %33, %35 : vector<32x64xf32>
    %c0_38 = arith.constant 0 : index
    %c0_39 = arith.constant 0 : index
    %37 = vector.load %arg14[%c0_38, %c0_39] : memref<32x24xf32, #tpu.memory_space<vmem>>, vector<32x24xf32>
    %c0_40 = arith.constant 0 : index
    %c0_41 = arith.constant 0 : index
    %38 = vector.load %arg15[%c0_40, %c0_41] : memref<24x64xf32, #tpu.memory_space<vmem>>, vector<24x64xf32>
    %cst_42 = arith.constant dense<0.000000e+00> : vector<32x64xf32>
    %39 = tpu.matmul %37, %38, %cst_42 {dimension_numbers = #tpu.dot_dimension_numbers<[1], [0], [0], [1], [0, 0, 1, 1], [], []>} : vector<32x24xf32>, vector<24x64xf32>, vector<32x64xf32> -> vector<32x64xf32>
    %40 = arith.addf %36, %39 : vector<32x64xf32>
    %c0_43 = arith.constant 0 : index
    %c0_44 = arith.constant 0 : index
    %41 = vector.load %arg18[%c0_43, %c0_44] : memref<64x4xf32, #tpu.memory_space<vmem>>, vector<64x4xf32>
    %c0_45 = arith.constant 0 : index
    %c0_46 = arith.constant 0 : index
    %42 = vector.load %arg19[%c0_45, %c0_46] : memref<4x64xf32, #tpu.memory_space<vmem>>, vector<4x64xf32>
    %c0_47 = arith.constant 0 : index
    %c0_48 = arith.constant 0 : index
    %43 = vector.load %arg20[%c0_47, %c0_48] : memref<2x2xf32, #tpu.memory_space<vmem>>, vector<2x2xf32>
    %c0_49 = arith.constant 0 : index
    %c0_50 = arith.constant 0 : index
    %44 = vector.load %arg16[%c0_49, %c0_50] : memref<32x1xf32, #tpu.memory_space<vmem>>, vector<32x1xf32>
    %c0_51 = arith.constant 0 : index
    %c0_52 = arith.constant 0 : index
    %45 = vector.load %arg17[%c0_51, %c0_52] : memref<2x64xf32, #tpu.memory_space<vmem>>, vector<2x64xf32>
    %c0_53 = arith.constant 0 : index
    %c0_54 = arith.constant 0 : index
    %c0_55 = arith.constant 0 : index
    %46 = vector.load %arg21[%c0_53, %c0_54, %c0_55] : memref<2x64x64xf32, #tpu.memory_space<vmem>>, vector<1x64x64xf32>
    %47 = vector.shape_cast %46 : vector<1x64x64xf32> to vector<64x64xf32>
    %cst_56 = arith.constant dense<0.000000e+00> : vector<2x64xf32>
    %48 = tpu.matmul %45, %47, %cst_56 {dimension_numbers = #tpu.dot_dimension_numbers<[1], [0], [0], [1], [0, 0, 1, 1], [], []>} : vector<2x64xf32>, vector<64x64xf32>, vector<2x64xf32> -> vector<2x64xf32>
    %c0_57 = arith.constant 0 : index
    %c0_58 = arith.constant 0 : index
    %c0_59 = arith.constant 0 : index
    %49 = vector.load %arg22[%c0_57, %c0_58, %c0_59] : memref<2x1x64xf32, #tpu.memory_space<vmem>>, vector<1x1x64xf32>
    %50 = vector.shape_cast %49 : vector<1x1x64xf32> to vector<1x64xf32>
    %51 = vector.broadcast %50 : vector<1x64xf32> to vector<2x64xf32>
    %52 = arith.addf %48, %51 : vector<2x64xf32>
    %53 = arith.addf %45, %52 : vector<2x64xf32>
    %c0_60 = arith.constant 0 : index
    %c0_61 = arith.constant 0 : index
    %c0_62 = arith.constant 0 : index
    %54 = vector.load %arg31[%c0_60, %c0_61, %c0_62] : memref<2x1x64xf32, #tpu.memory_space<vmem>>, vector<1x1x64xf32>
    %55 = vector.shape_cast %54 : vector<1x1x64xf32> to vector<1x64xf32>
    %c0_63 = arith.constant 0 : index
    %c0_64 = arith.constant 0 : index
    %c0_65 = arith.constant 0 : index
    %56 = vector.load %arg32[%c0_63, %c0_64, %c0_65] : memref<2x1x64xf32, #tpu.memory_space<vmem>>, vector<1x1x64xf32>
    %57 = vector.shape_cast %56 : vector<1x1x64xf32> to vector<1x64xf32>
    %cst_66 = arith.constant dense<0.000000e+00> : vector<2xf32>
    %58 = vector.multi_reduction <add>, %53, %cst_66 [1] : vector<2x64xf32> to vector<2xf32>
    %59 = vector.shape_cast %58 : vector<2xf32> to vector<2x1xf32>
    %cst_67 = arith.constant 6.400000e+01 : f32
    %60 = vector.broadcast %cst_67 : f32 to vector<2x1xf32>
    %61 = arith.divf %59, %60 : vector<2x1xf32>
    %62 = vector.broadcast %61 : vector<2x1xf32> to vector<2x64xf32>
    %63 = arith.subf %53, %62 : vector<2x64xf32>
    %64 = arith.mulf %63, %63 : vector<2x64xf32>
    %cst_68 = arith.constant dense<0.000000e+00> : vector<2xf32>
    %65 = vector.multi_reduction <add>, %64, %cst_68 [1] : vector<2x64xf32> to vector<2xf32>
    %66 = vector.shape_cast %65 : vector<2xf32> to vector<2x1xf32>
    %cst_69 = arith.constant 6.400000e+01 : f32
    %67 = vector.broadcast %cst_69 : f32 to vector<2x1xf32>
    %68 = arith.divf %66, %67 : vector<2x1xf32>
    %cst_70 = arith.constant 9.99999974E-6 : f32
    %69 = vector.broadcast %cst_70 : f32 to vector<2x1xf32>
    %70 = arith.addf %68, %69 : vector<2x1xf32>
    %71 = math.rsqrt %70 : vector<2x1xf32>
    %72 = vector.broadcast %71 : vector<2x1xf32> to vector<2x64xf32>
    %73 = arith.mulf %63, %72 : vector<2x64xf32>
    %74 = vector.broadcast %55 : vector<1x64xf32> to vector<2x64xf32>
    %75 = arith.mulf %73, %74 : vector<2x64xf32>
    %76 = vector.broadcast %57 : vector<1x64xf32> to vector<2x64xf32>
    %77 = arith.addf %75, %76 : vector<2x64xf32>
    %c0_71 = arith.constant 0 : index
    %c0_72 = arith.constant 0 : index
    %c0_73 = arith.constant 0 : index
    %78 = vector.load %arg23[%c0_71, %c0_72, %c0_73] : memref<2x64x64xf32, #tpu.memory_space<vmem>>, vector<1x64x64xf32>
    %79 = vector.shape_cast %78 : vector<1x64x64xf32> to vector<64x64xf32>
    %cst_74 = arith.constant dense<0.000000e+00> : vector<2x64xf32>
    %80 = tpu.matmul %77, %79, %cst_74 {dimension_numbers = #tpu.dot_dimension_numbers<[1], [0], [0], [1], [0, 0, 1, 1], [], []>} : vector<2x64xf32>, vector<64x64xf32>, vector<2x64xf32> -> vector<2x64xf32>
    %c0_75 = arith.constant 0 : index
    %c0_76 = arith.constant 0 : index
    %c0_77 = arith.constant 0 : index
    %81 = vector.load %arg24[%c0_75, %c0_76, %c0_77] : memref<2x1x64xf32, #tpu.memory_space<vmem>>, vector<1x1x64xf32>
    %82 = vector.shape_cast %81 : vector<1x1x64xf32> to vector<1x64xf32>
    %83 = vector.broadcast %82 : vector<1x64xf32> to vector<2x64xf32>
    %84 = arith.addf %80, %83 : vector<2x64xf32>
    %c0_78 = arith.constant 0 : index
    %c0_79 = arith.constant 0 : index
    %c0_80 = arith.constant 0 : index
    %85 = vector.load %arg25[%c0_78, %c0_79, %c0_80] : memref<2x64x64xf32, #tpu.memory_space<vmem>>, vector<1x64x64xf32>
    %86 = vector.shape_cast %85 : vector<1x64x64xf32> to vector<64x64xf32>
    %cst_81 = arith.constant dense<0.000000e+00> : vector<32x64xf32>
    %87 = tpu.matmul %40, %86, %cst_81 {dimension_numbers = #tpu.dot_dimension_numbers<[1], [0], [0], [1], [0, 0, 1, 1], [], []>} : vector<32x64xf32>, vector<64x64xf32>, vector<32x64xf32> -> vector<32x64xf32>
    %c0_82 = arith.constant 0 : index
    %c0_83 = arith.constant 0 : index
    %c0_84 = arith.constant 0 : index
    %88 = vector.load %arg26[%c0_82, %c0_83, %c0_84] : memref<2x1x64xf32, #tpu.memory_space<vmem>>, vector<1x1x64xf32>
    %89 = vector.shape_cast %88 : vector<1x1x64xf32> to vector<1x64xf32>
    %90 = vector.broadcast %89 : vector<1x64xf32> to vector<32x64xf32>
    %91 = arith.addf %87, %90 : vector<32x64xf32>
    %c0_85 = arith.constant 0 : index
    %c0_86 = arith.constant 0 : index
    %c0_87 = arith.constant 0 : index
    %92 = vector.load %arg27[%c0_85, %c0_86, %c0_87] : memref<2x64x64xf32, #tpu.memory_space<vmem>>, vector<1x64x64xf32>
    %93 = vector.shape_cast %92 : vector<1x64x64xf32> to vector<64x64xf32>
    %cst_88 = arith.constant dense<0.000000e+00> : vector<32x64xf32>
    %94 = tpu.matmul %40, %93, %cst_88 {dimension_numbers = #tpu.dot_dimension_numbers<[1], [0], [0], [1], [0, 0, 1, 1], [], []>} : vector<32x64xf32>, vector<64x64xf32>, vector<32x64xf32> -> vector<32x64xf32>
    %c0_89 = arith.constant 0 : index
    %c0_90 = arith.constant 0 : index
    %c0_91 = arith.constant 0 : index
    %95 = vector.load %arg28[%c0_89, %c0_90, %c0_91] : memref<2x1x64xf32, #tpu.memory_space<vmem>>, vector<1x1x64xf32>
    %96 = vector.shape_cast %95 : vector<1x1x64xf32> to vector<1x64xf32>
    %97 = vector.broadcast %96 : vector<1x64xf32> to vector<32x64xf32>
    %98 = arith.addf %94, %97 : vector<32x64xf32>
    %cst_92 = arith.constant 0.000000e+00 : f32
    %99 = vector.broadcast %cst_92 : f32 to vector<2x64xf32>
    %100 = vector.extract_strided_slice %91 {offsets = [0, 0], sizes = [16, 64], strides = [1, 1]} : vector<32x64xf32> to vector<16x64xf32>
    %101 = vector.extract_strided_slice %98 {offsets = [0, 0], sizes = [16, 64], strides = [1, 1]} : vector<32x64xf32> to vector<16x64xf32>
    %102 = vector.extract_strided_slice %44 {offsets = [0, 0], sizes = [16, 1], strides = [1, 1]} : vector<32x1xf32> to vector<16x1xf32>
    %103 = vector.extract_strided_slice %84 {offsets = [0, 0], sizes = [1, 64], strides = [1, 1]} : vector<2x64xf32> to vector<1x64xf32>
    %104 = vector.broadcast %103 : vector<1x64xf32> to vector<16x64xf32>
    %105 = arith.mulf %104, %100 : vector<16x64xf32>
    %cst_93 = arith.constant dense<0.000000e+00> : vector<16x4xf32>
    %106 = tpu.matmul %105, %41, %cst_93 {dimension_numbers = #tpu.dot_dimension_numbers<[1], [0], [0], [1], [0, 0, 1, 1], [], []>} : vector<16x64xf32>, vector<64x4xf32>, vector<16x4xf32> -> vector<16x4xf32>
    %cst_94 = arith.constant 2.500000e-01 : f32
    %107 = vector.broadcast %cst_94 : f32 to vector<16x4xf32>
    %108 = arith.mulf %106, %107 : vector<16x4xf32>
    %109 = vector.broadcast %102 : vector<16x1xf32> to vector<16x4xf32>
    %110 = arith.addf %108, %109 : vector<16x4xf32>
    %cst_95 = arith.constant dense<0xFF800000> : vector<4xf32>
    %111 = vector.multi_reduction <maximumf>, %110, %cst_95 [0] : vector<16x4xf32> to vector<4xf32>
    %112 = vector.shape_cast %111 : vector<4xf32> to vector<1x4xf32>
    %113 = vector.broadcast %112 : vector<1x4xf32> to vector<16x4xf32>
    %114 = arith.subf %110, %113 : vector<16x4xf32>
    %115 = math.exp %114 : vector<16x4xf32>
    %cst_96 = arith.constant dense<0.000000e+00> : vector<4xf32>
    %116 = vector.multi_reduction <add>, %115, %cst_96 [0] : vector<16x4xf32> to vector<4xf32>
    %117 = vector.shape_cast %116 : vector<4xf32> to vector<1x4xf32>
    %118 = vector.broadcast %117 : vector<1x4xf32> to vector<16x4xf32>
    %119 = arith.divf %115, %118 : vector<16x4xf32>
    %cst_97 = arith.constant dense<0.000000e+00> : vector<16x64xf32>
    %120 = tpu.matmul %119, %42, %cst_97 {dimension_numbers = #tpu.dot_dimension_numbers<[1], [0], [0], [1], [0, 0, 1, 1], [], []>} : vector<16x4xf32>, vector<4x64xf32>, vector<16x64xf32> -> vector<16x64xf32>
    %121 = arith.mulf %120, %101 : vector<16x64xf32>
    %cst_98 = arith.constant dense<0.000000e+00> : vector<64xf32>
    %122 = vector.multi_reduction <add>, %121, %cst_98 [0] : vector<16x64xf32> to vector<64xf32>
    %123 = vector.shape_cast %122 : vector<64xf32> to vector<1x64xf32>
    %124 = vector.extract_strided_slice %43 {offsets = [0, 0], sizes = [2, 1], strides = [1, 1]} : vector<2x2xf32> to vector<2x1xf32>
    %125 = vector.broadcast %124 : vector<2x1xf32> to vector<2x64xf32>
    %126 = vector.broadcast %123 : vector<1x64xf32> to vector<2x64xf32>
    %127 = arith.mulf %125, %126 : vector<2x64xf32>
    %128 = arith.addf %99, %127 : vector<2x64xf32>
    %129 = vector.extract_strided_slice %91 {offsets = [16, 0], sizes = [16, 64], strides = [1, 1]} : vector<32x64xf32> to vector<16x64xf32>
    %130 = vector.extract_strided_slice %98 {offsets = [16, 0], sizes = [16, 64], strides = [1, 1]} : vector<32x64xf32> to vector<16x64xf32>
    %131 = vector.extract_strided_slice %44 {offsets = [16, 0], sizes = [16, 1], strides = [1, 1]} : vector<32x1xf32> to vector<16x1xf32>
    %132 = vector.extract_strided_slice %84 {offsets = [1, 0], sizes = [1, 64], strides = [1, 1]} : vector<2x64xf32> to vector<1x64xf32>
    %133 = vector.broadcast %132 : vector<1x64xf32> to vector<16x64xf32>
    %134 = arith.mulf %133, %129 : vector<16x64xf32>
    %cst_99 = arith.constant dense<0.000000e+00> : vector<16x4xf32>
    %135 = tpu.matmul %134, %41, %cst_99 {dimension_numbers = #tpu.dot_dimension_numbers<[1], [0], [0], [1], [0, 0, 1, 1], [], []>} : vector<16x64xf32>, vector<64x4xf32>, vector<16x4xf32> -> vector<16x4xf32>
    %cst_100 = arith.constant 2.500000e-01 : f32
    %136 = vector.broadcast %cst_100 : f32 to vector<16x4xf32>
    %137 = arith.mulf %135, %136 : vector<16x4xf32>
    %138 = vector.broadcast %131 : vector<16x1xf32> to vector<16x4xf32>
    %139 = arith.addf %137, %138 : vector<16x4xf32>
    %cst_101 = arith.constant dense<0xFF800000> : vector<4xf32>
    %140 = vector.multi_reduction <maximumf>, %139, %cst_101 [0] : vector<16x4xf32> to vector<4xf32>
    %141 = vector.shape_cast %140 : vector<4xf32> to vector<1x4xf32>
    %142 = vector.broadcast %141 : vector<1x4xf32> to vector<16x4xf32>
    %143 = arith.subf %139, %142 : vector<16x4xf32>
    %144 = math.exp %143 : vector<16x4xf32>
    %cst_102 = arith.constant dense<0.000000e+00> : vector<4xf32>
    %145 = vector.multi_reduction <add>, %144, %cst_102 [0] : vector<16x4xf32> to vector<4xf32>
    %146 = vector.shape_cast %145 : vector<4xf32> to vector<1x4xf32>
    %147 = vector.broadcast %146 : vector<1x4xf32> to vector<16x4xf32>
    %148 = arith.divf %144, %147 : vector<16x4xf32>
    %cst_103 = arith.constant dense<0.000000e+00> : vector<16x64xf32>
    %149 = tpu.matmul %148, %42, %cst_103 {dimension_numbers = #tpu.dot_dimension_numbers<[1], [0], [0], [1], [0, 0, 1, 1], [], []>} : vector<16x4xf32>, vector<4x64xf32>, vector<16x64xf32> -> vector<16x64xf32>
    %150 = arith.mulf %149, %130 : vector<16x64xf32>
    %cst_104 = arith.constant dense<0.000000e+00> : vector<64xf32>
    %151 = vector.multi_reduction <add>, %150, %cst_104 [0] : vector<16x64xf32> to vector<64xf32>
    %152 = vector.shape_cast %151 : vector<64xf32> to vector<1x64xf32>
    %153 = vector.extract_strided_slice %43 {offsets = [0, 1], sizes = [2, 1], strides = [1, 1]} : vector<2x2xf32> to vector<2x1xf32>
    %154 = vector.broadcast %153 : vector<2x1xf32> to vector<2x64xf32>
    %155 = vector.broadcast %152 : vector<1x64xf32> to vector<2x64xf32>
    %156 = arith.mulf %154, %155 : vector<2x64xf32>
    %157 = arith.addf %128, %156 : vector<2x64xf32>
    %c0_105 = arith.constant 0 : index
    %c0_106 = arith.constant 0 : index
    %c0_107 = arith.constant 0 : index
    %158 = vector.load %arg29[%c0_105, %c0_106, %c0_107] : memref<2x64x64xf32, #tpu.memory_space<vmem>>, vector<1x64x64xf32>
    %159 = vector.shape_cast %158 : vector<1x64x64xf32> to vector<64x64xf32>
    %cst_108 = arith.constant dense<0.000000e+00> : vector<2x64xf32>
    %160 = tpu.matmul %157, %159, %cst_108 {dimension_numbers = #tpu.dot_dimension_numbers<[1], [0], [0], [1], [0, 0, 1, 1], [], []>} : vector<2x64xf32>, vector<64x64xf32>, vector<2x64xf32> -> vector<2x64xf32>
    %c0_109 = arith.constant 0 : index
    %c0_110 = arith.constant 0 : index
    %c0_111 = arith.constant 0 : index
    %161 = vector.load %arg30[%c0_109, %c0_110, %c0_111] : memref<2x1x64xf32, #tpu.memory_space<vmem>>, vector<1x1x64xf32>
    %162 = vector.shape_cast %161 : vector<1x1x64xf32> to vector<1x64xf32>
    %163 = vector.broadcast %162 : vector<1x64xf32> to vector<2x64xf32>
    %164 = arith.addf %160, %163 : vector<2x64xf32>
    %165 = arith.addf %77, %164 : vector<2x64xf32>
    %c0_112 = arith.constant 0 : index
    %c0_113 = arith.constant 0 : index
    %c0_114 = arith.constant 0 : index
    %166 = vector.load %arg33[%c0_112, %c0_113, %c0_114] : memref<2x1x64xf32, #tpu.memory_space<vmem>>, vector<1x1x64xf32>
    %167 = vector.shape_cast %166 : vector<1x1x64xf32> to vector<1x64xf32>
    %c0_115 = arith.constant 0 : index
    %c0_116 = arith.constant 0 : index
    %c0_117 = arith.constant 0 : index
    %168 = vector.load %arg34[%c0_115, %c0_116, %c0_117] : memref<2x1x64xf32, #tpu.memory_space<vmem>>, vector<1x1x64xf32>
    %169 = vector.shape_cast %168 : vector<1x1x64xf32> to vector<1x64xf32>
    %cst_118 = arith.constant dense<0.000000e+00> : vector<2xf32>
    %170 = vector.multi_reduction <add>, %165, %cst_118 [1] : vector<2x64xf32> to vector<2xf32>
    %171 = vector.shape_cast %170 : vector<2xf32> to vector<2x1xf32>
    %cst_119 = arith.constant 6.400000e+01 : f32
    %172 = vector.broadcast %cst_119 : f32 to vector<2x1xf32>
    %173 = arith.divf %171, %172 : vector<2x1xf32>
    %174 = vector.broadcast %173 : vector<2x1xf32> to vector<2x64xf32>
    %175 = arith.subf %165, %174 : vector<2x64xf32>
    %176 = arith.mulf %175, %175 : vector<2x64xf32>
    %cst_120 = arith.constant dense<0.000000e+00> : vector<2xf32>
    %177 = vector.multi_reduction <add>, %176, %cst_120 [1] : vector<2x64xf32> to vector<2xf32>
    %178 = vector.shape_cast %177 : vector<2xf32> to vector<2x1xf32>
    %cst_121 = arith.constant 6.400000e+01 : f32
    %179 = vector.broadcast %cst_121 : f32 to vector<2x1xf32>
    %180 = arith.divf %178, %179 : vector<2x1xf32>
    %cst_122 = arith.constant 9.99999974E-6 : f32
    %181 = vector.broadcast %cst_122 : f32 to vector<2x1xf32>
    %182 = arith.addf %180, %181 : vector<2x1xf32>
    %183 = math.rsqrt %182 : vector<2x1xf32>
    %184 = vector.broadcast %183 : vector<2x1xf32> to vector<2x64xf32>
    %185 = arith.mulf %175, %184 : vector<2x64xf32>
    %186 = vector.broadcast %167 : vector<1x64xf32> to vector<2x64xf32>
    %187 = arith.mulf %185, %186 : vector<2x64xf32>
    %188 = vector.broadcast %169 : vector<1x64xf32> to vector<2x64xf32>
    %189 = arith.addf %187, %188 : vector<2x64xf32>
    %c0_123 = arith.constant 0 : index
    %c0_124 = arith.constant 0 : index
    %c0_125 = arith.constant 0 : index
    %190 = vector.load %arg37[%c0_123, %c0_124, %c0_125] : memref<2x64x32xf32, #tpu.memory_space<vmem>>, vector<1x64x32xf32>
    %191 = vector.shape_cast %190 : vector<1x64x32xf32> to vector<64x32xf32>
    %cst_126 = arith.constant dense<0.000000e+00> : vector<2x32xf32>
    %192 = tpu.matmul %189, %191, %cst_126 {dimension_numbers = #tpu.dot_dimension_numbers<[1], [0], [0], [1], [0, 0, 1, 1], [], []>} : vector<2x64xf32>, vector<64x32xf32>, vector<2x32xf32> -> vector<2x32xf32>
    %c0_127 = arith.constant 0 : index
    %c0_128 = arith.constant 0 : index
    %c0_129 = arith.constant 0 : index
    %193 = vector.load %arg38[%c0_127, %c0_128, %c0_129] : memref<2x1x32xf32, #tpu.memory_space<vmem>>, vector<1x1x32xf32>
    %194 = vector.shape_cast %193 : vector<1x1x32xf32> to vector<1x32xf32>
    %195 = vector.broadcast %194 : vector<1x32xf32> to vector<2x32xf32>
    %196 = arith.addf %192, %195 : vector<2x32xf32>
    %cst_130 = arith.constant 0.000000e+00 : f32
    %197 = vector.broadcast %cst_130 : f32 to vector<2x32xf32>
    %198 = arith.maximumf %196, %197 : vector<2x32xf32>
    %c0_131 = arith.constant 0 : index
    %c0_132 = arith.constant 0 : index
    %c0_133 = arith.constant 0 : index
    %199 = vector.load %arg39[%c0_131, %c0_132, %c0_133] : memref<2x32x64xf32, #tpu.memory_space<vmem>>, vector<1x32x64xf32>
    %200 = vector.shape_cast %199 : vector<1x32x64xf32> to vector<32x64xf32>
    %cst_134 = arith.constant dense<0.000000e+00> : vector<2x64xf32>
    %201 = tpu.matmul %198, %200, %cst_134 {dimension_numbers = #tpu.dot_dimension_numbers<[1], [0], [0], [1], [0, 0, 1, 1], [], []>} : vector<2x32xf32>, vector<32x64xf32>, vector<2x64xf32> -> vector<2x64xf32>
    %c0_135 = arith.constant 0 : index
    %c0_136 = arith.constant 0 : index
    %c0_137 = arith.constant 0 : index
    %202 = vector.load %arg40[%c0_135, %c0_136, %c0_137] : memref<2x1x64xf32, #tpu.memory_space<vmem>>, vector<1x1x64xf32>
    %203 = vector.shape_cast %202 : vector<1x1x64xf32> to vector<1x64xf32>
    %204 = vector.broadcast %203 : vector<1x64xf32> to vector<2x64xf32>
    %205 = arith.addf %201, %204 : vector<2x64xf32>
    %206 = arith.addf %189, %205 : vector<2x64xf32>
    %c0_138 = arith.constant 0 : index
    %c0_139 = arith.constant 0 : index
    %c0_140 = arith.constant 0 : index
    %207 = vector.load %arg35[%c0_138, %c0_139, %c0_140] : memref<2x1x64xf32, #tpu.memory_space<vmem>>, vector<1x1x64xf32>
    %208 = vector.shape_cast %207 : vector<1x1x64xf32> to vector<1x64xf32>
    %c0_141 = arith.constant 0 : index
    %c0_142 = arith.constant 0 : index
    %c0_143 = arith.constant 0 : index
    %209 = vector.load %arg36[%c0_141, %c0_142, %c0_143] : memref<2x1x64xf32, #tpu.memory_space<vmem>>, vector<1x1x64xf32>
    %210 = vector.shape_cast %209 : vector<1x1x64xf32> to vector<1x64xf32>
    %cst_144 = arith.constant dense<0.000000e+00> : vector<2xf32>
    %211 = vector.multi_reduction <add>, %206, %cst_144 [1] : vector<2x64xf32> to vector<2xf32>
    %212 = vector.shape_cast %211 : vector<2xf32> to vector<2x1xf32>
    %cst_145 = arith.constant 6.400000e+01 : f32
    %213 = vector.broadcast %cst_145 : f32 to vector<2x1xf32>
    %214 = arith.divf %212, %213 : vector<2x1xf32>
    %215 = vector.broadcast %214 : vector<2x1xf32> to vector<2x64xf32>
    %216 = arith.subf %206, %215 : vector<2x64xf32>
    %217 = arith.mulf %216, %216 : vector<2x64xf32>
    %cst_146 = arith.constant dense<0.000000e+00> : vector<2xf32>
    %218 = vector.multi_reduction <add>, %217, %cst_146 [1] : vector<2x64xf32> to vector<2xf32>
    %219 = vector.shape_cast %218 : vector<2xf32> to vector<2x1xf32>
    %cst_147 = arith.constant 6.400000e+01 : f32
    %220 = vector.broadcast %cst_147 : f32 to vector<2x1xf32>
    %221 = arith.divf %219, %220 : vector<2x1xf32>
    %cst_148 = arith.constant 9.99999974E-6 : f32
    %222 = vector.broadcast %cst_148 : f32 to vector<2x1xf32>
    %223 = arith.addf %221, %222 : vector<2x1xf32>
    %224 = math.rsqrt %223 : vector<2x1xf32>
    %225 = vector.broadcast %224 : vector<2x1xf32> to vector<2x64xf32>
    %226 = arith.mulf %216, %225 : vector<2x64xf32>
    %227 = vector.broadcast %208 : vector<1x64xf32> to vector<2x64xf32>
    %228 = arith.mulf %226, %227 : vector<2x64xf32>
    %229 = vector.broadcast %210 : vector<1x64xf32> to vector<2x64xf32>
    %230 = arith.addf %228, %229 : vector<2x64xf32>
    %c1 = arith.constant 1 : index
    %c0_149 = arith.constant 0 : index
    %c0_150 = arith.constant 0 : index
    %231 = vector.load %arg21[%c1, %c0_149, %c0_150] : memref<2x64x64xf32, #tpu.memory_space<vmem>>, vector<1x64x64xf32>
    %232 = vector.shape_cast %231 : vector<1x64x64xf32> to vector<64x64xf32>
    %cst_151 = arith.constant dense<0.000000e+00> : vector<2x64xf32>
    %233 = tpu.matmul %230, %232, %cst_151 {dimension_numbers = #tpu.dot_dimension_numbers<[1], [0], [0], [1], [0, 0, 1, 1], [], []>} : vector<2x64xf32>, vector<64x64xf32>, vector<2x64xf32> -> vector<2x64xf32>
    %c1_152 = arith.constant 1 : index
    %c0_153 = arith.constant 0 : index
    %c0_154 = arith.constant 0 : index
    %234 = vector.load %arg22[%c1_152, %c0_153, %c0_154] : memref<2x1x64xf32, #tpu.memory_space<vmem>>, vector<1x1x64xf32>
    %235 = vector.shape_cast %234 : vector<1x1x64xf32> to vector<1x64xf32>
    %236 = vector.broadcast %235 : vector<1x64xf32> to vector<2x64xf32>
    %237 = arith.addf %233, %236 : vector<2x64xf32>
    %238 = arith.addf %230, %237 : vector<2x64xf32>
    %c1_155 = arith.constant 1 : index
    %c0_156 = arith.constant 0 : index
    %c0_157 = arith.constant 0 : index
    %239 = vector.load %arg31[%c1_155, %c0_156, %c0_157] : memref<2x1x64xf32, #tpu.memory_space<vmem>>, vector<1x1x64xf32>
    %240 = vector.shape_cast %239 : vector<1x1x64xf32> to vector<1x64xf32>
    %c1_158 = arith.constant 1 : index
    %c0_159 = arith.constant 0 : index
    %c0_160 = arith.constant 0 : index
    %241 = vector.load %arg32[%c1_158, %c0_159, %c0_160] : memref<2x1x64xf32, #tpu.memory_space<vmem>>, vector<1x1x64xf32>
    %242 = vector.shape_cast %241 : vector<1x1x64xf32> to vector<1x64xf32>
    %cst_161 = arith.constant dense<0.000000e+00> : vector<2xf32>
    %243 = vector.multi_reduction <add>, %238, %cst_161 [1] : vector<2x64xf32> to vector<2xf32>
    %244 = vector.shape_cast %243 : vector<2xf32> to vector<2x1xf32>
    %cst_162 = arith.constant 6.400000e+01 : f32
    %245 = vector.broadcast %cst_162 : f32 to vector<2x1xf32>
    %246 = arith.divf %244, %245 : vector<2x1xf32>
    %247 = vector.broadcast %246 : vector<2x1xf32> to vector<2x64xf32>
    %248 = arith.subf %238, %247 : vector<2x64xf32>
    %249 = arith.mulf %248, %248 : vector<2x64xf32>
    %cst_163 = arith.constant dense<0.000000e+00> : vector<2xf32>
    %250 = vector.multi_reduction <add>, %249, %cst_163 [1] : vector<2x64xf32> to vector<2xf32>
    %251 = vector.shape_cast %250 : vector<2xf32> to vector<2x1xf32>
    %cst_164 = arith.constant 6.400000e+01 : f32
    %252 = vector.broadcast %cst_164 : f32 to vector<2x1xf32>
    %253 = arith.divf %251, %252 : vector<2x1xf32>
    %cst_165 = arith.constant 9.99999974E-6 : f32
    %254 = vector.broadcast %cst_165 : f32 to vector<2x1xf32>
    %255 = arith.addf %253, %254 : vector<2x1xf32>
    %256 = math.rsqrt %255 : vector<2x1xf32>
    %257 = vector.broadcast %256 : vector<2x1xf32> to vector<2x64xf32>
    %258 = arith.mulf %248, %257 : vector<2x64xf32>
    %259 = vector.broadcast %240 : vector<1x64xf32> to vector<2x64xf32>
    %260 = arith.mulf %258, %259 : vector<2x64xf32>
    %261 = vector.broadcast %242 : vector<1x64xf32> to vector<2x64xf32>
    %262 = arith.addf %260, %261 : vector<2x64xf32>
    %c1_166 = arith.constant 1 : index
    %c0_167 = arith.constant 0 : index
    %c0_168 = arith.constant 0 : index
    %263 = vector.load %arg23[%c1_166, %c0_167, %c0_168] : memref<2x64x64xf32, #tpu.memory_space<vmem>>, vector<1x64x64xf32>
    %264 = vector.shape_cast %263 : vector<1x64x64xf32> to vector<64x64xf32>
    %cst_169 = arith.constant dense<0.000000e+00> : vector<2x64xf32>
    %265 = tpu.matmul %262, %264, %cst_169 {dimension_numbers = #tpu.dot_dimension_numbers<[1], [0], [0], [1], [0, 0, 1, 1], [], []>} : vector<2x64xf32>, vector<64x64xf32>, vector<2x64xf32> -> vector<2x64xf32>
    %c1_170 = arith.constant 1 : index
    %c0_171 = arith.constant 0 : index
    %c0_172 = arith.constant 0 : index
    %266 = vector.load %arg24[%c1_170, %c0_171, %c0_172] : memref<2x1x64xf32, #tpu.memory_space<vmem>>, vector<1x1x64xf32>
    %267 = vector.shape_cast %266 : vector<1x1x64xf32> to vector<1x64xf32>
    %268 = vector.broadcast %267 : vector<1x64xf32> to vector<2x64xf32>
    %269 = arith.addf %265, %268 : vector<2x64xf32>
    %c1_173 = arith.constant 1 : index
    %c0_174 = arith.constant 0 : index
    %c0_175 = arith.constant 0 : index
    %270 = vector.load %arg25[%c1_173, %c0_174, %c0_175] : memref<2x64x64xf32, #tpu.memory_space<vmem>>, vector<1x64x64xf32>
    %271 = vector.shape_cast %270 : vector<1x64x64xf32> to vector<64x64xf32>
    %cst_176 = arith.constant dense<0.000000e+00> : vector<32x64xf32>
    %272 = tpu.matmul %40, %271, %cst_176 {dimension_numbers = #tpu.dot_dimension_numbers<[1], [0], [0], [1], [0, 0, 1, 1], [], []>} : vector<32x64xf32>, vector<64x64xf32>, vector<32x64xf32> -> vector<32x64xf32>
    %c1_177 = arith.constant 1 : index
    %c0_178 = arith.constant 0 : index
    %c0_179 = arith.constant 0 : index
    %273 = vector.load %arg26[%c1_177, %c0_178, %c0_179] : memref<2x1x64xf32, #tpu.memory_space<vmem>>, vector<1x1x64xf32>
    %274 = vector.shape_cast %273 : vector<1x1x64xf32> to vector<1x64xf32>
    %275 = vector.broadcast %274 : vector<1x64xf32> to vector<32x64xf32>
    %276 = arith.addf %272, %275 : vector<32x64xf32>
    %c1_180 = arith.constant 1 : index
    %c0_181 = arith.constant 0 : index
    %c0_182 = arith.constant 0 : index
    %277 = vector.load %arg27[%c1_180, %c0_181, %c0_182] : memref<2x64x64xf32, #tpu.memory_space<vmem>>, vector<1x64x64xf32>
    %278 = vector.shape_cast %277 : vector<1x64x64xf32> to vector<64x64xf32>
    %cst_183 = arith.constant dense<0.000000e+00> : vector<32x64xf32>
    %279 = tpu.matmul %40, %278, %cst_183 {dimension_numbers = #tpu.dot_dimension_numbers<[1], [0], [0], [1], [0, 0, 1, 1], [], []>} : vector<32x64xf32>, vector<64x64xf32>, vector<32x64xf32> -> vector<32x64xf32>
    %c1_184 = arith.constant 1 : index
    %c0_185 = arith.constant 0 : index
    %c0_186 = arith.constant 0 : index
    %280 = vector.load %arg28[%c1_184, %c0_185, %c0_186] : memref<2x1x64xf32, #tpu.memory_space<vmem>>, vector<1x1x64xf32>
    %281 = vector.shape_cast %280 : vector<1x1x64xf32> to vector<1x64xf32>
    %282 = vector.broadcast %281 : vector<1x64xf32> to vector<32x64xf32>
    %283 = arith.addf %279, %282 : vector<32x64xf32>
    %cst_187 = arith.constant 0.000000e+00 : f32
    %284 = vector.broadcast %cst_187 : f32 to vector<2x64xf32>
    %285 = vector.extract_strided_slice %276 {offsets = [0, 0], sizes = [16, 64], strides = [1, 1]} : vector<32x64xf32> to vector<16x64xf32>
    %286 = vector.extract_strided_slice %283 {offsets = [0, 0], sizes = [16, 64], strides = [1, 1]} : vector<32x64xf32> to vector<16x64xf32>
    %287 = vector.extract_strided_slice %44 {offsets = [0, 0], sizes = [16, 1], strides = [1, 1]} : vector<32x1xf32> to vector<16x1xf32>
    %288 = vector.extract_strided_slice %269 {offsets = [0, 0], sizes = [1, 64], strides = [1, 1]} : vector<2x64xf32> to vector<1x64xf32>
    %289 = vector.broadcast %288 : vector<1x64xf32> to vector<16x64xf32>
    %290 = arith.mulf %289, %285 : vector<16x64xf32>
    %cst_188 = arith.constant dense<0.000000e+00> : vector<16x4xf32>
    %291 = tpu.matmul %290, %41, %cst_188 {dimension_numbers = #tpu.dot_dimension_numbers<[1], [0], [0], [1], [0, 0, 1, 1], [], []>} : vector<16x64xf32>, vector<64x4xf32>, vector<16x4xf32> -> vector<16x4xf32>
    %cst_189 = arith.constant 2.500000e-01 : f32
    %292 = vector.broadcast %cst_189 : f32 to vector<16x4xf32>
    %293 = arith.mulf %291, %292 : vector<16x4xf32>
    %294 = vector.broadcast %287 : vector<16x1xf32> to vector<16x4xf32>
    %295 = arith.addf %293, %294 : vector<16x4xf32>
    %cst_190 = arith.constant dense<0xFF800000> : vector<4xf32>
    %296 = vector.multi_reduction <maximumf>, %295, %cst_190 [0] : vector<16x4xf32> to vector<4xf32>
    %297 = vector.shape_cast %296 : vector<4xf32> to vector<1x4xf32>
    %298 = vector.broadcast %297 : vector<1x4xf32> to vector<16x4xf32>
    %299 = arith.subf %295, %298 : vector<16x4xf32>
    %300 = math.exp %299 : vector<16x4xf32>
    %cst_191 = arith.constant dense<0.000000e+00> : vector<4xf32>
    %301 = vector.multi_reduction <add>, %300, %cst_191 [0] : vector<16x4xf32> to vector<4xf32>
    %302 = vector.shape_cast %301 : vector<4xf32> to vector<1x4xf32>
    %303 = vector.broadcast %302 : vector<1x4xf32> to vector<16x4xf32>
    %304 = arith.divf %300, %303 : vector<16x4xf32>
    %cst_192 = arith.constant dense<0.000000e+00> : vector<16x64xf32>
    %305 = tpu.matmul %304, %42, %cst_192 {dimension_numbers = #tpu.dot_dimension_numbers<[1], [0], [0], [1], [0, 0, 1, 1], [], []>} : vector<16x4xf32>, vector<4x64xf32>, vector<16x64xf32> -> vector<16x64xf32>
    %306 = arith.mulf %305, %286 : vector<16x64xf32>
    %cst_193 = arith.constant dense<0.000000e+00> : vector<64xf32>
    %307 = vector.multi_reduction <add>, %306, %cst_193 [0] : vector<16x64xf32> to vector<64xf32>
    %308 = vector.shape_cast %307 : vector<64xf32> to vector<1x64xf32>
    %309 = vector.extract_strided_slice %43 {offsets = [0, 0], sizes = [2, 1], strides = [1, 1]} : vector<2x2xf32> to vector<2x1xf32>
    %310 = vector.broadcast %309 : vector<2x1xf32> to vector<2x64xf32>
    %311 = vector.broadcast %308 : vector<1x64xf32> to vector<2x64xf32>
    %312 = arith.mulf %310, %311 : vector<2x64xf32>
    %313 = arith.addf %284, %312 : vector<2x64xf32>
    %314 = vector.extract_strided_slice %276 {offsets = [16, 0], sizes = [16, 64], strides = [1, 1]} : vector<32x64xf32> to vector<16x64xf32>
    %315 = vector.extract_strided_slice %283 {offsets = [16, 0], sizes = [16, 64], strides = [1, 1]} : vector<32x64xf32> to vector<16x64xf32>
    %316 = vector.extract_strided_slice %44 {offsets = [16, 0], sizes = [16, 1], strides = [1, 1]} : vector<32x1xf32> to vector<16x1xf32>
    %317 = vector.extract_strided_slice %269 {offsets = [1, 0], sizes = [1, 64], strides = [1, 1]} : vector<2x64xf32> to vector<1x64xf32>
    %318 = vector.broadcast %317 : vector<1x64xf32> to vector<16x64xf32>
    %319 = arith.mulf %318, %314 : vector<16x64xf32>
    %cst_194 = arith.constant dense<0.000000e+00> : vector<16x4xf32>
    %320 = tpu.matmul %319, %41, %cst_194 {dimension_numbers = #tpu.dot_dimension_numbers<[1], [0], [0], [1], [0, 0, 1, 1], [], []>} : vector<16x64xf32>, vector<64x4xf32>, vector<16x4xf32> -> vector<16x4xf32>
    %cst_195 = arith.constant 2.500000e-01 : f32
    %321 = vector.broadcast %cst_195 : f32 to vector<16x4xf32>
    %322 = arith.mulf %320, %321 : vector<16x4xf32>
    %323 = vector.broadcast %316 : vector<16x1xf32> to vector<16x4xf32>
    %324 = arith.addf %322, %323 : vector<16x4xf32>
    %cst_196 = arith.constant dense<0xFF800000> : vector<4xf32>
    %325 = vector.multi_reduction <maximumf>, %324, %cst_196 [0] : vector<16x4xf32> to vector<4xf32>
    %326 = vector.shape_cast %325 : vector<4xf32> to vector<1x4xf32>
    %327 = vector.broadcast %326 : vector<1x4xf32> to vector<16x4xf32>
    %328 = arith.subf %324, %327 : vector<16x4xf32>
    %329 = math.exp %328 : vector<16x4xf32>
    %cst_197 = arith.constant dense<0.000000e+00> : vector<4xf32>
    %330 = vector.multi_reduction <add>, %329, %cst_197 [0] : vector<16x4xf32> to vector<4xf32>
    %331 = vector.shape_cast %330 : vector<4xf32> to vector<1x4xf32>
    %332 = vector.broadcast %331 : vector<1x4xf32> to vector<16x4xf32>
    %333 = arith.divf %329, %332 : vector<16x4xf32>
    %cst_198 = arith.constant dense<0.000000e+00> : vector<16x64xf32>
    %334 = tpu.matmul %333, %42, %cst_198 {dimension_numbers = #tpu.dot_dimension_numbers<[1], [0], [0], [1], [0, 0, 1, 1], [], []>} : vector<16x4xf32>, vector<4x64xf32>, vector<16x64xf32> -> vector<16x64xf32>
    %335 = arith.mulf %334, %315 : vector<16x64xf32>
    %cst_199 = arith.constant dense<0.000000e+00> : vector<64xf32>
    %336 = vector.multi_reduction <add>, %335, %cst_199 [0] : vector<16x64xf32> to vector<64xf32>
    %337 = vector.shape_cast %336 : vector<64xf32> to vector<1x64xf32>
    %338 = vector.extract_strided_slice %43 {offsets = [0, 1], sizes = [2, 1], strides = [1, 1]} : vector<2x2xf32> to vector<2x1xf32>
    %339 = vector.broadcast %338 : vector<2x1xf32> to vector<2x64xf32>
    %340 = vector.broadcast %337 : vector<1x64xf32> to vector<2x64xf32>
    %341 = arith.mulf %339, %340 : vector<2x64xf32>
    %342 = arith.addf %313, %341 : vector<2x64xf32>
    %c1_200 = arith.constant 1 : index
    %c0_201 = arith.constant 0 : index
    %c0_202 = arith.constant 0 : index
    %343 = vector.load %arg29[%c1_200, %c0_201, %c0_202] : memref<2x64x64xf32, #tpu.memory_space<vmem>>, vector<1x64x64xf32>
    %344 = vector.shape_cast %343 : vector<1x64x64xf32> to vector<64x64xf32>
    %cst_203 = arith.constant dense<0.000000e+00> : vector<2x64xf32>
    %345 = tpu.matmul %342, %344, %cst_203 {dimension_numbers = #tpu.dot_dimension_numbers<[1], [0], [0], [1], [0, 0, 1, 1], [], []>} : vector<2x64xf32>, vector<64x64xf32>, vector<2x64xf32> -> vector<2x64xf32>
    %c1_204 = arith.constant 1 : index
    %c0_205 = arith.constant 0 : index
    %c0_206 = arith.constant 0 : index
    %346 = vector.load %arg30[%c1_204, %c0_205, %c0_206] : memref<2x1x64xf32, #tpu.memory_space<vmem>>, vector<1x1x64xf32>
    %347 = vector.shape_cast %346 : vector<1x1x64xf32> to vector<1x64xf32>
    %348 = vector.broadcast %347 : vector<1x64xf32> to vector<2x64xf32>
    %349 = arith.addf %345, %348 : vector<2x64xf32>
    %350 = arith.addf %262, %349 : vector<2x64xf32>
    %c1_207 = arith.constant 1 : index
    %c0_208 = arith.constant 0 : index
    %c0_209 = arith.constant 0 : index
    %351 = vector.load %arg33[%c1_207, %c0_208, %c0_209] : memref<2x1x64xf32, #tpu.memory_space<vmem>>, vector<1x1x64xf32>
    %352 = vector.shape_cast %351 : vector<1x1x64xf32> to vector<1x64xf32>
    %c1_210 = arith.constant 1 : index
    %c0_211 = arith.constant 0 : index
    %c0_212 = arith.constant 0 : index
    %353 = vector.load %arg34[%c1_210, %c0_211, %c0_212] : memref<2x1x64xf32, #tpu.memory_space<vmem>>, vector<1x1x64xf32>
    %354 = vector.shape_cast %353 : vector<1x1x64xf32> to vector<1x64xf32>
    %cst_213 = arith.constant dense<0.000000e+00> : vector<2xf32>
    %355 = vector.multi_reduction <add>, %350, %cst_213 [1] : vector<2x64xf32> to vector<2xf32>
    %356 = vector.shape_cast %355 : vector<2xf32> to vector<2x1xf32>
    %cst_214 = arith.constant 6.400000e+01 : f32
    %357 = vector.broadcast %cst_214 : f32 to vector<2x1xf32>
    %358 = arith.divf %356, %357 : vector<2x1xf32>
    %359 = vector.broadcast %358 : vector<2x1xf32> to vector<2x64xf32>
    %360 = arith.subf %350, %359 : vector<2x64xf32>
    %361 = arith.mulf %360, %360 : vector<2x64xf32>
    %cst_215 = arith.constant dense<0.000000e+00> : vector<2xf32>
    %362 = vector.multi_reduction <add>, %361, %cst_215 [1] : vector<2x64xf32> to vector<2xf32>
    %363 = vector.shape_cast %362 : vector<2xf32> to vector<2x1xf32>
    %cst_216 = arith.constant 6.400000e+01 : f32
    %364 = vector.broadcast %cst_216 : f32 to vector<2x1xf32>
    %365 = arith.divf %363, %364 : vector<2x1xf32>
    %cst_217 = arith.constant 9.99999974E-6 : f32
    %366 = vector.broadcast %cst_217 : f32 to vector<2x1xf32>
    %367 = arith.addf %365, %366 : vector<2x1xf32>
    %368 = math.rsqrt %367 : vector<2x1xf32>
    %369 = vector.broadcast %368 : vector<2x1xf32> to vector<2x64xf32>
    %370 = arith.mulf %360, %369 : vector<2x64xf32>
    %371 = vector.broadcast %352 : vector<1x64xf32> to vector<2x64xf32>
    %372 = arith.mulf %370, %371 : vector<2x64xf32>
    %373 = vector.broadcast %354 : vector<1x64xf32> to vector<2x64xf32>
    %374 = arith.addf %372, %373 : vector<2x64xf32>
    %c1_218 = arith.constant 1 : index
    %c0_219 = arith.constant 0 : index
    %c0_220 = arith.constant 0 : index
    %375 = vector.load %arg37[%c1_218, %c0_219, %c0_220] : memref<2x64x32xf32, #tpu.memory_space<vmem>>, vector<1x64x32xf32>
    %376 = vector.shape_cast %375 : vector<1x64x32xf32> to vector<64x32xf32>
    %cst_221 = arith.constant dense<0.000000e+00> : vector<2x32xf32>
    %377 = tpu.matmul %374, %376, %cst_221 {dimension_numbers = #tpu.dot_dimension_numbers<[1], [0], [0], [1], [0, 0, 1, 1], [], []>} : vector<2x64xf32>, vector<64x32xf32>, vector<2x32xf32> -> vector<2x32xf32>
    %c1_222 = arith.constant 1 : index
    %c0_223 = arith.constant 0 : index
    %c0_224 = arith.constant 0 : index
    %378 = vector.load %arg38[%c1_222, %c0_223, %c0_224] : memref<2x1x32xf32, #tpu.memory_space<vmem>>, vector<1x1x32xf32>
    %379 = vector.shape_cast %378 : vector<1x1x32xf32> to vector<1x32xf32>
    %380 = vector.broadcast %379 : vector<1x32xf32> to vector<2x32xf32>
    %381 = arith.addf %377, %380 : vector<2x32xf32>
    %cst_225 = arith.constant 0.000000e+00 : f32
    %382 = vector.broadcast %cst_225 : f32 to vector<2x32xf32>
    %383 = arith.maximumf %381, %382 : vector<2x32xf32>
    %c1_226 = arith.constant 1 : index
    %c0_227 = arith.constant 0 : index
    %c0_228 = arith.constant 0 : index
    %384 = vector.load %arg39[%c1_226, %c0_227, %c0_228] : memref<2x32x64xf32, #tpu.memory_space<vmem>>, vector<1x32x64xf32>
    %385 = vector.shape_cast %384 : vector<1x32x64xf32> to vector<32x64xf32>
    %cst_229 = arith.constant dense<0.000000e+00> : vector<2x64xf32>
    %386 = tpu.matmul %383, %385, %cst_229 {dimension_numbers = #tpu.dot_dimension_numbers<[1], [0], [0], [1], [0, 0, 1, 1], [], []>} : vector<2x32xf32>, vector<32x64xf32>, vector<2x64xf32> -> vector<2x64xf32>
    %c1_230 = arith.constant 1 : index
    %c0_231 = arith.constant 0 : index
    %c0_232 = arith.constant 0 : index
    %387 = vector.load %arg40[%c1_230, %c0_231, %c0_232] : memref<2x1x64xf32, #tpu.memory_space<vmem>>, vector<1x1x64xf32>
    %388 = vector.shape_cast %387 : vector<1x1x64xf32> to vector<1x64xf32>
    %389 = vector.broadcast %388 : vector<1x64xf32> to vector<2x64xf32>
    %390 = arith.addf %386, %389 : vector<2x64xf32>
    %391 = arith.addf %374, %390 : vector<2x64xf32>
    %c1_233 = arith.constant 1 : index
    %c0_234 = arith.constant 0 : index
    %c0_235 = arith.constant 0 : index
    %392 = vector.load %arg35[%c1_233, %c0_234, %c0_235] : memref<2x1x64xf32, #tpu.memory_space<vmem>>, vector<1x1x64xf32>
    %393 = vector.shape_cast %392 : vector<1x1x64xf32> to vector<1x64xf32>
    %c1_236 = arith.constant 1 : index
    %c0_237 = arith.constant 0 : index
    %c0_238 = arith.constant 0 : index
    %394 = vector.load %arg36[%c1_236, %c0_237, %c0_238] : memref<2x1x64xf32, #tpu.memory_space<vmem>>, vector<1x1x64xf32>
    %395 = vector.shape_cast %394 : vector<1x1x64xf32> to vector<1x64xf32>
    %cst_239 = arith.constant dense<0.000000e+00> : vector<2xf32>
    %396 = vector.multi_reduction <add>, %391, %cst_239 [1] : vector<2x64xf32> to vector<2xf32>
    %397 = vector.shape_cast %396 : vector<2xf32> to vector<2x1xf32>
    %cst_240 = arith.constant 6.400000e+01 : f32
    %398 = vector.broadcast %cst_240 : f32 to vector<2x1xf32>
    %399 = arith.divf %397, %398 : vector<2x1xf32>
    %400 = vector.broadcast %399 : vector<2x1xf32> to vector<2x64xf32>
    %401 = arith.subf %391, %400 : vector<2x64xf32>
    %402 = arith.mulf %401, %401 : vector<2x64xf32>
    %cst_241 = arith.constant dense<0.000000e+00> : vector<2xf32>
    %403 = vector.multi_reduction <add>, %402, %cst_241 [1] : vector<2x64xf32> to vector<2xf32>
    %404 = vector.shape_cast %403 : vector<2xf32> to vector<2x1xf32>
    %cst_242 = arith.constant 6.400000e+01 : f32
    %405 = vector.broadcast %cst_242 : f32 to vector<2x1xf32>
    %406 = arith.divf %404, %405 : vector<2x1xf32>
    %cst_243 = arith.constant 9.99999974E-6 : f32
    %407 = vector.broadcast %cst_243 : f32 to vector<2x1xf32>
    %408 = arith.addf %406, %407 : vector<2x1xf32>
    %409 = math.rsqrt %408 : vector<2x1xf32>
    %410 = vector.broadcast %409 : vector<2x1xf32> to vector<2x64xf32>
    %411 = arith.mulf %401, %410 : vector<2x64xf32>
    %412 = vector.broadcast %393 : vector<1x64xf32> to vector<2x64xf32>
    %413 = arith.mulf %411, %412 : vector<2x64xf32>
    %414 = vector.broadcast %395 : vector<1x64xf32> to vector<2x64xf32>
    %415 = arith.addf %413, %414 : vector<2x64xf32>
    %c0_244 = arith.constant 0 : index
    %c0_245 = arith.constant 0 : index
    %416 = vector.load %arg41[%c0_244, %c0_245] : memref<64x128xf32, #tpu.memory_space<vmem>>, vector<64x128xf32>
    %cst_246 = arith.constant dense<0.000000e+00> : vector<2x128xf32>
    %417 = tpu.matmul %415, %416, %cst_246 {dimension_numbers = #tpu.dot_dimension_numbers<[1], [0], [0], [1], [0, 0, 1, 1], [], []>} : vector<2x64xf32>, vector<64x128xf32>, vector<2x128xf32> -> vector<2x128xf32>
    %c0_247 = arith.constant 0 : index
    %c0_248 = arith.constant 0 : index
    %418 = vector.load %arg42[%c0_247, %c0_248] : memref<1x128xf32, #tpu.memory_space<vmem>>, vector<1x128xf32>
    %419 = vector.broadcast %418 : vector<1x128xf32> to vector<2x128xf32>
    %420 = arith.addf %417, %419 : vector<2x128xf32>
    %c0_249 = arith.constant 0 : index
    %c0_250 = arith.constant 0 : index
    %421 = vector.load %arg43[%c0_249, %c0_250] : memref<2x128xf32, #tpu.memory_space<vmem>>, vector<2x128xf32>
    %cst_251 = arith.constant 0.000000e+00 : f32
    %422 = vector.broadcast %cst_251 : f32 to vector<2x128xf32>
    %423 = arith.cmpf ogt, %421, %422 : vector<2x128xf32>
    %cst_252 = arith.constant 0xFF800000 : f32
    %424 = vector.broadcast %cst_252 : f32 to vector<2x128xf32>
    %425 = arith.select %423, %420, %424 : vector<2x128xi1>, vector<2x128xf32>
    %c0_253 = arith.constant 0 : index
    %c0_254 = arith.constant 0 : index
    %426 = vector.load %arg44[%c0_253, %c0_254] : memref<2x128xf32, #tpu.memory_space<vmem>>, vector<2x128xf32>
    tpu.vector_store %arg44[%c0_253, %c0_254], %425 {strides = array<i32>} : memref<2x128xf32, #tpu.memory_space<vmem>>, vector<2x128xf32>,
    return
  }
}

</mosaic_0001>

<llo_original>
// kernel: eq.1
$region0: #{eq.1}
  %s0 = inlined_call_operand.vmem [shape: s32[2,8], index: 0, kind: input, shape index: {}]
  %s1 = inlined_call_operand.vmem [shape: s32[16], index: 1, kind: output, shape index: {}]
  $region1: #{eq.1} parent=0
    #allocation0 [shape = 'u8[4096]{0}', space=vmem, size = 0x1000, scoped, tag = 'scoped mem for output reshape']
    #allocation1 [shape = 'u8[4096]{0}', space=vmem, size = 0x1000, scoped, tag = 'scoped mem for input reshape']
    %s3 = sshllo.u32 0, 2
    %v4 = vld [vmem:[%s0] sm:%s3]
    %5 = vst [vmem:[#allocation1] sm:%s3] %v4
    %v6 = vld [vmem:[#allocation1] sm:$0x1]
    %vm7 = vcmask 64512
    %8 = vst.msk [vmem:[#allocation0] sm:$0x1] %vm7, %v6
    %s9 = scalar_lea.vmem [#allocation1], 1
    %v10 = vld [vmem:[%s9] sm:$0x1]
    %11 = vrot.lane.b32.xlu0 %v10, 8
    %v12 = vpop.permute.xlu0 %11
    %vm13 = vcmask 130112
    %14 = vst.msk [vmem:[#allocation0] sm:$0x1] %vm13, %v12
    %s16 = sshllo.u32 0, 1
    %v18 = vld [vmem:[#allocation0] sm:%s16]
    %s19 = sshllo.u32 0, 1
    %20 = vst [vmem:[%s1] sm:%s19] %v18

// kernel: tile.18
$region0: #{tile.18}
  #allocation0 [shape = 's32[1]{0}', space=sflag, size = 0x4, scoped, tag = 'scoped memory for tile.18']
  %s0 = inlined_call_operand.vmem [shape: f32[16], index: 0, kind: input, shape index: {}]
  %s1 = inlined_call_operand.vmem [shape: f32[2,16], index: 1, kind: output, shape index: {}]
  // Predicated region
  $region2: #{tile.18} parent=0 // pred_check
    _
  $region3: #{tile.18} parent=0 // pred_check_branch
    %3 = sbr.rel (0) target = $region5
  $region4: #{tile.18} parent=0 // pred_region
    _
  $region5: #{tile.18} parent=0 // pred_fallthru
    _
  %v4 = vld [vmem:[%s0] ss:$0 sm:$0xff]
  %5 = vst [vmem:[%s1] sm:$0x3] %v4

// kernel: tile.0
$region0: #{tile.0}
  %s0 = inlined_call_operand.vmem [shape: f32[2,16], index: 0, kind: input, shape index: {}]
  %s1 = inlined_call_operand.vmem [shape: f32[32,1], index: 1, kind: output, shape index: {}]
  $region1: #{tile.0} parent=0
    #allocation0 [shape = 'u8[4096]{0}', space=vmem, size = 0x1000, scoped, tag = 'scoped mem for input reshape']
    %s3 = sshllo.u32 0, 2
    %v4 = vld [vmem:[%s0] sm:%s3]
    %5 = vst [vmem:[#allocation0] sm:%s3] %v4
    %v6 = vld [vmem:[#allocation0] sm:$0x3]
    %vm7 = vcmask 7168
    %8 = vst.msk [vmem:[%s1] ss:$16 sm:$0x3] %vm7, %v6
    %v9 = vld [vmem:[#allocation0] sm:$0x3]
    %10 = vrot.lane.b32.xlu0 %v9, 127
    %v11 = vpop.permute.xlu0 %10
    %vm12 = vcmask 7168
    %s13 = scalar_lea.vmem %s1, 1
    %14 = vst.msk [vmem:[%s13] ss:$16 sm:$0x3] %vm12, %v11
    %v15 = vld [vmem:[#allocation0] sm:$0x3]
    %16 = vrot.lane.b32.xlu0 %v15, 126
    %v17 = vpop.permute.xlu0 %16
    %vm18 = vcmask 7168
    %s19 = scalar_lea.vmem %s1, 2
    %20 = vst.msk [vmem:[%s19] ss:$16 sm:$0x3] %vm18, %v17
    %v21 = vld [vmem:[#allocation0] sm:$0x3]
    %22 = vrot.lane.b32.xlu0 %v21, 125
    %v23 = vpop.permute.xlu0 %22
    %vm24 = vcmask 7168
    %s25 = scalar_lea.vmem %s1, 3
    %26 = vst.msk [vmem:[%s25] ss:$16 sm:$0x3] %vm24, %v23
    %v27 = vld [vmem:[#allocation0] sm:$0x3]
    %28 = vrot.lane.b32.xlu0 %v27, 124
    %v29 = vpop.permute.xlu0 %28
    %vm30 = vcmask 7168
    %s31 = scalar_lea.vmem %s1, 4
    %32 = vst.msk [vmem:[%s31] ss:$16 sm:$0x3] %vm30, %v29
    %v33 = vld [vmem:[#allocation0] sm:$0x3]
    %34 = vrot.lane.b32.xlu0 %v33, 123
    %v35 = vpop.permute.xlu0 %34
    %vm36 = vcmask 7168
    %s37 = scalar_lea.vmem %s1, 5
    %38 = vst.msk [vmem:[%s37] ss:$16 sm:$0x3] %vm36, %v35
    %v39 = vld [vmem:[#allocation0] sm:$0x3]
    %40 = vrot.lane.b32.xlu0 %v39, 122
    %v41 = vpop.permute.xlu0 %40
    %vm42 = vcmask 7168
    %s43 = scalar_lea.vmem %s1, 6
    %44 = vst.msk [vmem:[%s43] ss:$16 sm:$0x3] %vm42, %v41
    %v45 = vld [vmem:[#allocation0] sm:$0x3]
    %46 = vrot.lane.b32.xlu0 %v45, 121
    %v47 = vpop.permute.xlu0 %46
    %vm48 = vcmask 7168
    %s49 = scalar_lea.vmem %s1, 7
    %50 = vst.msk [vmem:[%s49] ss:$16 sm:$0x3] %vm48, %v47
    %v51 = vld [vmem:[#allocation0] sm:$0x3]
    %52 = vrot.lane.b32.xlu0 %v51, 120
    %v53 = vpop.permute.xlu0 %52
    %vm54 = vcmask 7168
    %s55 = scalar_lea.vmem %s1, 8
    %56 = vst.msk [vmem:[%s55] ss:$16 sm:$0x3] %vm54, %v53
    %v57 = vld [vmem:[#allocation0] sm:$0x3]
    %58 = vrot.lane.b32.xlu0 %v57, 119
    %v59 = vpop.permute.xlu0 %58
    %vm60 = vcmask 7168
    %s61 = scalar_lea.vmem %s1, 9
    %62 = vst.msk [vmem:[%s61] ss:$16 sm:$0x3] %vm60, %v59
    %v63 = vld [vmem:[#allocation0] sm:$0x3]
    %64 = vrot.lane.b32.xlu0 %v63, 118
    %v65 = vpop.permute.xlu0 %64
    %vm66 = vcmask 7168
    %s67 = scalar_lea.vmem %s1, 10
    %68 = vst.msk [vmem:[%s67] ss:$16 sm:$0x3] %vm66, %v65
    %v69 = vld [vmem:[#allocation0] sm:$0x3]
    %70 = vrot.lane.b32.xlu0 %v69, 117
    %v71 = vpop.permute.xlu0 %70
    %vm72 = vcmask 7168
    %s73 = scalar_lea.vmem %s1, 11
    %74 = vst.msk [vmem:[%s73] ss:$16 sm:$0x3] %vm72, %v71
    %v75 = vld [vmem:[#allocation0] sm:$0x3]
    %76 = vrot.lane.b32.xlu0 %v75, 116
    %v77 = vpop.permute.xlu0 %76
    %vm78 = vcmask 7168
    %s79 = scalar_lea.vmem %s1, 12
    %80 = vst.msk [vmem:[%s79] ss:$16 sm:$0x3] %vm78, %v77
    %v81 = vld [vmem:[#allocation0] sm:$0x3]
    %82 = vrot.lane.b32.xlu0 %v81, 115
    %v83 = vpop.permute.xlu0 %82
    %vm84 = vcmask 7168
    %s85 = scalar_lea.vmem %s1, 13
    %86 = vst.msk [vmem:[%s85] ss:$16 sm:$0x3] %vm84, %v83
    %v87 = vld [vmem:[#allocation0] sm:$0x3]
    %88 = vrot.lane.b32.xlu0 %v87, 114
    %v89 = vpop.permute.xlu0 %88
    %vm90 = vcmask 7168
    %s91 = scalar_lea.vmem %s1, 14
    %92 = vst.msk [vmem:[%s91] ss:$16 sm:$0x3] %vm90, %v89
    %v93 = vld [vmem:[#allocation0] sm:$0x3]
    %94 = vrot.lane.b32.xlu0 %v93, 113
    %v95 = vpop.permute.xlu0 %94
    %vm96 = vcmask 7168
    %s97 = scalar_lea.vmem %s1, 15
    %98 = vst.msk [vmem:[%s97] ss:$16 sm:$0x3] %vm96, %v95

// kernel: circuit_builder_forward.1
$region0: #{circuit_builder_forward.1}
  #allocation0 [shape = 'u32[]', space=smem, size = 0x4, offset = 0x4, fixed_abs, tag = 'smem constant byte address 0x4 - core index']
  #allocation1 [shape = 'u32[144,128]{1,0:T(1,128)}', space=vmem, size = 0x12000, scoped, tag = 'internal scratch']
  %s0 = inlined_call_operand.smem [shape: u32[45], index: -1, kind: input, shape index: {}]
  %s1 = sld [smem:[%s0]]
  %s2 = scalar_lea.smem %s0, 1
  %s3 = sld [smem:[%s2]]
  %s4 = scalar_lea.smem %s0, 2
  %s5 = sld [smem:[%s4]]
  %s6 = scalar_lea.smem %s0, 3
  %s7 = sld [smem:[%s6]]
  %s8 = scalar_lea.smem %s0, 4
  %s9 = sld [smem:[%s8]]
  %s10 = scalar_lea.smem %s0, 5
  %s11 = sld [smem:[%s10]]
  %s12 = scalar_lea.smem %s0, 6
  %s13 = sld [smem:[%s12]]
  %s14 = scalar_lea.smem %s0, 7
  %s15 = sld [smem:[%s14]]
  %s16 = scalar_lea.smem %s0, 8
  %s17 = sld [smem:[%s16]]
  %s18 = scalar_lea.smem %s0, 9
  %s19 = sld [smem:[%s18]]
  %s20 = scalar_lea.smem %s0, 10
  %s21 = sld [smem:[%s20]]
  %s22 = scalar_lea.smem %s0, 11
  %s23 = sld [smem:[%s22]]
  %s24 = scalar_lea.smem %s0, 12
  %s25 = sld [smem:[%s24]]
  %s26 = scalar_lea.smem %s0, 13
  %s27 = sld [smem:[%s26]]
  %s28 = scalar_lea.smem %s0, 14
  %s29 = sld [smem:[%s28]]
  %s30 = scalar_lea.smem %s0, 15
  %s31 = sld [smem:[%s30]]
  %s32 = scalar_lea.smem %s0, 16
  %s33 = sld [smem:[%s32]]
  %s34 = scalar_lea.smem %s0, 17
  %s35 = sld [smem:[%s34]]
  %s36 = scalar_lea.smem %s0, 18
  %s37 = sld [smem:[%s36]]
  %s38 = scalar_lea.smem %s0, 19
  %s39 = sld [smem:[%s38]]
  %s40 = scalar_lea.smem %s0, 20
  %s41 = sld [smem:[%s40]]
  %s42 = scalar_lea.smem %s0, 21
  %s43 = sld [smem:[%s42]]
  %s44 = scalar_lea.smem %s0, 22
  %s45 = sld [smem:[%s44]]
  %s46 = scalar_lea.smem %s0, 23
  %s47 = sld [smem:[%s46]]
  %s48 = scalar_lea.smem %s0, 24
  %s49 = sld [smem:[%s48]]
  %s50 = scalar_lea.smem %s0, 25
  %s51 = sld [smem:[%s50]]
  %s52 = scalar_lea.smem %s0, 26
  %s53 = sld [smem:[%s52]]
  %s54 = scalar_lea.smem %s0, 27
  %s55 = sld [smem:[%s54]]
  %s56 = scalar_lea.smem %s0, 28
  %s57 = sld [smem:[%s56]]
  %s58 = scalar_lea.smem %s0, 29
  %s59 = sld [smem:[%s58]]
  %s60 = scalar_lea.smem %s0, 30
  %s61 = sld [smem:[%s60]]
  %s62 = scalar_lea.smem %s0, 31
  %s63 = sld [smem:[%s62]]
  %s64 = scalar_lea.smem %s0, 32
  %s65 = sld [smem:[%s64]]
  %s66 = scalar_lea.smem %s0, 33
  %s67 = sld [smem:[%s66]]
  %s68 = scalar_lea.smem %s0, 34
  %s69 = sld [smem:[%s68]]
  %s70 = scalar_lea.smem %s0, 35
  %s71 = sld [smem:[%s70]]
  %s72 = scalar_lea.smem %s0, 36
  %s73 = sld [smem:[%s72]]
  %s74 = scalar_lea.smem %s0, 37
  %s75 = sld [smem:[%s74]]
  %s76 = scalar_lea.smem %s0, 38
  %s77 = sld [smem:[%s76]]
  %s78 = scalar_lea.smem %s0, 39
  %s79 = sld [smem:[%s78]]
  %s80 = scalar_lea.smem %s0, 40
  %s81 = sld [smem:[%s80]]
  %s82 = scalar_lea.smem %s0, 41
  %s83 = sld [smem:[%s82]]
  %s84 = scalar_lea.smem %s0, 42
  %s85 = sld [smem:[%s84]]
  %s86 = scalar_lea.smem %s0, 43
  %s87 = sld [smem:[%s86]]
  %s88 = scalar_lea.smem %s0, 44
  %s89 = sld [smem:[%s88]]
  %s90 = sld [smem:[#allocation0]]
  $region186: #{circuit_builder_forward.1} parent=0
    _
  %s92 = ssub.s32 1, %s90
  %s93 = scalar_select 0, %s92, %s90
  // Predicated region
  $region2: #{circuit_builder_forward.1} parent=0 // pred_check
    _
  $region3: #{circuit_builder_forward.1} parent=0 // pred_check_branch
    %95 = sbr.rel (0) target = $region5
  $region4: #{circuit_builder_forward.1} parent=0 // pred_region
    _
  $region5: #{circuit_builder_forward.1} parent=0 // pred_fallthru
    _
  // Predicated region
  $region6: #{circuit_builder_forward.1} parent=0 // pred_check
    _
  $region7: #{circuit_builder_forward.1} parent=0 // pred_check_branch
    %97 = sbr.rel (0) target = $region9
  $region8: #{circuit_builder_forward.1} parent=0 // pred_region
    _
  $region9: #{circuit_builder_forward.1} parent=0 // pred_fallthru
    _
  // Predicated region
  $region10: #{circuit_builder_forward.1} parent=0 // pred_check
    _
  $region11: #{circuit_builder_forward.1} parent=0 // pred_check_branch
    %99 = sbr.rel (0) target = $region13
  $region12: #{circuit_builder_forward.1} parent=0 // pred_region
    _
  $region13: #{circuit_builder_forward.1} parent=0 // pred_fallthru
    _
  // Predicated region
  $region14: #{circuit_builder_forward.1} parent=0 // pred_check
    _
  $region15: #{circuit_builder_forward.1} parent=0 // pred_check_branch
    %101 = sbr.rel (0) target = $region17
  $region16: #{circuit_builder_forward.1} parent=0 // pred_region
    _
  $region17: #{circuit_builder_forward.1} parent=0 // pred_fallthru
    _
  // Predicated region
  $region18: #{circuit_builder_forward.1} parent=0 // pred_check
    _
  $region19: #{circuit_builder_forward.1} parent=0 // pred_check_branch
    %103 = sbr.rel (0) target = $region21
  $region20: #{circuit_builder_forward.1} parent=0 // pred_region
    _
  $region21: #{circuit_builder_forward.1} parent=0 // pred_fallthru
    _
  // Predicated region
  $region22: #{circuit_builder_forward.1} parent=0 // pred_check
    _
  $region23: #{circuit_builder_forward.1} parent=0 // pred_check_branch
    %105 = sbr.rel (0) target = $region25
  $region24: #{circuit_builder_forward.1} parent=0 // pred_region
    _
  $region25: #{circuit_builder_forward.1} parent=0 // pred_fallthru
    _
  // Predicated region
  $region26: #{circuit_builder_forward.1} parent=0 // pred_check
    _
  $region27: #{circuit_builder_forward.1} parent=0 // pred_check_branch
    %107 = sbr.rel (0) target = $region29
  $region28: #{circuit_builder_forward.1} parent=0 // pred_region
    _
  $region29: #{circuit_builder_forward.1} parent=0 // pred_fallthru
    _
  // Predicated region
  $region30: #{circuit_builder_forward.1} parent=0 // pred_check
    _
  $region31: #{circuit_builder_forward.1} parent=0 // pred_check_branch
    %109 = sbr.rel (0) target = $region33
  $region32: #{circuit_builder_forward.1} parent=0 // pred_region
    _
  $region33: #{circuit_builder_forward.1} parent=0 // pred_fallthru
    _
  // Predicated region
  $region34: #{circuit_builder_forward.1} parent=0 // pred_check
    _
  $region35: #{circuit_builder_forward.1} parent=0 // pred_check_branch
    %111 = sbr.rel (0) target = $region37
  $region36: #{circuit_builder_forward.1} parent=0 // pred_region
    _
  $region37: #{circuit_builder_forward.1} parent=0 // pred_fallthru
    _
  // Predicated region
  $region38: #{circuit_builder_forward.1} parent=0 // pred_check
    _
  $region39: #{circuit_builder_forward.1} parent=0 // pred_check_branch
    %113 = sbr.rel (0) target = $region41
  $region40: #{circuit_builder_forward.1} parent=0 // pred_region
    _
  $region41: #{circuit_builder_forward.1} parent=0 // pred_fallthru
    _
  // Predicated region
  $region42: #{circuit_builder_forward.1} parent=0 // pred_check
    _
  $region43: #{circuit_builder_forward.1} parent=0 // pred_check_branch
    %115 = sbr.rel (0) target = $region45
  $region44: #{circuit_builder_forward.1} parent=0 // pred_region
    _
  $region45: #{circuit_builder_forward.1} parent=0 // pred_fallthru
    _
  // Predicated region
  $region46: #{circuit_builder_forward.1} parent=0 // pred_check
    _
  $region47: #{circuit_builder_forward.1} parent=0 // pred_check_branch
    %117 = sbr.rel (0) target = $region49
  $region48: #{circuit_builder_forward.1} parent=0 // pred_region
    _
  $region49: #{circuit_builder_forward.1} parent=0 // pred_fallthru
    _
  // Predicated region
  $region50: #{circuit_builder_forward.1} parent=0 // pred_check
    _
  $region51: #{circuit_builder_forward.1} parent=0 // pred_check_branch
    %119 = sbr.rel (0) target = $region53
  $region52: #{circuit_builder_forward.1} parent=0 // pred_region
    _
  $region53: #{circuit_builder_forward.1} parent=0 // pred_fallthru
    _
  // Predicated region
  $region54: #{circuit_builder_forward.1} parent=0 // pred_check
    _
  $region55: #{circuit_builder_forward.1} parent=0 // pred_check_branch
    %121 = sbr.rel (0) target = $region57
  $region56: #{circuit_builder_forward.1} parent=0 // pred_region
    _
  $region57: #{circuit_builder_forward.1} parent=0 // pred_fallthru
    _
  // Predicated region
  $region58: #{circuit_builder_forward.1} parent=0 // pred_check
    _
  $region59: #{circuit_builder_forward.1} parent=0 // pred_check_branch
    %123 = sbr.rel (0) target = $region61
  $region60: #{circuit_builder_forward.1} parent=0 // pred_region
    _
  $region61: #{circuit_builder_forward.1} parent=0 // pred_fallthru
    _
  // Predicated region
  $region62: #{circuit_builder_forward.1} parent=0 // pred_check
    _
  $region63: #{circuit_builder_forward.1} parent=0 // pred_check_branch
    %125 = sbr.rel (0) target = $region65
  $region64: #{circuit_builder_forward.1} parent=0 // pred_region
    _
  $region65: #{circuit_builder_forward.1} parent=0 // pred_fallthru
    _
  // Predicated region
  $region66: #{circuit_builder_forward.1} parent=0 // pred_check
    _
  $region67: #{circuit_builder_forward.1} parent=0 // pred_check_branch
    %127 = sbr.rel (0) target = $region69
  $region68: #{circuit_builder_forward.1} parent=0 // pred_region
    _
  $region69: #{circuit_builder_forward.1} parent=0 // pred_fallthru
    _
  // Predicated region
  $region70: #{circuit_builder_forward.1} parent=0 // pred_check
    _
  $region71: #{circuit_builder_forward.1} parent=0 // pred_check_branch
    %129 = sbr.rel (0) target = $region73
  $region72: #{circuit_builder_forward.1} parent=0 // pred_region
    _
  $region73: #{circuit_builder_forward.1} parent=0 // pred_fallthru
    _
  // Predicated region
  $region74: #{circuit_builder_forward.1} parent=0 // pred_check
    _
  $region75: #{circuit_builder_forward.1} parent=0 // pred_check_branch
    %131 = sbr.rel (0) target = $region77
  $region76: #{circuit_builder_forward.1} parent=0 // pred_region
    _
  $region77: #{circuit_builder_forward.1} parent=0 // pred_fallthru
    _
  // Predicated region
  $region78: #{circuit_builder_forward.1} parent=0 // pred_check
    _
  $region79: #{circuit_builder_forward.1} parent=0 // pred_check_branch
    %133 = sbr.rel (0) target = $region81
  $region80: #{circuit_builder_forward.1} parent=0 // pred_region
    _
  $region81: #{circuit_builder_forward.1} parent=0 // pred_fallthru
    _
  // Predicated region
  $region82: #{circuit_builder_forward.1} parent=0 // pred_check
    _
  $region83: #{circuit_builder_forward.1} parent=0 // pred_check_branch
    %135 = sbr.rel (0) target = $region85
  $region84: #{circuit_builder_forward.1} parent=0 // pred_region
    _
  $region85: #{circuit_builder_forward.1} parent=0 // pred_fallthru
    _
  // Predicated region
  $region86: #{circuit_builder_forward.1} parent=0 // pred_check
    _
  $region87: #{circuit_builder_forward.1} parent=0 // pred_check_branch
    %137 = sbr.rel (0) target = $region89
  $region88: #{circuit_builder_forward.1} parent=0 // pred_region
    _
  $region89: #{circuit_builder_forward.1} parent=0 // pred_fallthru
    _
  // Predicated region
  $region90: #{circuit_builder_forward.1} parent=0 // pred_check
    _
  $region91: #{circuit_builder_forward.1} parent=0 // pred_check_branch
    %139 = sbr.rel (0) target = $region93
  $region92: #{circuit_builder_forward.1} parent=0 // pred_region
    _
  $region93: #{circuit_builder_forward.1} parent=0 // pred_fallthru
    _
  // Predicated region
  $region94: #{circuit_builder_forward.1} parent=0 // pred_check
    _
  $region95: #{circuit_builder_forward.1} parent=0 // pred_check_branch
    %141 = sbr.rel (0) target = $region97
  $region96: #{circuit_builder_forward.1} parent=0 // pred_region
    _
  $region97: #{circuit_builder_forward.1} parent=0 // pred_fallthru
    _
  // Predicated region
  $region98: #{circuit_builder_forward.1} parent=0 // pred_check
    _
  $region99: #{circuit_builder_forward.1} parent=0 // pred_check_branch
    %143 = sbr.rel (0) target = $region101
  $region100: #{circuit_builder_forward.1} parent=0 // pred_region
    _
  $region101: #{circuit_builder_forward.1} parent=0 // pred_fallthru
    _
  // Predicated region
  $region102: #{circuit_builder_forward.1} parent=0 // pred_check
    _
  $region103: #{circuit_builder_forward.1} parent=0 // pred_check_branch
    %145 = sbr.rel (0) target = $region105
  $region104: #{circuit_builder_forward.1} parent=0 // pred_region
    _
  $region105: #{circuit_builder_forward.1} parent=0 // pred_fallthru
    _
  // Predicated region
  $region106: #{circuit_builder_forward.1} parent=0 // pred_check
    _
  $region107: #{circuit_builder_forward.1} parent=0 // pred_check_branch
    %147 = sbr.rel (0) target = $region109
  $region108: #{circuit_builder_forward.1} parent=0 // pred_region
    _
  $region109: #{circuit_builder_forward.1} parent=0 // pred_fallthru
    _
  // Predicated region
  $region110: #{circuit_builder_forward.1} parent=0 // pred_check
    _
  $region111: #{circuit_builder_forward.1} parent=0 // pred_check_branch
    %149 = sbr.rel (0) target = $region113
  $region112: #{circuit_builder_forward.1} parent=0 // pred_region
    _
  $region113: #{circuit_builder_forward.1} parent=0 // pred_fallthru
    _
  // Predicated region
  $region114: #{circuit_builder_forward.1} parent=0 // pred_check
    _
  $region115: #{circuit_builder_forward.1} parent=0 // pred_check_branch
    %151 = sbr.rel (0) target = $region117
  $region116: #{circuit_builder_forward.1} parent=0 // pred_region
    _
  $region117: #{circuit_builder_forward.1} parent=0 // pred_fallthru
    _
  // Predicated region
  $region118: #{circuit_builder_forward.1} parent=0 // pred_check
    _
  $region119: #{circuit_builder_forward.1} parent=0 // pred_check_branch
    %153 = sbr.rel (0) target = $region121
  $region120: #{circuit_builder_forward.1} parent=0 // pred_region
    _
  $region121: #{circuit_builder_forward.1} parent=0 // pred_fallthru
    _
  // Predicated region
  $region122: #{circuit_builder_forward.1} parent=0 // pred_check
    _
  $region123: #{circuit_builder_forward.1} parent=0 // pred_check_branch
    %155 = sbr.rel (0) target = $region125
  $region124: #{circuit_builder_forward.1} parent=0 // pred_region
    _
  $region125: #{circuit_builder_forward.1} parent=0 // pred_fallthru
    _
  // Predicated region
  $region126: #{circuit_builder_forward.1} parent=0 // pred_check
    _
  $region127: #{circuit_builder_forward.1} parent=0 // pred_check_branch
    %157 = sbr.rel (0) target = $region129
  $region128: #{circuit_builder_forward.1} parent=0 // pred_region
    _
  $region129: #{circuit_builder_forward.1} parent=0 // pred_fallthru
    _
  // Predicated region
  $region130: #{circuit_builder_forward.1} parent=0 // pred_check
    _
  $region131: #{circuit_builder_forward.1} parent=0 // pred_check_branch
    %159 = sbr.rel (0) target = $region133
  $region132: #{circuit_builder_forward.1} parent=0 // pred_region
    _
  $region133: #{circuit_builder_forward.1} parent=0 // pred_fallthru
    _
  // Predicated region
  $region134: #{circuit_builder_forward.1} parent=0 // pred_check
    _
  $region135: #{circuit_builder_forward.1} parent=0 // pred_check_branch
    %161 = sbr.rel (0) target = $region137
  $region136: #{circuit_builder_forward.1} parent=0 // pred_region
    _
  $region137: #{circuit_builder_forward.1} parent=0 // pred_fallthru
    _
  // Predicated region
  $region138: #{circuit_builder_forward.1} parent=0 // pred_check
    _
  $region139: #{circuit_builder_forward.1} parent=0 // pred_check_branch
    %163 = sbr.rel (0) target = $region141
  $region140: #{circuit_builder_forward.1} parent=0 // pred_region
    _
  $region141: #{circuit_builder_forward.1} parent=0 // pred_fallthru
    _
  // Predicated region
  $region142: #{circuit_builder_forward.1} parent=0 // pred_check
    _
  $region143: #{circuit_builder_forward.1} parent=0 // pred_check_branch
    %165 = sbr.rel (0) target = $region145
  $region144: #{circuit_builder_forward.1} parent=0 // pred_region
    _
  $region145: #{circuit_builder_forward.1} parent=0 // pred_fallthru
    _
  // Predicated region
  $region146: #{circuit_builder_forward.1} parent=0 // pred_check
    _
  $region147: #{circuit_builder_forward.1} parent=0 // pred_check_branch
    %167 = sbr.rel (0) target = $region149
  $region148: #{circuit_builder_forward.1} parent=0 // pred_region
    _
  $region149: #{circuit_builder_forward.1} parent=0 // pred_fallthru
    _
  // Predicated region
  $region150: #{circuit_builder_forward.1} parent=0 // pred_check
    _
  $region151: #{circuit_builder_forward.1} parent=0 // pred_check_branch
    %169 = sbr.rel (0) target = $region153
  $region152: #{circuit_builder_forward.1} parent=0 // pred_region
    _
  $region153: #{circuit_builder_forward.1} parent=0 // pred_fallthru
    _
  // Predicated region
  $region154: #{circuit_builder_forward.1} parent=0 // pred_check
    _
  $region155: #{circuit_builder_forward.1} parent=0 // pred_check_branch
    %171 = sbr.rel (0) target = $region157
  $region156: #{circuit_builder_forward.1} parent=0 // pred_region
    _
  $region157: #{circuit_builder_forward.1} parent=0 // pred_fallthru
    _
  // Predicated region
  $region158: #{circuit_builder_forward.1} parent=0 // pred_check
    _
  $region159: #{circuit_builder_forward.1} parent=0 // pred_check_branch
    %173 = sbr.rel (0) target = $region161
  $region160: #{circuit_builder_forward.1} parent=0 // pred_region
    _
  $region161: #{circuit_builder_forward.1} parent=0 // pred_fallthru
    _
  // Predicated region
  $region162: #{circuit_builder_forward.1} parent=0 // pred_check
    _
  $region163: #{circuit_builder_forward.1} parent=0 // pred_check_branch
    %175 = sbr.rel (0) target = $region165
  $region164: #{circuit_builder_forward.1} parent=0 // pred_region
    _
  $region165: #{circuit_builder_forward.1} parent=0 // pred_fallthru
    _
  // Predicated region
  $region166: #{circuit_builder_forward.1} parent=0 // pred_check
    _
  $region167: #{circuit_builder_forward.1} parent=0 // pred_check_branch
    %177 = sbr.rel (0) target = $region169
  $region168: #{circuit_builder_forward.1} parent=0 // pred_region
    _
  $region169: #{circuit_builder_forward.1} parent=0 // pred_fallthru
    _
  // Predicated region
  $region170: #{circuit_builder_forward.1} parent=0 // pred_check
    _
  $region171: #{circuit_builder_forward.1} parent=0 // pred_check_branch
    %179 = sbr.rel (0) target = $region173
  $region172: #{circuit_builder_forward.1} parent=0 // pred_region
    _
  $region173: #{circuit_builder_forward.1} parent=0 // pred_fallthru
    _
  // Predicated region
  $region174: #{circuit_builder_forward.1} parent=0 // pred_check
    _
  $region175: #{circuit_builder_forward.1} parent=0 // pred_check_branch
    %181 = sbr.rel (0) target = $region177
  $region176: #{circuit_builder_forward.1} parent=0 // pred_region
    _
  $region177: #{circuit_builder_forward.1} parent=0 // pred_fallthru
    _
  %v182 = vld [vmem:[%s1] sm:$0xff]
  %v183 = vld [vmem:[%s1 + $0x8] sm:$0xf]
  %v184 = vld [vmem:[%s3] sm:$0xff]
  %v185 = vld [vmem:[%s3 + $0x8] sm:$0xf]
  %v186 = vld [vmem:[%s5] sm:$0xf]
  %vm187 = vcmask 31744
  %v189 = vsel %vm187, %v184, 0
  %v192 = vsel %vm187, %v185, 0
  %vm194 = vcmask 1043456
  %v196 = vsel %vm194, %v186, 0
  %198 = vmatprep.subr.mxu0 0.0
  %199 = vmatpush1.msra.mxu0 %v196
  %200 = vmatprep.subr.mxu0 0.0
  %201 = vmatpush1.msra.mxu0 0.0
  %202 = vmatprep.subr.mxu0 0.0
  %203 = vmatpush1.msra.mxu0 0.0
  %204 = vmatprep.subr.mxu0 0.0
  %205 = vmatpush1.msra.mxu0 0.0
  %206 = vmatprep.subr.mxu0 0.0
  %207 = vmatpush1.msra.mxu0 0.0
  %208 = vmatprep.subr.mxu0 0.0
  %209 = vmatpush1.msra.mxu0 0.0
  %210 = vmatprep.subr.mxu0 0.0
  %211 = vmatpush1.msra.mxu0 0.0
  %212 = vmatprep.subr.mxu0 0.0
  %213 = vmatpush1.msra.mxu0 0.0
  %214 = vmatprep.subr.mxu0 0.0
  %215 = vmatpush1.msra.mxu0 0.0
  %216 = vmatprep.subr.mxu0 0.0
  %217 = vmatpush1.msra.mxu0 0.0
  %218 = vmatprep.subr.mxu0 0.0
  %219 = vmatpush1.msra.mxu0 0.0
  %220 = vmatprep.subr.mxu0 0.0
  %221 = vmatpush1.msra.mxu0 0.0
  %222 = vmatprep.subr.mxu0 0.0
  %223 = vmatpush1.msra.mxu0 0.0
  %224 = vmatprep.subr.mxu0 0.0
  %225 = vmatpush1.msra.mxu0 0.0
  %226 = vmatprep.subr.mxu0 0.0
  %227 = vmatpush1.msra.mxu0 0.0
  %228 = vmatprep.subr.mxu0 0.0
  %229 = vmatpush1.msra.mxu0 0.0
  %230 = vmatprep.subr.mxu0 0.0
  %231 = vmatpush1.msra.mxu0 0.0
  %232 = vmatprep.subr.mxu0 0.0
  %233 = vmatpush1.msra.mxu0 0.0
  %234 = vmatprep.subr.mxu0 0.0
  %235 = vmatpush1.msra.mxu0 0.0
  %236 = vmatprep.subr.mxu0 0.0
  %237 = vmatpush1.msra.mxu0 0.0
  %238 = vmatprep.subr.mxu0 0.0
  %239 = vmatpush1.msra.mxu0 0.0
  %240 = vmatprep.subr.mxu0 0.0
  %241 = vmatpush1.msra.mxu0 0.0
  %242 = vmatprep.subr.mxu0 0.0
  %243 = vmatpush1.msra.mxu0 0.0
  %244 = vmatprep.subr.mxu0 0.0
  %245 = vmatpush1.msra.mxu0 0.0
  %246 = vmatprep.subr.mxu0 0.0
  %247 = vmatpush1.msra.mxu0 0.0
  %248 = vmatprep.subr.mxu0 0.0
  %249 = vmatpush1.msra.mxu0 0.0
  %250 = vmatprep.subr.mxu0 0.0
  %251 = vmatpush1.msra.mxu0 0.0
  %252 = vmatprep.subr.mxu0 0.0
  %253 = vmatpush1.msra.mxu0 0.0
  %254 = vmatprep.subr.mxu0 0.0
  %255 = vmatpush1.msra.mxu0 0.0
  %256 = vmatprep.subr.mxu0 0.0
  %257 = vmatpush1.msra.mxu0 0.0
  %258 = vmatprep.subr.mxu0 0.0
  %259 = vmatpush1.msra.mxu0 0.0
  %260 = vmatprep.subr.mxu0 0.0
  %261 = vmatpush1.msra.mxu0 0.0
  %262 = vmatprep.mubr.f32.mxu0 0.0
  %263 = vmatmul.mubr.f32.gmra.mrb[0].mxu0 %v189
  %v264 = vpop.f32.mrb[0].mxu0
  %v265 = vadd.f32 0.0, %v264
  %v266 = vpop.f32.mrb[0].mxu0
  %267 = vmatprep.mubr.f32.mxu0 0.0
  %268 = vmatmul.mubr.f32.gmra.mrb[0].mxu0 %v192
  %v269 = vpop.f32.mrb[0].mxu0
  %v270 = vadd.f32 0.0, %v269
  %v271 = vpop.f32.mrb[0].mxu0
  %272 = vdwg.mxu0
  %v273 = vld [vmem:[%s7] sm:$0x1]
  %v275 = vlaneseq
  %v276 = vshrl.u32 %v275, 7
  %v277 = vsub.s32 0, %v276
  %v278 = vrot.slane %v273, %v277
  %vm280 = vcmask 97280
  %v282 = vsel %vm280, %v182, 0
  %v285 = vsel %vm280, %v183, 0
  %v288 = vsel %vm194, %v270, 0
  %290 = vmatprep.subr.mxu0 0.0
  %291 = vmatpush1.msra.mxu0 %v265
  %292 = vmatprep.subr.mxu0 0.0
  %293 = vmatpush1.msra.mxu0 %v288
  %294 = vmatprep.subr.mxu0 0.0
  %295 = vmatpush1.msra.mxu0 0.0
  %296 = vmatprep.subr.mxu0 0.0
  %297 = vmatpush1.msra.mxu0 0.0
  %298 = vmatprep.subr.mxu0 0.0
  %299 = vmatpush1.msra.mxu0 0.0
  %300 = vmatprep.subr.mxu0 0.0
  %301 = vmatpush1.msra.mxu0 0.0
  %302 = vmatprep.subr.mxu0 0.0
  %303 = vmatpush1.msra.mxu0 0.0
  %304 = vmatprep.subr.mxu0 0.0
  %305 = vmatpush1.msra.mxu0 0.0
  %306 = vmatprep.subr.mxu0 0.0
  %307 = vmatpush1.msra.mxu0 0.0
  %308 = vmatprep.subr.mxu0 0.0
  %309 = vmatpush1.msra.mxu0 0.0
  %310 = vmatprep.subr.mxu0 0.0
  %311 = vmatpush1.msra.mxu0 0.0
  %312 = vmatprep.subr.mxu0 0.0
  %313 = vmatpush1.msra.mxu0 0.0
  %314 = vmatprep.subr.mxu0 0.0
  %315 = vmatpush1.msra.mxu0 0.0
  %316 = vmatprep.subr.mxu0 0.0
  %317 = vmatpush1.msra.mxu0 0.0
  %318 = vmatprep.subr.mxu0 0.0
  %319 = vmatpush1.msra.mxu0 0.0
  %320 = vmatprep.subr.mxu0 0.0
  %321 = vmatpush1.msra.mxu0 0.0
  %322 = vmatprep.subr.mxu0 0.0
  %323 = vmatpush1.msra.mxu0 0.0
  %324 = vmatprep.subr.mxu0 0.0
  %325 = vmatpush1.msra.mxu0 0.0
  %326 = vmatprep.subr.mxu0 0.0
  %327 = vmatpush1.msra.mxu0 0.0
  %328 = vmatprep.subr.mxu0 0.0
  %329 = vmatpush1.msra.mxu0 0.0
  %330 = vmatprep.subr.mxu0 0.0
  %331 = vmatpush1.msra.mxu0 0.0
  %332 = vmatprep.subr.mxu0 0.0
  %333 = vmatpush1.msra.mxu0 0.0
  %334 = vmatprep.subr.mxu0 0.0
  %335 = vmatpush1.msra.mxu0 0.0
  %336 = vmatprep.subr.mxu0 0.0
  %337 = vmatpush1.msra.mxu0 0.0
  %338 = vmatprep.subr.mxu0 0.0
  %339 = vmatpush1.msra.mxu0 0.0
  %340 = vmatprep.subr.mxu0 0.0
  %341 = vmatpush1.msra.mxu0 0.0
  %342 = vmatprep.subr.mxu0 0.0
  %343 = vmatpush1.msra.mxu0 0.0
  %344 = vmatprep.subr.mxu0 0.0
  %345 = vmatpush1.msra.mxu0 0.0
  %346 = vmatprep.subr.mxu0 0.0
  %347 = vmatpush1.msra.mxu0 0.0
  %348 = vmatprep.subr.mxu0 0.0
  %349 = vmatpush1.msra.mxu0 0.0
  %350 = vmatprep.subr.mxu0 0.0
  %351 = vmatpush1.msra.mxu0 0.0
  %352 = vmatprep.subr.mxu0 0.0
  %353 = vmatpush1.msra.mxu0 0.0
  %354 = vmatprep.mubr.f32.mxu0 0.0
  %355 = vmatmul.mubr.f32.gmra.mrb[0].mxu0 %v282
  %v356 = vpop.f32.mrb[0].mxu0
  %v357 = vadd.f32 %v278, %v356
  %v358 = vpop.f32.mrb[0].mxu0
  %359 = vmatprep.mubr.f32.mxu0 0.0
  %360 = vmatmul.mubr.f32.gmra.mrb[0].mxu0 %v285
  %v361 = vpop.f32.mrb[0].mxu0
  %v362 = vadd.f32 %v278, %v361
  %v363 = vpop.f32.mrb[0].mxu0
  %364 = vdwg.mxu0
  %v365 = vmax.f32 %v357, 0.0
  %v366 = vmax.f32 %v362, 0.0
  %v367 = vld [vmem:[%s9] sm:$0xff]
  %v368 = vld [vmem:[%s9 + $0x8] sm:$0xff]
  %v369 = vld [vmem:[%s9 + $0x10] sm:$0xff]
  %v370 = vld [vmem:[%s9 + $0x18] sm:$0xff]
  %vm371 = vcmask 261120
  %v373 = vsel %vm371, %v365, 0
  %v376 = vsel %vm371, %v366, 0
  %378 = vmatprep.subr.mxu0 0.0
  %379 = vmatpush1.msra.mxu0 %v367
  %380 = vmatprep.subr.mxu0 0.0
  %381 = vmatpush1.msra.mxu0 %v368
  %382 = vmatprep.subr.mxu0 0.0
  %383 = vmatpush1.msra.mxu0 %v369
  %384 = vmatprep.subr.mxu0 0.0
  %385 = vmatpush1.msra.mxu0 %v370
  %386 = vmatprep.subr.mxu0 0.0
  %387 = vmatpush1.msra.mxu0 0.0
  %388 = vmatprep.subr.mxu0 0.0
  %389 = vmatpush1.msra.mxu0 0.0
  %390 = vmatprep.subr.mxu0 0.0
  %391 = vmatpush1.msra.mxu0 0.0
  %392 = vmatprep.subr.mxu0 0.0
  %393 = vmatpush1.msra.mxu0 0.0
  %394 = vmatprep.subr.mxu0 0.0
  %395 = vmatpush1.msra.mxu0 0.0
  %396 = vmatprep.subr.mxu0 0.0
  %397 = vmatpush1.msra.mxu0 0.0
  %398 = vmatprep.subr.mxu0 0.0
  %399 = vmatpush1.msra.mxu0 0.0
  %400 = vmatprep.subr.mxu0 0.0
  %401 = vmatpush1.msra.mxu0 0.0
  %402 = vmatprep.subr.mxu0 0.0
  %403 = vmatpush1.msra.mxu0 0.0
  %404 = vmatprep.subr.mxu0 0.0
  %405 = vmatpush1.msra.mxu0 0.0
  %406 = vmatprep.subr.mxu0 0.0
  %407 = vmatpush1.msra.mxu0 0.0
  %408 = vmatprep.subr.mxu0 0.0
  %409 = vmatpush1.msra.mxu0 0.0
  %410 = vmatprep.subr.mxu0 0.0
  %411 = vmatpush1.msra.mxu0 0.0
  %412 = vmatprep.subr.mxu0 0.0
  %413 = vmatpush1.msra.mxu0 0.0
  %414 = vmatprep.subr.mxu0 0.0
  %415 = vmatpush1.msra.mxu0 0.0
  %416 = vmatprep.subr.mxu0 0.0
  %417 = vmatpush1.msra.mxu0 0.0
  %418 = vmatprep.subr.mxu0 0.0
  %419 = vmatpush1.msra.mxu0 0.0
  %420 = vmatprep.subr.mxu0 0.0
  %421 = vmatpush1.msra.mxu0 0.0
  %422 = vmatprep.subr.mxu0 0.0
  %423 = vmatpush1.msra.mxu0 0.0
  %424 = vmatprep.subr.mxu0 0.0
  %425 = vmatpush1.msra.mxu0 0.0
  %426 = vmatprep.subr.mxu0 0.0
  %427 = vmatpush1.msra.mxu0 0.0
  %428 = vmatprep.subr.mxu0 0.0
  %429 = vmatpush1.msra.mxu0 0.0
  %430 = vmatprep.subr.mxu0 0.0
  %431 = vmatpush1.msra.mxu0 0.0
  %432 = vmatprep.subr.mxu0 0.0
  %433 = vmatpush1.msra.mxu0 0.0
  %434 = vmatprep.subr.mxu0 0.0
  %435 = vmatpush1.msra.mxu0 0.0
  %436 = vmatprep.subr.mxu0 0.0
  %437 = vmatpush1.msra.mxu0 0.0
  %438 = vmatprep.subr.mxu0 0.0
  %439 = vmatpush1.msra.mxu0 0.0
  %440 = vmatprep.subr.mxu0 0.0
  %441 = vmatpush1.msra.mxu0 0.0
  %442 = vmatprep.mubr.f32.mxu0 0.0
  %443 = vmatmul.mubr.f32.gmra.mrb[0].mxu0 %v373
  %v444 = vpop.f32.mrb[0].mxu0
  %v445 = vadd.f32 0.0, %v444
  %v446 = vpop.f32.mrb[0].mxu0
  %447 = vmatprep.mubr.f32.mxu0 0.0
  %448 = vmatmul.mubr.f32.gmra.mrb[0].mxu0 %v376
  %v449 = vpop.f32.mrb[0].mxu0
  %v450 = vadd.f32 0.0, %v449
  %v451 = vpop.f32.mrb[0].mxu0
  %452 = vdwg.mxu0
  %v453 = vld [vmem:[%s11] sm:$0x1]
  %v455 = vlaneseq
  %v456 = vshrl.u32 %v455, 7
  %v457 = vsub.s32 0, %v456
  %v458 = vrot.slane %v453, %v457
  %v461 = vsel %vm194, %v450, 0
  %463 = vmatprep.subr.mxu0 0.0
  %464 = vmatpush1.msra.mxu0 %v445
  %465 = vmatprep.subr.mxu0 0.0
  %466 = vmatpush1.msra.mxu0 %v461
  %467 = vmatprep.subr.mxu0 0.0
  %468 = vmatpush1.msra.mxu0 0.0
  %469 = vmatprep.subr.mxu0 0.0
  %470 = vmatpush1.msra.mxu0 0.0
  %471 = vmatprep.subr.mxu0 0.0
  %472 = vmatpush1.msra.mxu0 0.0
  %473 = vmatprep.subr.mxu0 0.0
  %474 = vmatpush1.msra.mxu0 0.0
  %475 = vmatprep.subr.mxu0 0.0
  %476 = vmatpush1.msra.mxu0 0.0
  %477 = vmatprep.subr.mxu0 0.0
  %478 = vmatpush1.msra.mxu0 0.0
  %479 = vmatprep.subr.mxu0 0.0
  %480 = vmatpush1.msra.mxu0 0.0
  %481 = vmatprep.subr.mxu0 0.0
  %482 = vmatpush1.msra.mxu0 0.0
  %483 = vmatprep.subr.mxu0 0.0
  %484 = vmatpush1.msra.mxu0 0.0
  %485 = vmatprep.subr.mxu0 0.0
  %486 = vmatpush1.msra.mxu0 0.0
  %487 = vmatprep.subr.mxu0 0.0
  %488 = vmatpush1.msra.mxu0 0.0
  %489 = vmatprep.subr.mxu0 0.0
  %490 = vmatpush1.msra.mxu0 0.0
  %491 = vmatprep.subr.mxu0 0.0
  %492 = vmatpush1.msra.mxu0 0.0
  %493 = vmatprep.subr.mxu0 0.0
  %494 = vmatpush1.msra.mxu0 0.0
  %495 = vmatprep.subr.mxu0 0.0
  %496 = vmatpush1.msra.mxu0 0.0
  %497 = vmatprep.subr.mxu0 0.0
  %498 = vmatpush1.msra.mxu0 0.0
  %499 = vmatprep.subr.mxu0 0.0
  %500 = vmatpush1.msra.mxu0 0.0
  %501 = vmatprep.subr.mxu0 0.0
  %502 = vmatpush1.msra.mxu0 0.0
  %503 = vmatprep.subr.mxu0 0.0
  %504 = vmatpush1.msra.mxu0 0.0
  %505 = vmatprep.subr.mxu0 0.0
  %506 = vmatpush1.msra.mxu0 0.0
  %507 = vmatprep.subr.mxu0 0.0
  %508 = vmatpush1.msra.mxu0 0.0
  %509 = vmatprep.subr.mxu0 0.0
  %510 = vmatpush1.msra.mxu0 0.0
  %511 = vmatprep.subr.mxu0 0.0
  %512 = vmatpush1.msra.mxu0 0.0
  %513 = vmatprep.subr.mxu0 0.0
  %514 = vmatpush1.msra.mxu0 0.0
  %515 = vmatprep.subr.mxu0 0.0
  %516 = vmatpush1.msra.mxu0 0.0
  %517 = vmatprep.subr.mxu0 0.0
  %518 = vmatpush1.msra.mxu0 0.0
  %519 = vmatprep.subr.mxu0 0.0
  %520 = vmatpush1.msra.mxu0 0.0
  %521 = vmatprep.subr.mxu0 0.0
  %522 = vmatpush1.msra.mxu0 0.0
  %523 = vmatprep.subr.mxu0 0.0
  %524 = vmatpush1.msra.mxu0 0.0
  %525 = vmatprep.subr.mxu0 0.0
  %526 = vmatpush1.msra.mxu0 0.0
  %527 = vmatprep.mubr.f32.mxu0 0.0
  %528 = vmatmul.mubr.f32.gmra.mrb[0].mxu0 %v282
  %v529 = vpop.f32.mrb[0].mxu0
  %v530 = vadd.f32 %v458, %v529
  %v531 = vpop.f32.mrb[0].mxu0
  %532 = vmatprep.mubr.f32.mxu0 0.0
  %533 = vmatmul.mubr.f32.gmra.mrb[0].mxu0 %v285
  %v534 = vpop.f32.mrb[0].mxu0
  %v535 = vadd.f32 %v458, %v534
  %v536 = vpop.f32.mrb[0].mxu0
  %537 = vdwg.mxu0
  %v538 = vmax.f32 %v530, 0.0
  %v539 = vmax.f32 %v535, 0.0
  %v540 = vld [vmem:[%s13] sm:$0xff]
  %v541 = vld [vmem:[%s13 + $0x8] sm:$0xff]
  %v542 = vld [vmem:[%s13 + $0x10] sm:$0xff]
  %v543 = vld [vmem:[%s13 + $0x18] sm:$0xff]
  %v545 = vsel %vm371, %v538, 0
  %v548 = vsel %vm371, %v539, 0
  %550 = vmatprep.subr.mxu0 0.0
  %551 = vmatpush1.msra.mxu0 %v540
  %552 = vmatprep.subr.mxu0 0.0
  %553 = vmatpush1.msra.mxu0 %v541
  %554 = vmatprep.subr.mxu0 0.0
  %555 = vmatpush1.msra.mxu0 %v542
  %556 = vmatprep.subr.mxu0 0.0
  %557 = vmatpush1.msra.mxu0 %v543
  %558 = vmatprep.subr.mxu0 0.0
  %559 = vmatpush1.msra.mxu0 0.0
  %560 = vmatprep.subr.mxu0 0.0
  %561 = vmatpush1.msra.mxu0 0.0
  %562 = vmatprep.subr.mxu0 0.0
  %563 = vmatpush1.msra.mxu0 0.0
  %564 = vmatprep.subr.mxu0 0.0
  %565 = vmatpush1.msra.mxu0 0.0
  %566 = vmatprep.subr.mxu0 0.0
  %567 = vmatpush1.msra.mxu0 0.0
  %568 = vmatprep.subr.mxu0 0.0
  %569 = vmatpush1.msra.mxu0 0.0
  %570 = vmatprep.subr.mxu0 0.0
  %571 = vmatpush1.msra.mxu0 0.0
  %572 = vmatprep.subr.mxu0 0.0
  %573 = vmatpush1.msra.mxu0 0.0
  %574 = vmatprep.subr.mxu0 0.0
  %575 = vmatpush1.msra.mxu0 0.0
  %576 = vmatprep.subr.mxu0 0.0
  %577 = vmatpush1.msra.mxu0 0.0
  %578 = vmatprep.subr.mxu0 0.0
  %579 = vmatpush1.msra.mxu0 0.0
  %580 = vmatprep.subr.mxu0 0.0
  %581 = vmatpush1.msra.mxu0 0.0
  %582 = vmatprep.subr.mxu0 0.0
  %583 = vmatpush1.msra.mxu0 0.0
  %584 = vmatprep.subr.mxu0 0.0
  %585 = vmatpush1.msra.mxu0 0.0
  %586 = vmatprep.subr.mxu0 0.0
  %587 = vmatpush1.msra.mxu0 0.0
  %588 = vmatprep.subr.mxu0 0.0
  %589 = vmatpush1.msra.mxu0 0.0
  %590 = vmatprep.subr.mxu0 0.0
  %591 = vmatpush1.msra.mxu0 0.0
  %592 = vmatprep.subr.mxu0 0.0
  %593 = vmatpush1.msra.mxu0 0.0
  %594 = vmatprep.subr.mxu0 0.0
  %595 = vmatpush1.msra.mxu0 0.0
  %596 = vmatprep.subr.mxu0 0.0
  %597 = vmatpush1.msra.mxu0 0.0
  %598 = vmatprep.subr.mxu0 0.0
  %599 = vmatpush1.msra.mxu0 0.0
  %600 = vmatprep.subr.mxu0 0.0
  %601 = vmatpush1.msra.mxu0 0.0
  %602 = vmatprep.subr.mxu0 0.0
  %603 = vmatpush1.msra.mxu0 0.0
  %604 = vmatprep.subr.mxu0 0.0
  %605 = vmatpush1.msra.mxu0 0.0
  %606 = vmatprep.subr.mxu0 0.0
  %607 = vmatpush1.msra.mxu0 0.0
  %608 = vmatprep.subr.mxu0 0.0
  %609 = vmatpush1.msra.mxu0 0.0
  %610 = vmatprep.subr.mxu0 0.0
  %611 = vmatpush1.msra.mxu0 0.0
  %612 = vmatprep.subr.mxu0 0.0
  %613 = vmatpush1.msra.mxu0 0.0
  %614 = vmatprep.mubr.f32.mxu0 0.0
  %615 = vmatmul.mubr.f32.gmra.mrb[0].mxu0 %v545
  %v616 = vpop.f32.mrb[0].mxu0
  %v617 = vadd.f32 0.0, %v616
  %v618 = vpop.f32.mrb[0].mxu0
  %619 = vmatprep.mubr.f32.mxu0 0.0
  %620 = vmatmul.mubr.f32.gmra.mrb[0].mxu0 %v548
  %v621 = vpop.f32.mrb[0].mxu0
  %v622 = vadd.f32 0.0, %v621
  %v623 = vpop.f32.mrb[0].mxu0
  %624 = vdwg.mxu0
  %v625 = vld [vmem:[%s15] sm:$0x1]
  %v627 = vlaneseq
  %v628 = vshrl.u32 %v627, 7
  %v629 = vsub.s32 0, %v628
  %v630 = vrot.slane %v625, %v629
  %v633 = vsel %vm194, %v622, 0
  %635 = vmatprep.subr.mxu0 0.0
  %636 = vmatpush1.msra.mxu0 %v617
  %637 = vmatprep.subr.mxu0 0.0
  %638 = vmatpush1.msra.mxu0 %v633
  %639 = vmatprep.subr.mxu0 0.0
  %640 = vmatpush1.msra.mxu0 0.0
  %641 = vmatprep.subr.mxu0 0.0
  %642 = vmatpush1.msra.mxu0 0.0
  %643 = vmatprep.subr.mxu0 0.0
  %644 = vmatpush1.msra.mxu0 0.0
  %645 = vmatprep.subr.mxu0 0.0
  %646 = vmatpush1.msra.mxu0 0.0
  %647 = vmatprep.subr.mxu0 0.0
  %648 = vmatpush1.msra.mxu0 0.0
  %649 = vmatprep.subr.mxu0 0.0
  %650 = vmatpush1.msra.mxu0 0.0
  %651 = vmatprep.subr.mxu0 0.0
  %652 = vmatpush1.msra.mxu0 0.0
  %653 = vmatprep.subr.mxu0 0.0
  %654 = vmatpush1.msra.mxu0 0.0
  %655 = vmatprep.subr.mxu0 0.0
  %656 = vmatpush1.msra.mxu0 0.0
  %657 = vmatprep.subr.mxu0 0.0
  %658 = vmatpush1.msra.mxu0 0.0
  %659 = vmatprep.subr.mxu0 0.0
  %660 = vmatpush1.msra.mxu0 0.0
  %661 = vmatprep.subr.mxu0 0.0
  %662 = vmatpush1.msra.mxu0 0.0
  %663 = vmatprep.subr.mxu0 0.0
  %664 = vmatpush1.msra.mxu0 0.0
  %665 = vmatprep.subr.mxu0 0.0
  %666 = vmatpush1.msra.mxu0 0.0
  %667 = vmatprep.subr.mxu0 0.0
  %668 = vmatpush1.msra.mxu0 0.0
  %669 = vmatprep.subr.mxu0 0.0
  %670 = vmatpush1.msra.mxu0 0.0
  %671 = vmatprep.subr.mxu0 0.0
  %672 = vmatpush1.msra.mxu0 0.0
  %673 = vmatprep.subr.mxu0 0.0
  %674 = vmatpush1.msra.mxu0 0.0
  %675 = vmatprep.subr.mxu0 0.0
  %676 = vmatpush1.msra.mxu0 0.0
  %677 = vmatprep.subr.mxu0 0.0
  %678 = vmatpush1.msra.mxu0 0.0
  %679 = vmatprep.subr.mxu0 0.0
  %680 = vmatpush1.msra.mxu0 0.0
  %681 = vmatprep.subr.mxu0 0.0
  %682 = vmatpush1.msra.mxu0 0.0
  %683 = vmatprep.subr.mxu0 0.0
  %684 = vmatpush1.msra.mxu0 0.0
  %685 = vmatprep.subr.mxu0 0.0
  %686 = vmatpush1.msra.mxu0 0.0
  %687 = vmatprep.subr.mxu0 0.0
  %688 = vmatpush1.msra.mxu0 0.0
  %689 = vmatprep.subr.mxu0 0.0
  %690 = vmatpush1.msra.mxu0 0.0
  %691 = vmatprep.subr.mxu0 0.0
  %692 = vmatpush1.msra.mxu0 0.0
  %693 = vmatprep.subr.mxu0 0.0
  %694 = vmatpush1.msra.mxu0 0.0
  %695 = vmatprep.subr.mxu0 0.0
  %696 = vmatpush1.msra.mxu0 0.0
  %697 = vmatprep.subr.mxu0 0.0
  %698 = vmatpush1.msra.mxu0 0.0
  %699 = vmatprep.mubr.f32.mxu0 0.0
  %700 = vmatmul.mubr.f32.gmra.mrb[0].mxu0 %v282
  %v701 = vpop.f32.mrb[0].mxu0
  %v702 = vadd.f32 %v630, %v701
  %v703 = vpop.f32.mrb[0].mxu0
  %704 = vmatprep.mubr.f32.mxu0 0.0
  %705 = vmatmul.mubr.f32.gmra.mrb[0].mxu0 %v285
  %v706 = vpop.f32.mrb[0].mxu0
  %v707 = vadd.f32 %v630, %v706
  %v708 = vpop.f32.mrb[0].mxu0
  %709 = vdwg.mxu0
  %v710 = vld [vmem:[%s17] sm:$0x3]
  %v712 = vsel %vm280, %v710, 0
  %v715 = vsel %vm194, %v707, 0
  %717 = vmatprep.subr.mxu0 0.0
  %718 = vmatpush1.msra.mxu0 %v702
  %719 = vmatprep.subr.mxu0 0.0
  %720 = vmatpush1.msra.mxu0 %v715
  %721 = vmatprep.subr.mxu0 0.0
  %722 = vmatpush1.msra.mxu0 0.0
  %723 = vmatprep.subr.mxu0 0.0
  %724 = vmatpush1.msra.mxu0 0.0
  %725 = vmatprep.subr.mxu0 0.0
  %726 = vmatpush1.msra.mxu0 0.0
  %727 = vmatprep.subr.mxu0 0.0
  %728 = vmatpush1.msra.mxu0 0.0
  %729 = vmatprep.subr.mxu0 0.0
  %730 = vmatpush1.msra.mxu0 0.0
  %731 = vmatprep.subr.mxu0 0.0
  %732 = vmatpush1.msra.mxu0 0.0
  %733 = vmatprep.subr.mxu0 0.0
  %734 = vmatpush1.msra.mxu0 0.0
  %735 = vmatprep.subr.mxu0 0.0
  %736 = vmatpush1.msra.mxu0 0.0
  %737 = vmatprep.subr.mxu0 0.0
  %738 = vmatpush1.msra.mxu0 0.0
  %739 = vmatprep.subr.mxu0 0.0
  %740 = vmatpush1.msra.mxu0 0.0
  %741 = vmatprep.subr.mxu0 0.0
  %742 = vmatpush1.msra.mxu0 0.0
  %743 = vmatprep.subr.mxu0 0.0
  %744 = vmatpush1.msra.mxu0 0.0
  %745 = vmatprep.subr.mxu0 0.0
  %746 = vmatpush1.msra.mxu0 0.0
  %747 = vmatprep.subr.mxu0 0.0
  %748 = vmatpush1.msra.mxu0 0.0
  %749 = vmatprep.subr.mxu0 0.0
  %750 = vmatpush1.msra.mxu0 0.0
  %751 = vmatprep.subr.mxu0 0.0
  %752 = vmatpush1.msra.mxu0 0.0
  %753 = vmatprep.subr.mxu0 0.0
  %754 = vmatpush1.msra.mxu0 0.0
  %755 = vmatprep.subr.mxu0 0.0
  %756 = vmatpush1.msra.mxu0 0.0
  %757 = vmatprep.subr.mxu0 0.0
  %758 = vmatpush1.msra.mxu0 0.0
  %759 = vmatprep.subr.mxu0 0.0
  %760 = vmatpush1.msra.mxu0 0.0
  %761 = vmatprep.subr.mxu0 0.0
  %762 = vmatpush1.msra.mxu0 0.0
  %763 = vmatprep.subr.mxu0 0.0
  %764 = vmatpush1.msra.mxu0 0.0
  %765 = vmatprep.subr.mxu0 0.0
  %766 = vmatpush1.msra.mxu0 0.0
  %767 = vmatprep.subr.mxu0 0.0
  %768 = vmatpush1.msra.mxu0 0.0
  %769 = vmatprep.subr.mxu0 0.0
  %770 = vmatpush1.msra.mxu0 0.0
  %771 = vmatprep.subr.mxu0 0.0
  %772 = vmatpush1.msra.mxu0 0.0
  %773 = vmatprep.subr.mxu0 0.0
  %774 = vmatpush1.msra.mxu0 0.0
  %775 = vmatprep.subr.mxu0 0.0
  %776 = vmatpush1.msra.mxu0 0.0
  %777 = vmatprep.subr.mxu0 0.0
  %778 = vmatpush1.msra.mxu0 0.0
  %779 = vmatprep.subr.mxu0 0.0
  %780 = vmatpush1.msra.mxu0 0.0
  %781 = vmatprep.mubr.f32.mxu0 0.0
  %782 = vmatmul.mubr.f32.gmra.mrb[0].mxu0 %v712
  %v783 = vpop.f32.mrb[0].mxu0
  %v784 = vadd.f32 0.0, %v783
  %v785 = vpop.f32.mrb[0].mxu0
  %786 = vdwg.mxu0
  %v787 = vld [vmem:[%s19] sm:$0x3]
  %v788 = vld [vmem:[%s21] sm:$0xff]
  %v789 = vld [vmem:[%s21 + $0x8] sm:$0xff]
  %v790 = vld [vmem:[%s23] sm:$0x1]
  %v792 = vlaneseq
  %v793 = vshrl.u32 %v792, 7
  %v794 = vsub.s32 0, %v793
  %v795 = vrot.slane %v790, %v794
  %vm797 = vcmask 130048
  %v799 = vsel %vm797, %v787, 0
  %801 = vmatprep.subr.mxu0 0.0
  %802 = vmatpush1.msra.mxu0 %v788
  %803 = vmatprep.subr.mxu0 0.0
  %804 = vmatpush1.msra.mxu0 %v789
  %805 = vmatprep.subr.mxu0 0.0
  %806 = vmatpush1.msra.mxu0 0.0
  %807 = vmatprep.subr.mxu0 0.0
  %808 = vmatpush1.msra.mxu0 0.0
  %809 = vmatprep.subr.mxu0 0.0
  %810 = vmatpush1.msra.mxu0 0.0
  %811 = vmatprep.subr.mxu0 0.0
  %812 = vmatpush1.msra.mxu0 0.0
  %813 = vmatprep.subr.mxu0 0.0
  %814 = vmatpush1.msra.mxu0 0.0
  %815 = vmatprep.subr.mxu0 0.0
  %816 = vmatpush1.msra.mxu0 0.0
  %817 = vmatprep.subr.mxu0 0.0
  %818 = vmatpush1.msra.mxu0 0.0
  %819 = vmatprep.subr.mxu0 0.0
  %820 = vmatpush1.msra.mxu0 0.0
  %821 = vmatprep.subr.mxu0 0.0
  %822 = vmatpush1.msra.mxu0 0.0
  %823 = vmatprep.subr.mxu0 0.0
  %824 = vmatpush1.msra.mxu0 0.0
  %825 = vmatprep.subr.mxu0 0.0
  %826 = vmatpush1.msra.mxu0 0.0
  %827 = vmatprep.subr.mxu0 0.0
  %828 = vmatpush1.msra.mxu0 0.0
  %829 = vmatprep.subr.mxu0 0.0
  %830 = vmatpush1.msra.mxu0 0.0
  %831 = vmatprep.subr.mxu0 0.0
  %832 = vmatpush1.msra.mxu0 0.0
  %833 = vmatprep.subr.mxu0 0.0
  %834 = vmatpush1.msra.mxu0 0.0
  %835 = vmatprep.subr.mxu0 0.0
  %836 = vmatpush1.msra.mxu0 0.0
  %837 = vmatprep.subr.mxu0 0.0
  %838 = vmatpush1.msra.mxu0 0.0
  %839 = vmatprep.subr.mxu0 0.0
  %840 = vmatpush1.msra.mxu0 0.0
  %841 = vmatprep.subr.mxu0 0.0
  %842 = vmatpush1.msra.mxu0 0.0
  %843 = vmatprep.subr.mxu0 0.0
  %844 = vmatpush1.msra.mxu0 0.0
  %845 = vmatprep.subr.mxu0 0.0
  %846 = vmatpush1.msra.mxu0 0.0
  %847 = vmatprep.subr.mxu0 0.0
  %848 = vmatpush1.msra.mxu0 0.0
  %849 = vmatprep.subr.mxu0 0.0
  %850 = vmatpush1.msra.mxu0 0.0
  %851 = vmatprep.subr.mxu0 0.0
  %852 = vmatpush1.msra.mxu0 0.0
  %853 = vmatprep.subr.mxu0 0.0
  %854 = vmatpush1.msra.mxu0 0.0
  %855 = vmatprep.subr.mxu0 0.0
  %856 = vmatpush1.msra.mxu0 0.0
  %857 = vmatprep.subr.mxu0 0.0
  %858 = vmatpush1.msra.mxu0 0.0
  %859 = vmatprep.subr.mxu0 0.0
  %860 = vmatpush1.msra.mxu0 0.0
  %861 = vmatprep.subr.mxu0 0.0
  %862 = vmatpush1.msra.mxu0 0.0
  %863 = vmatprep.subr.mxu0 0.0
  %864 = vmatpush1.msra.mxu0 0.0
  %865 = vmatprep.mubr.f32.mxu0 0.0
  %866 = vmatmul.mubr.f32.gmra.mrb[0].mxu0 %v799
  %v867 = vpop.f32.mrb[0].mxu0
  %v868 = vadd.f32 %v795, %v867
  %v869 = vpop.f32.mrb[0].mxu0
  %870 = vdwg.mxu0
  %v871 = vld [vmem:[%s25] sm:$0xff]
  %v872 = vld [vmem:[%s25 + $0x8] sm:$0xff]
  %v873 = vld [vmem:[%s25 + $0x10] sm:$0xff]
  %v874 = vld [vmem:[%s25 + $0x18] sm:$0xff]
  %v875 = vld [vmem:[%s27] sm:$0xff]
  %v876 = vld [vmem:[%s27 + $0x8] sm:$0xff]
  %v877 = vld [vmem:[%s27 + $0x10] sm:$0xff]
  %v878 = vld [vmem:[%s27 + $0x18] sm:$0xff]
  %vm879 = vcmask 15360
  %v881 = vsel %vm879, %v875, 0
  %v884 = vsel %vm879, %v876, 0
  %v887 = vsel %vm879, %v877, 0
  %v890 = vsel %vm879, %v878, 0
  %vm892 = vcmask 1041408
  %v894 = vsel %vm892, %v868, 0
  %896 = vmatprep.subr.mxu0 0.0
  %897 = vmatpush1.msra.mxu0 %v894
  %898 = vmatprep.subr.mxu0 0.0
  %899 = vmatpush1.msra.mxu0 0.0
  %900 = vmatprep.subr.mxu0 0.0
  %901 = vmatpush1.msra.mxu0 0.0
  %902 = vmatprep.subr.mxu0 0.0
  %903 = vmatpush1.msra.mxu0 0.0
  %904 = vmatprep.subr.mxu0 0.0
  %905 = vmatpush1.msra.mxu0 0.0
  %906 = vmatprep.subr.mxu0 0.0
  %907 = vmatpush1.msra.mxu0 0.0
  %908 = vmatprep.subr.mxu0 0.0
  %909 = vmatpush1.msra.mxu0 0.0
  %910 = vmatprep.subr.mxu0 0.0
  %911 = vmatpush1.msra.mxu0 0.0
  %912 = vmatprep.subr.mxu0 0.0
  %913 = vmatpush1.msra.mxu0 0.0
  %914 = vmatprep.subr.mxu0 0.0
  %915 = vmatpush1.msra.mxu0 0.0
  %916 = vmatprep.subr.mxu0 0.0
  %917 = vmatpush1.msra.mxu0 0.0
  %918 = vmatprep.subr.mxu0 0.0
  %919 = vmatpush1.msra.mxu0 0.0
  %920 = vmatprep.subr.mxu0 0.0
  %921 = vmatpush1.msra.mxu0 0.0
  %922 = vmatprep.subr.mxu0 0.0
  %923 = vmatpush1.msra.mxu0 0.0
  %924 = vmatprep.subr.mxu0 0.0
  %925 = vmatpush1.msra.mxu0 0.0
  %926 = vmatprep.subr.mxu0 0.0
  %927 = vmatpush1.msra.mxu0 0.0
  %928 = vmatprep.subr.mxu0 0.0
  %929 = vmatpush1.msra.mxu0 0.0
  %930 = vmatprep.subr.mxu0 0.0
  %931 = vmatpush1.msra.mxu0 0.0
  %932 = vmatprep.subr.mxu0 0.0
  %933 = vmatpush1.msra.mxu0 0.0
  %934 = vmatprep.subr.mxu0 0.0
  %935 = vmatpush1.msra.mxu0 0.0
  %936 = vmatprep.subr.mxu0 0.0
  %937 = vmatpush1.msra.mxu0 0.0
  %938 = vmatprep.subr.mxu0 0.0
  %939 = vmatpush1.msra.mxu0 0.0
  %940 = vmatprep.subr.mxu0 0.0
  %941 = vmatpush1.msra.mxu0 0.0
  %942 = vmatprep.subr.mxu0 0.0
  %943 = vmatpush1.msra.mxu0 0.0
  %944 = vmatprep.subr.mxu0 0.0
  %945 = vmatpush1.msra.mxu0 0.0
  %946 = vmatprep.subr.mxu0 0.0
  %947 = vmatpush1.msra.mxu0 0.0
  %948 = vmatprep.subr.mxu0 0.0
  %949 = vmatpush1.msra.mxu0 0.0
  %950 = vmatprep.subr.mxu0 0.0
  %951 = vmatpush1.msra.mxu0 0.0
  %952 = vmatprep.subr.mxu0 0.0
  %953 = vmatpush1.msra.mxu0 0.0
  %954 = vmatprep.subr.mxu0 0.0
  %955 = vmatpush1.msra.mxu0 0.0
  %956 = vmatprep.subr.mxu0 0.0
  %957 = vmatpush1.msra.mxu0 0.0
  %958 = vmatprep.subr.mxu0 0.0
  %959 = vmatpush1.msra.mxu0 0.0
  %960 = vmatprep.mubr.f32.mxu0 0.0
  %961 = vmatmul.mubr.f32.gmra.mrb[0].mxu0 %v881
  %v962 = vpop.f32.mrb[0].mxu0
  %v963 = vadd.f32 0.0, %v962
  %v964 = vpop.f32.mrb[0].mxu0
  %965 = vmatprep.mubr.f32.mxu0 0.0
  %966 = vmatmul.mubr.f32.gmra.mrb[0].mxu0 %v884
  %v967 = vpop.f32.mrb[0].mxu0
  %v968 = vadd.f32 0.0, %v967
  %v969 = vpop.f32.mrb[0].mxu0
  %970 = vmatprep.mubr.f32.mxu0 0.0
  %971 = vmatmul.mubr.f32.gmra.mrb[0].mxu0 %v887
  %v972 = vpop.f32.mrb[0].mxu0
  %v973 = vadd.f32 0.0, %v972
  %v974 = vpop.f32.mrb[0].mxu0
  %975 = vmatprep.mubr.f32.mxu0 0.0
  %976 = vmatmul.mubr.f32.gmra.mrb[0].mxu0 %v890
  %v977 = vpop.f32.mrb[0].mxu0
  %v978 = vadd.f32 0.0, %v977
  %v979 = vpop.f32.mrb[0].mxu0
  %980 = vdwg.mxu0
  %v982 = vsel %vm879, %v871, 0
  %v985 = vsel %vm879, %v872, 0
  %v988 = vsel %vm879, %v873, 0
  %v991 = vsel %vm879, %v874, 0
  %v994 = vsel %vm892, %v784, 0
  %996 = vmatprep.subr.mxu0 0.0
  %997 = vmatpush1.msra.mxu0 %v994
  %998 = vmatprep.subr.mxu0 0.0
  %999 = vmatpush1.msra.mxu0 0.0
  %1000 = vmatprep.subr.mxu0 0.0
  %1001 = vmatpush1.msra.mxu0 0.0
  %1002 = vmatprep.subr.mxu0 0.0
  %1003 = vmatpush1.msra.mxu0 0.0
  %1004 = vmatprep.subr.mxu0 0.0
  %1005 = vmatpush1.msra.mxu0 0.0
  %1006 = vmatprep.subr.mxu0 0.0
  %1007 = vmatpush1.msra.mxu0 0.0
  %1008 = vmatprep.subr.mxu0 0.0
  %1009 = vmatpush1.msra.mxu0 0.0
  %1010 = vmatprep.subr.mxu0 0.0
  %1011 = vmatpush1.msra.mxu0 0.0
  %1012 = vmatprep.subr.mxu0 0.0
  %1013 = vmatpush1.msra.mxu0 0.0
  %1014 = vmatprep.subr.mxu0 0.0
  %1015 = vmatpush1.msra.mxu0 0.0
  %1016 = vmatprep.subr.mxu0 0.0
  %1017 = vmatpush1.msra.mxu0 0.0
  %1018 = vmatprep.subr.mxu0 0.0
  %1019 = vmatpush1.msra.mxu0 0.0
  %1020 = vmatprep.subr.mxu0 0.0
  %1021 = vmatpush1.msra.mxu0 0.0
  %1022 = vmatprep.subr.mxu0 0.0
  %1023 = vmatpush1.msra.mxu0 0.0
  %1024 = vmatprep.subr.mxu0 0.0
  %1025 = vmatpush1.msra.mxu0 0.0
  %1026 = vmatprep.subr.mxu0 0.0
  %1027 = vmatpush1.msra.mxu0 0.0
  %1028 = vmatprep.subr.mxu0 0.0
  %1029 = vmatpush1.msra.mxu0 0.0
  %1030 = vmatprep.subr.mxu0 0.0
  %1031 = vmatpush1.msra.mxu0 0.0
  %1032 = vmatprep.subr.mxu0 0.0
  %1033 = vmatpush1.msra.mxu0 0.0
  %1034 = vmatprep.subr.mxu0 0.0
  %1035 = vmatpush1.msra.mxu0 0.0
  %1036 = vmatprep.subr.mxu0 0.0
  %1037 = vmatpush1.msra.mxu0 0.0
  %1038 = vmatprep.subr.mxu0 0.0
  %1039 = vmatpush1.msra.mxu0 0.0
  %1040 = vmatprep.subr.mxu0 0.0
  %1041 = vmatpush1.msra.mxu0 0.0
  %1042 = vmatprep.subr.mxu0 0.0
  %1043 = vmatpush1.msra.mxu0 0.0
  %1044 = vmatprep.subr.mxu0 0.0
  %1045 = vmatpush1.msra.mxu0 0.0
  %1046 = vmatprep.subr.mxu0 0.0
  %1047 = vmatpush1.msra.mxu0 0.0
  %1048 = vmatprep.subr.mxu0 0.0
  %1049 = vmatpush1.msra.mxu0 0.0
  %1050 = vmatprep.subr.mxu0 0.0
  %1051 = vmatpush1.msra.mxu0 0.0
  %1052 = vmatprep.subr.mxu0 0.0
  %1053 = vmatpush1.msra.mxu0 0.0
  %1054 = vmatprep.subr.mxu0 0.0
  %1055 = vmatpush1.msra.mxu0 0.0
  %1056 = vmatprep.subr.mxu0 0.0
  %1057 = vmatpush1.msra.mxu0 0.0
  %1058 = vmatprep.subr.mxu0 0.0
  %1059 = vmatpush1.msra.mxu0 0.0
  %1060 = vmatprep.mubr.f32.mxu0 0.0
  %1061 = vmatmul.mubr.f32.gmra.mrb[0].mxu0 %v982
  %v1062 = vpop.f32.mrb[0].mxu0
  %v1063 = vadd.f32 %v963, %v1062
  %v1064 = vpop.f32.mrb[0].mxu0
  %1065 = vmatprep.mubr.f32.mxu0 0.0
  %1066 = vmatmul.mubr.f32.gmra.mrb[0].mxu0 %v985
  %v1067 = vpop.f32.mrb[0].mxu0
  %v1068 = vadd.f32 %v968, %v1067
  %v1069 = vpop.f32.mrb[0].mxu0
  %1070 = vmatprep.mubr.f32.mxu0 0.0
  %1071 = vmatmul.mubr.f32.gmra.mrb[0].mxu0 %v988
  %v1072 = vpop.f32.mrb[0].mxu0
  %v1073 = vadd.f32 %v973, %v1072
  %v1074 = vpop.f32.mrb[0].mxu0
  %1075 = vmatprep.mubr.f32.mxu0 0.0
  %1076 = vmatmul.mubr.f32.gmra.mrb[0].mxu0 %v991
  %v1077 = vpop.f32.mrb[0].mxu0
  %v1078 = vadd.f32 %v978, %v1077
  %v1079 = vpop.f32.mrb[0].mxu0
  %1080 = vdwg.mxu0
  %v1081 = vld [vmem:[%s29] sm:$0xff]
  %v1082 = vld [vmem:[%s29 + $0x8] sm:$0xff]
  %v1083 = vld [vmem:[%s29 + $0x10] sm:$0xff]
  %v1084 = vld [vmem:[%s29 + $0x18] sm:$0xff]
  %v1085 = vld [vmem:[%s31] sm:$0xff]
  %v1086 = vld [vmem:[%s31 + $0x8] sm:$0xff]
  %v1087 = vld [vmem:[%s31 + $0x10] sm:$0xff]
  %vm1088 = vcmask 195584
  %v1090 = vsel %vm1088, %v1081, 0
  %v1093 = vsel %vm1088, %v1082, 0
  %v1096 = vsel %vm1088, %v1083, 0
  %v1099 = vsel %vm1088, %v1084, 0
  %1101 = vmatprep.subr.mxu0 0.0
  %1102 = vmatpush1.msra.mxu0 %v1085
  %1103 = vmatprep.subr.mxu0 0.0
  %1104 = vmatpush1.msra.mxu0 %v1086
  %1105 = vmatprep.subr.mxu0 0.0
  %1106 = vmatpush1.msra.mxu0 %v1087
  %1107 = vmatprep.subr.mxu0 0.0
  %1108 = vmatpush1.msra.mxu0 0.0
  %1109 = vmatprep.subr.mxu0 0.0
  %1110 = vmatpush1.msra.mxu0 0.0
  %1111 = vmatprep.subr.mxu0 0.0
  %1112 = vmatpush1.msra.mxu0 0.0
  %1113 = vmatprep.subr.mxu0 0.0
  %1114 = vmatpush1.msra.mxu0 0.0
  %1115 = vmatprep.subr.mxu0 0.0
  %1116 = vmatpush1.msra.mxu0 0.0
  %1117 = vmatprep.subr.mxu0 0.0
  %1118 = vmatpush1.msra.mxu0 0.0
  %1119 = vmatprep.subr.mxu0 0.0
  %1120 = vmatpush1.msra.mxu0 0.0
  %1121 = vmatprep.subr.mxu0 0.0
  %1122 = vmatpush1.msra.mxu0 0.0
  %1123 = vmatprep.subr.mxu0 0.0
  %1124 = vmatpush1.msra.mxu0 0.0
  %1125 = vmatprep.subr.mxu0 0.0
  %1126 = vmatpush1.msra.mxu0 0.0
  %1127 = vmatprep.subr.mxu0 0.0
  %1128 = vmatpush1.msra.mxu0 0.0
  %1129 = vmatprep.subr.mxu0 0.0
  %1130 = vmatpush1.msra.mxu0 0.0
  %1131 = vmatprep.subr.mxu0 0.0
  %1132 = vmatpush1.msra.mxu0 0.0
  %1133 = vmatprep.subr.mxu0 0.0
  %1134 = vmatpush1.msra.mxu0 0.0
  %1135 = vmatprep.subr.mxu0 0.0
  %1136 = vmatpush1.msra.mxu0 0.0
  %1137 = vmatprep.subr.mxu0 0.0
  %1138 = vmatpush1.msra.mxu0 0.0
  %1139 = vmatprep.subr.mxu0 0.0
  %1140 = vmatpush1.msra.mxu0 0.0
  %1141 = vmatprep.subr.mxu0 0.0
  %1142 = vmatpush1.msra.mxu0 0.0
  %1143 = vmatprep.subr.mxu0 0.0
  %1144 = vmatpush1.msra.mxu0 0.0
  %1145 = vmatprep.subr.mxu0 0.0
  %1146 = vmatpush1.msra.mxu0 0.0
  %1147 = vmatprep.subr.mxu0 0.0
  %1148 = vmatpush1.msra.mxu0 0.0
  %1149 = vmatprep.subr.mxu0 0.0
  %1150 = vmatpush1.msra.mxu0 0.0
  %1151 = vmatprep.subr.mxu0 0.0
  %1152 = vmatpush1.msra.mxu0 0.0
  %1153 = vmatprep.subr.mxu0 0.0
  %1154 = vmatpush1.msra.mxu0 0.0
  %1155 = vmatprep.subr.mxu0 0.0
  %1156 = vmatpush1.msra.mxu0 0.0
  %1157 = vmatprep.subr.mxu0 0.0
  %1158 = vmatpush1.msra.mxu0 0.0
  %1159 = vmatprep.subr.mxu0 0.0
  %1160 = vmatpush1.msra.mxu0 0.0
  %1161 = vmatprep.subr.mxu0 0.0
  %1162 = vmatpush1.msra.mxu0 0.0
  %1163 = vmatprep.subr.mxu0 0.0
  %1164 = vmatpush1.msra.mxu0 0.0
  %1165 = vmatprep.mubr.f32.mxu0 0.0
  %1166 = vmatmul.mubr.f32.gmra.mrb[0].mxu0 %v1090
  %v1167 = vpop.f32.mrb[0].mxu0
  %v1168 = vadd.f32 0.0, %v1167
  %v1169 = vpop.f32.mrb[0].mxu0
  %1170 = vmatprep.mubr.f32.mxu0 0.0
  %1171 = vmatmul.mubr.f32.gmra.mrb[0].mxu0 %v1093
  %v1172 = vpop.f32.mrb[0].mxu0
  %v1173 = vadd.f32 0.0, %v1172
  %v1174 = vpop.f32.mrb[0].mxu0
  %1175 = vmatprep.mubr.f32.mxu0 0.0
  %1176 = vmatmul.mubr.f32.gmra.mrb[0].mxu0 %v1096
  %v1177 = vpop.f32.mrb[0].mxu0
  %v1178 = vadd.f32 0.0, %v1177
  %v1179 = vpop.f32.mrb[0].mxu0
  %1180 = vmatprep.mubr.f32.mxu0 0.0
  %1181 = vmatmul.mubr.f32.gmra.mrb[0].mxu0 %v1099
  %v1182 = vpop.f32.mrb[0].mxu0
  %v1183 = vadd.f32 0.0, %v1182
  %v1184 = vpop.f32.mrb[0].mxu0
  %1185 = vdwg.mxu0
  %v1186 = vadd.f32 %v1063, %v1168
  %v1187 = vadd.f32 %v1068, %v1173
  %v1188 = vadd.f32 %v1073, %v1178
  %v1189 = vadd.f32 %v1078, %v1183
  %v1190 = vld [vmem:[%s37] sm:$0xff]
  %v1191 = vld [vmem:[%s37 + $0x8] sm:$0xff]
  %v1192 = vld [vmem:[%s37 + $0x10] sm:$0xff]
  %v1193 = vld [vmem:[%s37 + $0x18] sm:$0xff]
  %v1194 = vld [vmem:[%s37 + $0x20] sm:$0xff]
  %v1195 = vld [vmem:[%s37 + $0x28] sm:$0xff]
  %v1196 = vld [vmem:[%s37 + $0x30] sm:$0xff]
  %v1197 = vld [vmem:[%s37 + $0x38] sm:$0xff]
  %v1198 = vld [vmem:[%s39] sm:$0xf]
  %v1199 = vld [vmem:[%s41] sm:$0x3]
  %v1200 = vld [vmem:[%s33] sm:$0xff]
  %v1201 = vld [vmem:[%s33 + $0x8] sm:$0xff]
  %v1202 = vld [vmem:[%s33 + $0x10] sm:$0xff]
  %v1203 = vld [vmem:[%s33 + $0x18] sm:$0xff]
  %v1204 = vld [vmem:[%s35] sm:$0x3]
  %v1205 = vld [vmem:[%s43] sm:$0xff]
  %v1206 = vld [vmem:[%s43 + $0x8] sm:$0xff]
  %v1207 = vld [vmem:[%s43 + $0x10] sm:$0xff]
  %v1208 = vld [vmem:[%s43 + $0x18] sm:$0xff]
  %v1209 = vld [vmem:[%s43 + $0x20] sm:$0xff]
  %v1210 = vld [vmem:[%s43 + $0x28] sm:$0xff]
  %v1211 = vld [vmem:[%s43 + $0x30] sm:$0xff]
  %v1212 = vld [vmem:[%s43 + $0x38] sm:$0xff]
  %v1213 = vld [vmem:[%s45] sm:$0x1]
  %v1215 = vlaneseq
  %v1216 = vshrl.u32 %v1215, 7
  %v1217 = vsub.s32 0, %v1216
  %v1218 = vrot.slane %v1213, %v1217
  %vm1220 = vcmask 523264
  %v1222 = vsel %vm1220, %v1204, 0
  %1224 = vmatprep.subr.mxu0 0.0
  %1225 = vmatpush1.msra.mxu0 %v1205
  %1226 = vmatprep.subr.mxu0 0.0
  %1227 = vmatpush1.msra.mxu0 %v1206
  %1228 = vmatprep.subr.mxu0 0.0
  %1229 = vmatpush1.msra.mxu0 %v1207
  %1230 = vmatprep.subr.mxu0 0.0
  %1231 = vmatpush1.msra.mxu0 %v1208
  %1232 = vmatprep.subr.mxu0 0.0
  %1233 = vmatpush1.msra.mxu0 %v1209
  %1234 = vmatprep.subr.mxu0 0.0
  %1235 = vmatpush1.msra.mxu0 %v1210
  %1236 = vmatprep.subr.mxu0 0.0
  %1237 = vmatpush1.msra.mxu0 %v1211
  %1238 = vmatprep.subr.mxu0 0.0
  %1239 = vmatpush1.msra.mxu0 %v1212
  %1240 = vmatprep.subr.mxu0 0.0
  %1241 = vmatpush1.msra.mxu0 0.0
  %1242 = vmatprep.subr.mxu0 0.0
  %1243 = vmatpush1.msra.mxu0 0.0
  %1244 = vmatprep.subr.mxu0 0.0
  %1245 = vmatpush1.msra.mxu0 0.0
  %1246 = vmatprep.subr.mxu0 0.0
  %1247 = vmatpush1.msra.mxu0 0.0
  %1248 = vmatprep.subr.mxu0 0.0
  %1249 = vmatpush1.msra.mxu0 0.0
  %1250 = vmatprep.subr.mxu0 0.0
  %1251 = vmatpush1.msra.mxu0 0.0
  %1252 = vmatprep.subr.mxu0 0.0
  %1253 = vmatpush1.msra.mxu0 0.0
  %1254 = vmatprep.subr.mxu0 0.0
  %1255 = vmatpush1.msra.mxu0 0.0
  %1256 = vmatprep.subr.mxu0 0.0
  %1257 = vmatpush1.msra.mxu0 0.0
  %1258 = vmatprep.subr.mxu0 0.0
  %1259 = vmatpush1.msra.mxu0 0.0
  %1260 = vmatprep.subr.mxu0 0.0
  %1261 = vmatpush1.msra.mxu0 0.0
  %1262 = vmatprep.subr.mxu0 0.0
  %1263 = vmatpush1.msra.mxu0 0.0
  %1264 = vmatprep.subr.mxu0 0.0
  %1265 = vmatpush1.msra.mxu0 0.0
  %1266 = vmatprep.subr.mxu0 0.0
  %1267 = vmatpush1.msra.mxu0 0.0
  %1268 = vmatprep.subr.mxu0 0.0
  %1269 = vmatpush1.msra.mxu0 0.0
  %1270 = vmatprep.subr.mxu0 0.0
  %1271 = vmatpush1.msra.mxu0 0.0
  %1272 = vmatprep.subr.mxu0 0.0
  %1273 = vmatpush1.msra.mxu0 0.0
  %1274 = vmatprep.subr.mxu0 0.0
  %1275 = vmatpush1.msra.mxu0 0.0
  %1276 = vmatprep.subr.mxu0 0.0
  %1277 = vmatpush1.msra.mxu0 0.0
  %1278 = vmatprep.subr.mxu0 0.0
  %1279 = vmatpush1.msra.mxu0 0.0
  %1280 = vmatprep.subr.mxu0 0.0
  %1281 = vmatpush1.msra.mxu0 0.0
  %1282 = vmatprep.subr.mxu0 0.0
  %1283 = vmatpush1.msra.mxu0 0.0
  %1284 = vmatprep.subr.mxu0 0.0
  %1285 = vmatpush1.msra.mxu0 0.0
  %1286 = vmatprep.subr.mxu0 0.0
  %1287 = vmatpush1.msra.mxu0 0.0
  %1288 = vmatprep.mubr.f32.mxu0 0.0
  %1289 = vmatmul.mubr.f32.gmra.mrb[0].mxu0 %v1222
  %v1290 = vpop.f32.mrb[0].mxu0
  %v1291 = vadd.f32 %v1218, %v1290
  %v1292 = vpop.f32.mrb[0].mxu0
  %1293 = vdwg.mxu0
  %v1294 = vadd.f32 %v1204, %v1291
  %v1295 = vld [vmem:[%s63] sm:$0x1]
  %v1296 = vld [vmem:[%s65] sm:$0x1]
  %vm1297 = vcmask 517120
  %v1298 = vsel %vm1297, %v1294, 0.0
  %1299 = vadd.xlane.f32.xlu0 %v1298
  %v1300 = vpop.xlane.xlu0 %1299
  %v1301 = vrcp.pop 64.0
  %v1302 = vmul.f32 %v1300, %v1301
  %v1303 = vsub.f32 %v1294, %v1302
  %v1304 = vmul.f32 %v1303, %v1303
  %v1305 = vsel %vm1297, %v1304, 0.0
  %1306 = vadd.xlane.f32.xlu0 %v1305
  %v1307 = vpop.xlane.xlu0 %1306
  %v1308 = vmul.f32 %v1307, %v1301
  %v1309 = vadd.f32 %v1308, 1e-05
  %v1310 = vrsqrt.pop %v1309
  %v1311 = vmul.f32 %v1303, %v1310
  %v1313 = vlaneseq
  %v1314 = vshrl.u32 %v1313, 7
  %v1315 = vsub.s32 0, %v1314
  %v1316 = vrot.slane %v1295, %v1315
  %v1318 = vmul.f32 %v1311, %v1316
  %v1320 = vlaneseq
  %v1321 = vshrl.u32 %v1320, 7
  %v1322 = vsub.s32 0, %v1321
  %v1323 = vrot.slane %v1296, %v1322
  %v1325 = vadd.f32 %v1318, %v1323
  %v1326 = vld [vmem:[%s47] sm:$0xff]
  %v1327 = vld [vmem:[%s47 + $0x8] sm:$0xff]
  %v1328 = vld [vmem:[%s47 + $0x10] sm:$0xff]
  %v1329 = vld [vmem:[%s47 + $0x18] sm:$0xff]
  %v1330 = vld [vmem:[%s47 + $0x20] sm:$0xff]
  %v1331 = vld [vmem:[%s47 + $0x28] sm:$0xff]
  %v1332 = vld [vmem:[%s47 + $0x30] sm:$0xff]
  %v1333 = vld [vmem:[%s47 + $0x38] sm:$0xff]
  %v1334 = vld [vmem:[%s49] sm:$0x1]
  %v1336 = vlaneseq
  %v1337 = vshrl.u32 %v1336, 7
  %v1338 = vsub.s32 0, %v1337
  %v1339 = vrot.slane %v1334, %v1338
  %v1342 = vsel %vm1220, %v1325, 0
  %1344 = vmatprep.subr.mxu0 0.0
  %1345 = vmatpush1.msra.mxu0 %v1326
  %1346 = vmatprep.subr.mxu0 0.0
  %1347 = vmatpush1.msra.mxu0 %v1327
  %1348 = vmatprep.subr.mxu0 0.0
  %1349 = vmatpush1.msra.mxu0 %v1328
  %1350 = vmatprep.subr.mxu0 0.0
  %1351 = vmatpush1.msra.mxu0 %v1329
  %1352 = vmatprep.subr.mxu0 0.0
  %1353 = vmatpush1.msra.mxu0 %v1330
  %1354 = vmatprep.subr.mxu0 0.0
  %1355 = vmatpush1.msra.mxu0 %v1331
  %1356 = vmatprep.subr.mxu0 0.0
  %1357 = vmatpush1.msra.mxu0 %v1332
  %1358 = vmatprep.subr.mxu0 0.0
  %1359 = vmatpush1.msra.mxu0 %v1333
  %1360 = vmatprep.subr.mxu0 0.0
  %1361 = vmatpush1.msra.mxu0 0.0
  %1362 = vmatprep.subr.mxu0 0.0
  %1363 = vmatpush1.msra.mxu0 0.0
  %1364 = vmatprep.subr.mxu0 0.0
  %1365 = vmatpush1.msra.mxu0 0.0
  %1366 = vmatprep.subr.mxu0 0.0
  %1367 = vmatpush1.msra.mxu0 0.0
  %1368 = vmatprep.subr.mxu0 0.0
  %1369 = vmatpush1.msra.mxu0 0.0
  %1370 = vmatprep.subr.mxu0 0.0
  %1371 = vmatpush1.msra.mxu0 0.0
  %1372 = vmatprep.subr.mxu0 0.0
  %1373 = vmatpush1.msra.mxu0 0.0
  %1374 = vmatprep.subr.mxu0 0.0
  %1375 = vmatpush1.msra.mxu0 0.0
  %1376 = vmatprep.subr.mxu0 0.0
  %1377 = vmatpush1.msra.mxu0 0.0
  %1378 = vmatprep.subr.mxu0 0.0
  %1379 = vmatpush1.msra.mxu0 0.0
  %1380 = vmatprep.subr.mxu0 0.0
  %1381 = vmatpush1.msra.mxu0 0.0
  %1382 = vmatprep.subr.mxu0 0.0
  %1383 = vmatpush1.msra.mxu0 0.0
  %1384 = vmatprep.subr.mxu0 0.0
  %1385 = vmatpush1.msra.mxu0 0.0
  %1386 = vmatprep.subr.mxu0 0.0
  %1387 = vmatpush1.msra.mxu0 0.0
  %1388 = vmatprep.subr.mxu0 0.0
  %1389 = vmatpush1.msra.mxu0 0.0
  %1390 = vmatprep.subr.mxu0 0.0
  %1391 = vmatpush1.msra.mxu0 0.0
  %1392 = vmatprep.subr.mxu0 0.0
  %1393 = vmatpush1.msra.mxu0 0.0
  %1394 = vmatprep.subr.mxu0 0.0
  %1395 = vmatpush1.msra.mxu0 0.0
  %1396 = vmatprep.subr.mxu0 0.0
  %1397 = vmatpush1.msra.mxu0 0.0
  %1398 = vmatprep.subr.mxu0 0.0
  %1399 = vmatpush1.msra.mxu0 0.0
  %1400 = vmatprep.subr.mxu0 0.0
  %1401 = vmatpush1.msra.mxu0 0.0
  %1402 = vmatprep.subr.mxu0 0.0
  %1403 = vmatpush1.msra.mxu0 0.0
  %1404 = vmatprep.subr.mxu0 0.0
  %1405 = vmatpush1.msra.mxu0 0.0
  %1406 = vmatprep.subr.mxu0 0.0
  %1407 = vmatpush1.msra.mxu0 0.0
  %1408 = vmatprep.mubr.f32.mxu0 0.0
  %1409 = vmatmul.mubr.f32.gmra.mrb[0].mxu0 %v1342
  %v1410 = vpop.f32.mrb[0].mxu0
  %v1411 = vadd.f32 %v1339, %v1410
  %v1412 = vpop.f32.mrb[0].mxu0
  %1413 = vdwg.mxu0
  %v1414 = vld [vmem:[%s51] sm:$0xff]
  %v1415 = vld [vmem:[%s51 + $0x8] sm:$0xff]
  %v1416 = vld [vmem:[%s51 + $0x10] sm:$0xff]
  %v1417 = vld [vmem:[%s51 + $0x18] sm:$0xff]
  %v1418 = vld [vmem:[%s51 + $0x20] sm:$0xff]
  %v1419 = vld [vmem:[%s51 + $0x28] sm:$0xff]
  %v1420 = vld [vmem:[%s51 + $0x30] sm:$0xff]
  %v1421 = vld [vmem:[%s51 + $0x38] sm:$0xff]
  %v1422 = vld [vmem:[%s53] sm:$0x1]
  %v1424 = vlaneseq
  %v1425 = vshrl.u32 %v1424, 7
  %v1426 = vsub.s32 0, %v1425
  %v1427 = vrot.slane %v1422, %v1426
  %v1430 = vsel %vm1220, %v1186, 0
  %v1433 = vsel %vm1220, %v1187, 0
  %v1436 = vsel %vm1220, %v1188, 0
  %v1439 = vsel %vm1220, %v1189, 0
  %1441 = vmatprep.subr.mxu0 0.0
  %1442 = vmatpush1.msra.mxu0 %v1414
  %1443 = vmatprep.subr.mxu0 0.0
  %1444 = vmatpush1.msra.mxu0 %v1415
  %1445 = vmatprep.subr.mxu0 0.0
  %1446 = vmatpush1.msra.mxu0 %v1416
  %1447 = vmatprep.subr.mxu0 0.0
  %1448 = vmatpush1.msra.mxu0 %v1417
  %1449 = vmatprep.subr.mxu0 0.0
  %1450 = vmatpush1.msra.mxu0 %v1418
  %1451 = vmatprep.subr.mxu0 0.0
  %1452 = vmatpush1.msra.mxu0 %v1419
  %1453 = vmatprep.subr.mxu0 0.0
  %1454 = vmatpush1.msra.mxu0 %v1420
  %1455 = vmatprep.subr.mxu0 0.0
  %1456 = vmatpush1.msra.mxu0 %v1421
  %1457 = vmatprep.subr.mxu0 0.0
  %1458 = vmatpush1.msra.mxu0 0.0
  %1459 = vmatprep.subr.mxu0 0.0
  %1460 = vmatpush1.msra.mxu0 0.0
  %1461 = vmatprep.subr.mxu0 0.0
  %1462 = vmatpush1.msra.mxu0 0.0
  %1463 = vmatprep.subr.mxu0 0.0
  %1464 = vmatpush1.msra.mxu0 0.0
  %1465 = vmatprep.subr.mxu0 0.0
  %1466 = vmatpush1.msra.mxu0 0.0
  %1467 = vmatprep.subr.mxu0 0.0
  %1468 = vmatpush1.msra.mxu0 0.0
  %1469 = vmatprep.subr.mxu0 0.0
  %1470 = vmatpush1.msra.mxu0 0.0
  %1471 = vmatprep.subr.mxu0 0.0
  %1472 = vmatpush1.msra.mxu0 0.0
  %1473 = vmatprep.subr.mxu0 0.0
  %1474 = vmatpush1.msra.mxu0 0.0
  %1475 = vmatprep.subr.mxu0 0.0
  %1476 = vmatpush1.msra.mxu0 0.0
  %1477 = vmatprep.subr.mxu0 0.0
  %1478 = vmatpush1.msra.mxu0 0.0
  %1479 = vmatprep.subr.mxu0 0.0
  %1480 = vmatpush1.msra.mxu0 0.0
  %1481 = vmatprep.subr.mxu0 0.0
  %1482 = vmatpush1.msra.mxu0 0.0
  %1483 = vmatprep.subr.mxu0 0.0
  %1484 = vmatpush1.msra.mxu0 0.0
  %1485 = vmatprep.subr.mxu0 0.0
  %1486 = vmatpush1.msra.mxu0 0.0
  %1487 = vmatprep.subr.mxu0 0.0
  %1488 = vmatpush1.msra.mxu0 0.0
  %1489 = vmatprep.subr.mxu0 0.0
  %1490 = vmatpush1.msra.mxu0 0.0
  %1491 = vmatprep.subr.mxu0 0.0
  %1492 = vmatpush1.msra.mxu0 0.0
  %1493 = vmatprep.subr.mxu0 0.0
  %1494 = vmatpush1.msra.mxu0 0.0
  %1495 = vmatprep.subr.mxu0 0.0
  %1496 = vmatpush1.msra.mxu0 0.0
  %1497 = vmatprep.subr.mxu0 0.0
  %1498 = vmatpush1.msra.mxu0 0.0
  %1499 = vmatprep.subr.mxu0 0.0
  %1500 = vmatpush1.msra.mxu0 0.0
  %1501 = vmatprep.subr.mxu0 0.0
  %1502 = vmatpush1.msra.mxu0 0.0
  %1503 = vmatprep.subr.mxu0 0.0
  %1504 = vmatpush1.msra.mxu0 0.0
  %1505 = vmatprep.mubr.f32.mxu0 0.0
  %1506 = vmatmul.mubr.f32.gmra.mrb[0].mxu0 %v1430
  %v1507 = vpop.f32.mrb[0].mxu0
  %v1508 = vadd.f32 %v1427, %v1507
  %v1509 = vpop.f32.mrb[0].mxu0
  %1510 = vmatprep.mubr.f32.mxu0 0.0
  %1511 = vmatmul.mubr.f32.gmra.mrb[0].mxu0 %v1433
  %v1512 = vpop.f32.mrb[0].mxu0
  %v1513 = vadd.f32 %v1427, %v1512
  %v1514 = vpop.f32.mrb[0].mxu0
  %1515 = vmatprep.mubr.f32.mxu0 0.0
  %1516 = vmatmul.mubr.f32.gmra.mrb[0].mxu0 %v1436
  %v1517 = vpop.f32.mrb[0].mxu0
  %v1518 = vadd.f32 %v1427, %v1517
  %v1519 = vpop.f32.mrb[0].mxu0
  %1520 = vmatprep.mubr.f32.mxu0 0.0
  %1521 = vmatmul.mubr.f32.gmra.mrb[0].mxu0 %v1439
  %v1522 = vpop.f32.mrb[0].mxu0
  %v1523 = vadd.f32 %v1427, %v1522
  %v1524 = vpop.f32.mrb[0].mxu0
  %1525 = vdwg.mxu0
  %v1526 = vld [vmem:[%s55] sm:$0xff]
  %v1527 = vld [vmem:[%s55 + $0x8] sm:$0xff]
  %v1528 = vld [vmem:[%s55 + $0x10] sm:$0xff]
  %v1529 = vld [vmem:[%s55 + $0x18] sm:$0xff]
  %v1530 = vld [vmem:[%s55 + $0x20] sm:$0xff]
  %v1531 = vld [vmem:[%s55 + $0x28] sm:$0xff]
  %v1532 = vld [vmem:[%s55 + $0x30] sm:$0xff]
  %v1533 = vld [vmem:[%s55 + $0x38] sm:$0xff]
  %v1534 = vld [vmem:[%s57] sm:$0x1]
  %v1536 = vlaneseq
  %v1537 = vshrl.u32 %v1536, 7
  %v1538 = vsub.s32 0, %v1537
  %v1539 = vrot.slane %v1534, %v1538
  %1541 = vmatprep.subr.mxu0 0.0
  %1542 = vmatpush1.msra.mxu0 %v1526
  %1543 = vmatprep.subr.mxu0 0.0
  %1544 = vmatpush1.msra.mxu0 %v1527
  %1545 = vmatprep.subr.mxu0 0.0
  %1546 = vmatpush1.msra.mxu0 %v1528
  %1547 = vmatprep.subr.mxu0 0.0
  %1548 = vmatpush1.msra.mxu0 %v1529
  %1549 = vmatprep.subr.mxu0 0.0
  %1550 = vmatpush1.msra.mxu0 %v1530
  %1551 = vmatprep.subr.mxu0 0.0
  %1552 = vmatpush1.msra.mxu0 %v1531
  %1553 = vmatprep.subr.mxu0 0.0
  %1554 = vmatpush1.msra.mxu0 %v1532
  %1555 = vmatprep.subr.mxu0 0.0
  %1556 = vmatpush1.msra.mxu0 %v1533
  %1557 = vmatprep.subr.mxu0 0.0
  %1558 = vmatpush1.msra.mxu0 0.0
  %1559 = vmatprep.subr.mxu0 0.0
  %1560 = vmatpush1.msra.mxu0 0.0
  %1561 = vmatprep.subr.mxu0 0.0
  %1562 = vmatpush1.msra.mxu0 0.0
  %1563 = vmatprep.subr.mxu0 0.0
  %1564 = vmatpush1.msra.mxu0 0.0
  %1565 = vmatprep.subr.mxu0 0.0
  %1566 = vmatpush1.msra.mxu0 0.0
  %1567 = vmatprep.subr.mxu0 0.0
  %1568 = vmatpush1.msra.mxu0 0.0
  %1569 = vmatprep.subr.mxu0 0.0
  %1570 = vmatpush1.msra.mxu0 0.0
  %1571 = vmatprep.subr.mxu0 0.0
  %1572 = vmatpush1.msra.mxu0 0.0
  %1573 = vmatprep.subr.mxu0 0.0
  %1574 = vmatpush1.msra.mxu0 0.0
  %1575 = vmatprep.subr.mxu0 0.0
  %1576 = vmatpush1.msra.mxu0 0.0
  %1577 = vmatprep.subr.mxu0 0.0
  %1578 = vmatpush1.msra.mxu0 0.0
  %1579 = vmatprep.subr.mxu0 0.0
  %1580 = vmatpush1.msra.mxu0 0.0
  %1581 = vmatprep.subr.mxu0 0.0
  %1582 = vmatpush1.msra.mxu0 0.0
  %1583 = vmatprep.subr.mxu0 0.0
  %1584 = vmatpush1.msra.mxu0 0.0
  %1585 = vmatprep.subr.mxu0 0.0
  %1586 = vmatpush1.msra.mxu0 0.0
  %1587 = vmatprep.subr.mxu0 0.0
  %1588 = vmatpush1.msra.mxu0 0.0
  %1589 = vmatprep.subr.mxu0 0.0
  %1590 = vmatpush1.msra.mxu0 0.0
  %1591 = vmatprep.subr.mxu0 0.0
  %1592 = vmatpush1.msra.mxu0 0.0
  %1593 = vmatprep.subr.mxu0 0.0
  %1594 = vmatpush1.msra.mxu0 0.0
  %1595 = vmatprep.subr.mxu0 0.0
  %1596 = vmatpush1.msra.mxu0 0.0
  %1597 = vmatprep.subr.mxu0 0.0
  %1598 = vmatpush1.msra.mxu0 0.0
  %1599 = vmatprep.subr.mxu0 0.0
  %1600 = vmatpush1.msra.mxu0 0.0
  %1601 = vmatprep.subr.mxu0 0.0
  %1602 = vmatpush1.msra.mxu0 0.0
  %1603 = vmatprep.subr.mxu0 0.0
  %1604 = vmatpush1.msra.mxu0 0.0
  %1605 = vmatprep.mubr.f32.mxu0 0.0
  %1606 = vmatmul.mubr.f32.gmra.mrb[0].mxu0 %v1430
  %v1607 = vpop.f32.mrb[0].mxu0
  %v1608 = vadd.f32 %v1539, %v1607
  %v1609 = vpop.f32.mrb[0].mxu0
  %1610 = vmatprep.mubr.f32.mxu0 0.0
  %1611 = vmatmul.mubr.f32.gmra.mrb[0].mxu0 %v1433
  %v1612 = vpop.f32.mrb[0].mxu0
  %v1613 = vadd.f32 %v1539, %v1612
  %v1614 = vpop.f32.mrb[0].mxu0
  %1615 = vmatprep.mubr.f32.mxu0 0.0
  %1616 = vmatmul.mubr.f32.gmra.mrb[0].mxu0 %v1436
  %v1617 = vpop.f32.mrb[0].mxu0
  %v1618 = vadd.f32 %v1539, %v1617
  %v1619 = vpop.f32.mrb[0].mxu0
  %1620 = vmatprep.mubr.f32.mxu0 0.0
  %1621 = vmatmul.mubr.f32.gmra.mrb[0].mxu0 %v1439
  %v1622 = vpop.f32.mrb[0].mxu0
  %v1623 = vadd.f32 %v1539, %v1622
  %v1624 = vpop.f32.mrb[0].mxu0
  %1625 = vdwg.mxu0
  %v1626 = vlaneseq
  %v1627 = vshrl.u32 %v1626, 7
  %v1628 = vsub.s32 0, %v1627
  %v1629 = vrot.slane %v1411, %v1628
  %v1630 = vmul.f32 %v1629, %v1508
  %v1631 = vmul.f32 %v1629, %v1513
  %v1633 = vsel %vm1220, %v1630, 0
  %v1636 = vsel %vm1220, %v1631, 0
  %1638 = vmatprep.subr.mxu0 0.0
  %1639 = vmatpush1.msra.mxu0 %v1190
  %1640 = vmatprep.subr.mxu0 0.0
  %1641 = vmatpush1.msra.mxu0 %v1191
  %1642 = vmatprep.subr.mxu0 0.0
  %1643 = vmatpush1.msra.mxu0 %v1192
  %1644 = vmatprep.subr.mxu0 0.0
  %1645 = vmatpush1.msra.mxu0 %v1193
  %1646 = vmatprep.subr.mxu0 0.0
  %1647 = vmatpush1.msra.mxu0 %v1194
  %1648 = vmatprep.subr.mxu0 0.0
  %1649 = vmatpush1.msra.mxu0 %v1195
  %1650 = vmatprep.subr.mxu0 0.0
  %1651 = vmatpush1.msra.mxu0 %v1196
  %1652 = vmatprep.subr.mxu0 0.0
  %1653 = vmatpush1.msra.mxu0 %v1197
  %1654 = vmatprep.subr.mxu0 0.0
  %1655 = vmatpush1.msra.mxu0 0.0
  %1656 = vmatprep.subr.mxu0 0.0
  %1657 = vmatpush1.msra.mxu0 0.0
  %1658 = vmatprep.subr.mxu0 0.0
  %1659 = vmatpush1.msra.mxu0 0.0
  %1660 = vmatprep.subr.mxu0 0.0
  %1661 = vmatpush1.msra.mxu0 0.0
  %1662 = vmatprep.subr.mxu0 0.0
  %1663 = vmatpush1.msra.mxu0 0.0
  %1664 = vmatprep.subr.mxu0 0.0
  %1665 = vmatpush1.msra.mxu0 0.0
  %1666 = vmatprep.subr.mxu0 0.0
  %1667 = vmatpush1.msra.mxu0 0.0
  %1668 = vmatprep.subr.mxu0 0.0
  %1669 = vmatpush1.msra.mxu0 0.0
  %1670 = vmatprep.subr.mxu0 0.0
  %1671 = vmatpush1.msra.mxu0 0.0
  %1672 = vmatprep.subr.mxu0 0.0
  %1673 = vmatpush1.msra.mxu0 0.0
  %1674 = vmatprep.subr.mxu0 0.0
  %1675 = vmatpush1.msra.mxu0 0.0
  %1676 = vmatprep.subr.mxu0 0.0
  %1677 = vmatpush1.msra.mxu0 0.0
  %1678 = vmatprep.subr.mxu0 0.0
  %1679 = vmatpush1.msra.mxu0 0.0
  %1680 = vmatprep.subr.mxu0 0.0
  %1681 = vmatpush1.msra.mxu0 0.0
  %1682 = vmatprep.subr.mxu0 0.0
  %1683 = vmatpush1.msra.mxu0 0.0
  %1684 = vmatprep.subr.mxu0 0.0
  %1685 = vmatpush1.msra.mxu0 0.0
  %1686 = vmatprep.subr.mxu0 0.0
  %1687 = vmatpush1.msra.mxu0 0.0
  %1688 = vmatprep.subr.mxu0 0.0
  %1689 = vmatpush1.msra.mxu0 0.0
  %1690 = vmatprep.subr.mxu0 0.0
  %1691 = vmatpush1.msra.mxu0 0.0
  %1692 = vmatprep.subr.mxu0 0.0
  %1693 = vmatpush1.msra.mxu0 0.0
  %1694 = vmatprep.subr.mxu0 0.0
  %1695 = vmatpush1.msra.mxu0 0.0
  %1696 = vmatprep.subr.mxu0 0.0
  %1697 = vmatpush1.msra.mxu0 0.0
  %1698 = vmatprep.subr.mxu0 0.0
  %1699 = vmatpush1.msra.mxu0 0.0
  %1700 = vmatprep.subr.mxu0 0.0
  %1701 = vmatpush1.msra.mxu0 0.0
  %1702 = vmatprep.mubr.f32.mxu0 0.0
  %1703 = vmatmul.mubr.f32.gmra.mrb[0].mxu0 %v1633
  %v1704 = vpop.f32.mrb[0].mxu0
  %v1705 = vadd.f32 0.0, %v1704
  %v1706 = vpop.f32.mrb[0].mxu0
  %1707 = vmatprep.mubr.f32.mxu0 0.0
  %1708 = vmatmul.mubr.f32.gmra.mrb[0].mxu0 %v1636
  %v1709 = vpop.f32.mrb[0].mxu0
  %v1710 = vadd.f32 0.0, %v1709
  %v1711 = vpop.f32.mrb[0].mxu0
  %1712 = vdwg.mxu0
  %v1713 = vmul.f32 %v1705, 0.25
  %v1714 = vmul.f32 %v1710, 0.25
  %1716 = vset.pattern.permute.xlu0 0
  %1717 = vperm.xlu0 %1716, %v1200
  %v1718 = vpop.permute.xlu0 %1717
  %1721 = vset.pattern.permute.xlu0 0
  %1722 = vperm.xlu0 %1721, %v1201
  %v1723 = vpop.permute.xlu0 %1722
  %v1725 = vadd.f32 %v1713, %v1718
  %v1726 = vadd.f32 %v1714, %v1723
  %v1727 = vsel %vm187, %v1725, -inf
  %v1728 = vsel %vm187, %v1726, -inf
  %v1729 = vmax.f32 %v1727, %v1728
  %v1730 = vrot.slane %v1729, 4
  %v1731 = vmax.f32 %v1729, %v1730
  %v1732 = vrot.slane %v1731, 2
  %v1733 = vmax.f32 %v1731, %v1732
  %v1734 = vrot.slane %v1733, 1
  %v1735 = vmax.f32 %v1733, %v1734
  %v1736 = vsub.f32 %v1725, %v1735
  %v1737 = vsub.f32 %v1726, %v1735
  %v1738 = vmul.f32 %v1736, 1.442695
  %v1739 = vpow.pop %v1738
  %v1740 = vmul.f32 %v1737, 1.442695
  %v1741 = vpow.pop %v1740
  %v1742 = vsel %vm187, %v1739, 0.0
  %v1743 = vsel %vm187, %v1741, 0.0
  %v1744 = vadd.f32 %v1742, %v1743
  %v1745 = vrot.slane %v1744, 4
  %v1746 = vadd.f32 %v1744, %v1745
  %v1747 = vrot.slane %v1746, 2
  %v1748 = vadd.f32 %v1746, %v1747
  %v1749 = vrot.slane %v1748, 1
  %v1750 = vadd.f32 %v1748, %v1749
  %v1751 = vrcp.pop %v1750
  %v1752 = vmul.f32 %v1739, %v1751
  %v1753 = vmul.f32 %v1741, %v1751
  %v1755 = vsel %vm187, %v1752, 0
  %v1758 = vsel %vm187, %v1753, 0
  %v1761 = vsel %vm194, %v1198, 0
  %1763 = vmatprep.subr.mxu0 0.0
  %1764 = vmatpush1.msra.mxu0 %v1761
  %1765 = vmatprep.subr.mxu0 0.0
  %1766 = vmatpush1.msra.mxu0 0.0
  %1767 = vmatprep.subr.mxu0 0.0
  %1768 = vmatpush1.msra.mxu0 0.0
  %1769 = vmatprep.subr.mxu0 0.0
  %1770 = vmatpush1.msra.mxu0 0.0
  %1771 = vmatprep.subr.mxu0 0.0
  %1772 = vmatpush1.msra.mxu0 0.0
  %1773 = vmatprep.subr.mxu0 0.0
  %1774 = vmatpush1.msra.mxu0 0.0
  %1775 = vmatprep.subr.mxu0 0.0
  %1776 = vmatpush1.msra.mxu0 0.0
  %1777 = vmatprep.subr.mxu0 0.0
  %1778 = vmatpush1.msra.mxu0 0.0
  %1779 = vmatprep.subr.mxu0 0.0
  %1780 = vmatpush1.msra.mxu0 0.0
  %1781 = vmatprep.subr.mxu0 0.0
  %1782 = vmatpush1.msra.mxu0 0.0
  %1783 = vmatprep.subr.mxu0 0.0
  %1784 = vmatpush1.msra.mxu0 0.0
  %1785 = vmatprep.subr.mxu0 0.0
  %1786 = vmatpush1.msra.mxu0 0.0
  %1787 = vmatprep.subr.mxu0 0.0
  %1788 = vmatpush1.msra.mxu0 0.0
  %1789 = vmatprep.subr.mxu0 0.0
  %1790 = vmatpush1.msra.mxu0 0.0
  %1791 = vmatprep.subr.mxu0 0.0
  %1792 = vmatpush1.msra.mxu0 0.0
  %1793 = vmatprep.subr.mxu0 0.0
  %1794 = vmatpush1.msra.mxu0 0.0
  %1795 = vmatprep.subr.mxu0 0.0
  %1796 = vmatpush1.msra.mxu0 0.0
  %1797 = vmatprep.subr.mxu0 0.0
  %1798 = vmatpush1.msra.mxu0 0.0
  %1799 = vmatprep.subr.mxu0 0.0
  %1800 = vmatpush1.msra.mxu0 0.0
  %1801 = vmatprep.subr.mxu0 0.0
  %1802 = vmatpush1.msra.mxu0 0.0
  %1803 = vmatprep.subr.mxu0 0.0
  %1804 = vmatpush1.msra.mxu0 0.0
  %1805 = vmatprep.subr.mxu0 0.0
  %1806 = vmatpush1.msra.mxu0 0.0
  %1807 = vmatprep.subr.mxu0 0.0
  %1808 = vmatpush1.msra.mxu0 0.0
  %1809 = vmatprep.subr.mxu0 0.0
  %1810 = vmatpush1.msra.mxu0 0.0
  %1811 = vmatprep.subr.mxu0 0.0
  %1812 = vmatpush1.msra.mxu0 0.0
  %1813 = vmatprep.subr.mxu0 0.0
  %1814 = vmatpush1.msra.mxu0 0.0
  %1815 = vmatprep.subr.mxu0 0.0
  %1816 = vmatpush1.msra.mxu0 0.0
  %1817 = vmatprep.subr.mxu0 0.0
  %1818 = vmatpush1.msra.mxu0 0.0
  %1819 = vmatprep.subr.mxu0 0.0
  %1820 = vmatpush1.msra.mxu0 0.0
  %1821 = vmatprep.subr.mxu0 0.0
  %1822 = vmatpush1.msra.mxu0 0.0
  %1823 = vmatprep.subr.mxu0 0.0
  %1824 = vmatpush1.msra.mxu0 0.0
  %1825 = vmatprep.subr.mxu0 0.0
  %1826 = vmatpush1.msra.mxu0 0.0
  %1827 = vmatprep.mubr.f32.mxu0 0.0
  %1828 = vmatmul.mubr.f32.gmra.mrb[0].mxu0 %v1755
  %v1829 = vpop.f32.mrb[0].mxu0
  %v1830 = vadd.f32 0.0, %v1829
  %v1831 = vpop.f32.mrb[0].mxu0
  %1832 = vmatprep.mubr.f32.mxu0 0.0
  %1833 = vmatmul.mubr.f32.gmra.mrb[0].mxu0 %v1758
  %v1834 = vpop.f32.mrb[0].mxu0
  %v1835 = vadd.f32 0.0, %v1834
  %v1836 = vpop.f32.mrb[0].mxu0
  %1837 = vdwg.mxu0
  %v1838 = vmul.f32 %v1830, %v1608
  %v1839 = vmul.f32 %v1835, %v1613
  %v1840 = vsel %vm1220, %v1838, 0.0
  %v1841 = vsel %vm1220, %v1839, 0.0
  %v1842 = vadd.f32 %v1840, %v1841
  %v1843 = vrot.slane %v1842, 4
  %v1844 = vadd.f32 %v1842, %v1843
  %v1845 = vrot.slane %v1844, 2
  %v1846 = vadd.f32 %v1844, %v1845
  %v1847 = vrot.slane %v1846, 1
  %v1848 = vadd.f32 %v1846, %v1847
  %1850 = vset.pattern.permute.xlu0 0
  %1851 = vperm.xlu0 %1850, %v1199
  %v1852 = vpop.permute.xlu0 %1851
  %v1854 = vmul.f32 %v1852, %v1848
  %v1855 = vadd.f32 %v1854, 0.0
  %v1856 = vlaneseq
  %v1857 = vshrl.u32 %v1856, 7
  %v1858 = vsub.s32 1, %v1857
  %v1859 = vrot.slane %v1411, %v1858
  %v1860 = vmul.f32 %v1859, %v1518
  %v1861 = vmul.f32 %v1859, %v1523
  %v1863 = vsel %vm1220, %v1860, 0
  %v1866 = vsel %vm1220, %v1861, 0
  %1868 = vmatprep.subr.mxu0 0.0
  %1869 = vmatpush1.msra.mxu0 %v1190
  %1870 = vmatprep.subr.mxu0 0.0
  %1871 = vmatpush1.msra.mxu0 %v1191
  %1872 = vmatprep.subr.mxu0 0.0
  %1873 = vmatpush1.msra.mxu0 %v1192
  %1874 = vmatprep.subr.mxu0 0.0
  %1875 = vmatpush1.msra.mxu0 %v1193
  %1876 = vmatprep.subr.mxu0 0.0
  %1877 = vmatpush1.msra.mxu0 %v1194
  %1878 = vmatprep.subr.mxu0 0.0
  %1879 = vmatpush1.msra.mxu0 %v1195
  %1880 = vmatprep.subr.mxu0 0.0
  %1881 = vmatpush1.msra.mxu0 %v1196
  %1882 = vmatprep.subr.mxu0 0.0
  %1883 = vmatpush1.msra.mxu0 %v1197
  %1884 = vmatprep.subr.mxu0 0.0
  %1885 = vmatpush1.msra.mxu0 0.0
  %1886 = vmatprep.subr.mxu0 0.0
  %1887 = vmatpush1.msra.mxu0 0.0
  %1888 = vmatprep.subr.mxu0 0.0
  %1889 = vmatpush1.msra.mxu0 0.0
  %1890 = vmatprep.subr.mxu0 0.0
  %1891 = vmatpush1.msra.mxu0 0.0
  %1892 = vmatprep.subr.mxu0 0.0
  %1893 = vmatpush1.msra.mxu0 0.0
  %1894 = vmatprep.subr.mxu0 0.0
  %1895 = vmatpush1.msra.mxu0 0.0
  %1896 = vmatprep.subr.mxu0 0.0
  %1897 = vmatpush1.msra.mxu0 0.0
  %1898 = vmatprep.subr.mxu0 0.0
  %1899 = vmatpush1.msra.mxu0 0.0
  %1900 = vmatprep.subr.mxu0 0.0
  %1901 = vmatpush1.msra.mxu0 0.0
  %1902 = vmatprep.subr.mxu0 0.0
  %1903 = vmatpush1.msra.mxu0 0.0
  %1904 = vmatprep.subr.mxu0 0.0
  %1905 = vmatpush1.msra.mxu0 0.0
  %1906 = vmatprep.subr.mxu0 0.0
  %1907 = vmatpush1.msra.mxu0 0.0
  %1908 = vmatprep.subr.mxu0 0.0
  %1909 = vmatpush1.msra.mxu0 0.0
  %1910 = vmatprep.subr.mxu0 0.0
  %1911 = vmatpush1.msra.mxu0 0.0
  %1912 = vmatprep.subr.mxu0 0.0
  %1913 = vmatpush1.msra.mxu0 0.0
  %1914 = vmatprep.subr.mxu0 0.0
  %1915 = vmatpush1.msra.mxu0 0.0
  %1916 = vmatprep.subr.mxu0 0.0
  %1917 = vmatpush1.msra.mxu0 0.0
  %1918 = vmatprep.subr.mxu0 0.0
  %1919 = vmatpush1.msra.mxu0 0.0
  %1920 = vmatprep.subr.mxu0 0.0
  %1921 = vmatpush1.msra.mxu0 0.0
  %1922 = vmatprep.subr.mxu0 0.0
  %1923 = vmatpush1.msra.mxu0 0.0
  %1924 = vmatprep.subr.mxu0 0.0
  %1925 = vmatpush1.msra.mxu0 0.0
  %1926 = vmatprep.subr.mxu0 0.0
  %1927 = vmatpush1.msra.mxu0 0.0
  %1928 = vmatprep.subr.mxu0 0.0
  %1929 = vmatpush1.msra.mxu0 0.0
  %1930 = vmatprep.subr.mxu0 0.0
  %1931 = vmatpush1.msra.mxu0 0.0
  %1932 = vmatprep.mubr.f32.mxu0 0.0
  %1933 = vmatmul.mubr.f32.gmra.mrb[0].mxu0 %v1863
  %v1934 = vpop.f32.mrb[0].mxu0
  %v1935 = vadd.f32 0.0, %v1934
  %v1936 = vpop.f32.mrb[0].mxu0
  %1937 = vmatprep.mubr.f32.mxu0 0.0
  %1938 = vmatmul.mubr.f32.gmra.mrb[0].mxu0 %v1866
  %v1939 = vpop.f32.mrb[0].mxu0
  %v1940 = vadd.f32 0.0, %v1939
  %v1941 = vpop.f32.mrb[0].mxu0
  %1942 = vdwg.mxu0
  %v1943 = vmul.f32 %v1935, 0.25
  %v1944 = vmul.f32 %v1940, 0.25
  %1946 = vset.pattern.permute.xlu0 0
  %1947 = vperm.xlu0 %1946, %v1202
  %v1948 = vpop.permute.xlu0 %1947
  %1951 = vset.pattern.permute.xlu0 0
  %1952 = vperm.xlu0 %1951, %v1203
  %v1953 = vpop.permute.xlu0 %1952
  %v1955 = vadd.f32 %v1943, %v1948
  %v1956 = vadd.f32 %v1944, %v1953
  %v1957 = vsel %vm187, %v1955, -inf
  %v1958 = vsel %vm187, %v1956, -inf
  %v1959 = vmax.f32 %v1957, %v1958
  %v1960 = vrot.slane %v1959, 4
  %v1961 = vmax.f32 %v1959, %v1960
  %v1962 = vrot.slane %v1961, 2
  %v1963 = vmax.f32 %v1961, %v1962
  %v1964 = vrot.slane %v1963, 1
  %v1965 = vmax.f32 %v1963, %v1964
  %v1966 = vsub.f32 %v1955, %v1965
  %v1967 = vsub.f32 %v1956, %v1965
  %v1968 = vmul.f32 %v1966, 1.442695
  %v1969 = vpow.pop %v1968
  %v1970 = vmul.f32 %v1967, 1.442695
  %v1971 = vpow.pop %v1970
  %v1972 = vsel %vm187, %v1969, 0.0
  %v1973 = vsel %vm187, %v1971, 0.0
  %v1974 = vadd.f32 %v1972, %v1973
  %v1975 = vrot.slane %v1974, 4
  %v1976 = vadd.f32 %v1974, %v1975
  %v1977 = vrot.slane %v1976, 2
  %v1978 = vadd.f32 %v1976, %v1977
  %v1979 = vrot.slane %v1978, 1
  %v1980 = vadd.f32 %v1978, %v1979
  %v1981 = vrcp.pop %v1980
  %v1982 = vmul.f32 %v1969, %v1981
  %v1983 = vmul.f32 %v1971, %v1981
  %v1985 = vsel %vm187, %v1982, 0
  %v1988 = vsel %vm187, %v1983, 0
  %1990 = vmatprep.subr.mxu0 0.0
  %1991 = vmatpush1.msra.mxu0 %v1761
  %1992 = vmatprep.subr.mxu0 0.0
  %1993 = vmatpush1.msra.mxu0 0.0
  %1994 = vmatprep.subr.mxu0 0.0
  %1995 = vmatpush1.msra.mxu0 0.0
  %1996 = vmatprep.subr.mxu0 0.0
  %1997 = vmatpush1.msra.mxu0 0.0
  %1998 = vmatprep.subr.mxu0 0.0
  %1999 = vmatpush1.msra.mxu0 0.0
  %2000 = vmatprep.subr.mxu0 0.0
  %2001 = vmatpush1.msra.mxu0 0.0
  %2002 = vmatprep.subr.mxu0 0.0
  %2003 = vmatpush1.msra.mxu0 0.0
  %2004 = vmatprep.subr.mxu0 0.0
  %2005 = vmatpush1.msra.mxu0 0.0
  %2006 = vmatprep.subr.mxu0 0.0
  %2007 = vmatpush1.msra.mxu0 0.0
  %2008 = vmatprep.subr.mxu0 0.0
  %2009 = vmatpush1.msra.mxu0 0.0
  %2010 = vmatprep.subr.mxu0 0.0
  %2011 = vmatpush1.msra.mxu0 0.0
  %2012 = vmatprep.subr.mxu0 0.0
  %2013 = vmatpush1.msra.mxu0 0.0
  %2014 = vmatprep.subr.mxu0 0.0
  %2015 = vmatpush1.msra.mxu0 0.0
  %2016 = vmatprep.subr.mxu0 0.0
  %2017 = vmatpush1.msra.mxu0 0.0
  %2018 = vmatprep.subr.mxu0 0.0
  %2019 = vmatpush1.msra.mxu0 0.0
  %2020 = vmatprep.subr.mxu0 0.0
  %2021 = vmatpush1.msra.mxu0 0.0
  %2022 = vmatprep.subr.mxu0 0.0
  %2023 = vmatpush1.msra.mxu0 0.0
  %2024 = vmatprep.subr.mxu0 0.0
  %2025 = vmatpush1.msra.mxu0 0.0
  %2026 = vmatprep.subr.mxu0 0.0
  %2027 = vmatpush1.msra.mxu0 0.0
  %2028 = vmatprep.subr.mxu0 0.0
  %2029 = vmatpush1.msra.mxu0 0.0
  %2030 = vmatprep.subr.mxu0 0.0
  %2031 = vmatpush1.msra.mxu0 0.0
  %2032 = vmatprep.subr.mxu0 0.0
  %2033 = vmatpush1.msra.mxu0 0.0
  %2034 = vmatprep.subr.mxu0 0.0
  %2035 = vmatpush1.msra.mxu0 0.0
  %2036 = vmatprep.subr.mxu0 0.0
  %2037 = vmatpush1.msra.mxu0 0.0
  %2038 = vmatprep.subr.mxu0 0.0
  %2039 = vmatpush1.msra.mxu0 0.0
  %2040 = vmatprep.subr.mxu0 0.0
  %2041 = vmatpush1.msra.mxu0 0.0
  %2042 = vmatprep.subr.mxu0 0.0
  %2043 = vmatpush1.msra.mxu0 0.0
  %2044 = vmatprep.subr.mxu0 0.0
  %2045 = vmatpush1.msra.mxu0 0.0
  %2046 = vmatprep.subr.mxu0 0.0
  %2047 = vmatpush1.msra.mxu0 0.0
  %2048 = vmatprep.subr.mxu0 0.0
  %2049 = vmatpush1.msra.mxu0 0.0
  %2050 = vmatprep.subr.mxu0 0.0
  %2051 = vmatpush1.msra.mxu0 0.0
  %2052 = vmatprep.subr.mxu0 0.0
  %2053 = vmatpush1.msra.mxu0 0.0
  %2054 = vmatprep.mubr.f32.mxu0 0.0
  %2055 = vmatmul.mubr.f32.gmra.mrb[0].mxu0 %v1985
  %v2056 = vpop.f32.mrb[0].mxu0
  %v2057 = vadd.f32 0.0, %v2056
  %v2058 = vpop.f32.mrb[0].mxu0
  %2059 = vmatprep.mubr.f32.mxu0 0.0
  %2060 = vmatmul.mubr.f32.gmra.mrb[0].mxu0 %v1988
  %v2061 = vpop.f32.mrb[0].mxu0
  %v2062 = vadd.f32 0.0, %v2061
  %v2063 = vpop.f32.mrb[0].mxu0
  %2064 = vdwg.mxu0
  %v2065 = vmul.f32 %v2057, %v1618
  %v2066 = vmul.f32 %v2062, %v1623
  %v2067 = vsel %vm1220, %v2065, 0.0
  %v2068 = vsel %vm1220, %v2066, 0.0
  %v2069 = vadd.f32 %v2067, %v2068
  %v2070 = vrot.slane %v2069, 4
  %v2071 = vadd.f32 %v2069, %v2070
  %v2072 = vrot.slane %v2071, 2
  %v2073 = vadd.f32 %v2071, %v2072
  %v2074 = vrot.slane %v2073, 1
  %v2075 = vadd.f32 %v2073, %v2074
  %2076 = vset.pattern.permute.xlu0 1
  %2077 = vperm.xlu0 %2076, %v1199
  %v2078 = vpop.permute.xlu0 %2077
  %v2080 = vmul.f32 %v2078, %v2075
  %v2081 = vadd.f32 %v1855, %v2080
  %v2082 = vld [vmem:[%s59] sm:$0xff]
  %v2083 = vld [vmem:[%s59 + $0x8] sm:$0xff]
  %v2084 = vld [vmem:[%s59 + $0x10] sm:$0xff]
  %v2085 = vld [vmem:[%s59 + $0x18] sm:$0xff]
  %v2086 = vld [vmem:[%s59 + $0x20] sm:$0xff]
  %v2087 = vld [vmem:[%s59 + $0x28] sm:$0xff]
  %v2088 = vld [vmem:[%s59 + $0x30] sm:$0xff]
  %v2089 = vld [vmem:[%s59 + $0x38] sm:$0xff]
  %v2090 = vld [vmem:[%s61] sm:$0x1]
  %v2092 = vlaneseq
  %v2093 = vshrl.u32 %v2092, 7
  %v2094 = vsub.s32 0, %v2093
  %v2095 = vrot.slane %v2090, %v2094
  %v2098 = vsel %vm1220, %v2081, 0
  %2100 = vmatprep.subr.mxu0 0.0
  %2101 = vmatpush1.msra.mxu0 %v2082
  %2102 = vmatprep.subr.mxu0 0.0
  %2103 = vmatpush1.msra.mxu0 %v2083
  %2104 = vmatprep.subr.mxu0 0.0
  %2105 = vmatpush1.msra.mxu0 %v2084
  %2106 = vmatprep.subr.mxu0 0.0
  %2107 = vmatpush1.msra.mxu0 %v2085
  %2108 = vmatprep.subr.mxu0 0.0
  %2109 = vmatpush1.msra.mxu0 %v2086
  %2110 = vmatprep.subr.mxu0 0.0
  %2111 = vmatpush1.msra.mxu0 %v2087
  %2112 = vmatprep.subr.mxu0 0.0
  %2113 = vmatpush1.msra.mxu0 %v2088
  %2114 = vmatprep.subr.mxu0 0.0
  %2115 = vmatpush1.msra.mxu0 %v2089
  %2116 = vmatprep.subr.mxu0 0.0
  %2117 = vmatpush1.msra.mxu0 0.0
  %2118 = vmatprep.subr.mxu0 0.0
  %2119 = vmatpush1.msra.mxu0 0.0
  %2120 = vmatprep.subr.mxu0 0.0
  %2121 = vmatpush1.msra.mxu0 0.0
  %2122 = vmatprep.subr.mxu0 0.0
  %2123 = vmatpush1.msra.mxu0 0.0
  %2124 = vmatprep.subr.mxu0 0.0
  %2125 = vmatpush1.msra.mxu0 0.0
  %2126 = vmatprep.subr.mxu0 0.0
  %2127 = vmatpush1.msra.mxu0 0.0
  %2128 = vmatprep.subr.mxu0 0.0
  %2129 = vmatpush1.msra.mxu0 0.0
  %2130 = vmatprep.subr.mxu0 0.0
  %2131 = vmatpush1.msra.mxu0 0.0
  %2132 = vmatprep.subr.mxu0 0.0
  %2133 = vmatpush1.msra.mxu0 0.0
  %2134 = vmatprep.subr.mxu0 0.0
  %2135 = vmatpush1.msra.mxu0 0.0
  %2136 = vmatprep.subr.mxu0 0.0
  %2137 = vmatpush1.msra.mxu0 0.0
  %2138 = vmatprep.subr.mxu0 0.0
  %2139 = vmatpush1.msra.mxu0 0.0
  %2140 = vmatprep.subr.mxu0 0.0
  %2141 = vmatpush1.msra.mxu0 0.0
  %2142 = vmatprep.subr.mxu0 0.0
  %2143 = vmatpush1.msra.mxu0 0.0
  %2144 = vmatprep.subr.mxu0 0.0
  %2145 = vmatpush1.msra.mxu0 0.0
  %2146 = vmatprep.subr.mxu0 0.0
  %2147 = vmatpush1.msra.mxu0 0.0
  %2148 = vmatprep.subr.mxu0 0.0
  %2149 = vmatpush1.msra.mxu0 0.0
  %2150 = vmatprep.subr.mxu0 0.0
  %2151 = vmatpush1.msra.mxu0 0.0
  %2152 = vmatprep.subr.mxu0 0.0
  %2153 = vmatpush1.msra.mxu0 0.0
  %2154 = vmatprep.subr.mxu0 0.0
  %2155 = vmatpush1.msra.mxu0 0.0
  %2156 = vmatprep.subr.mxu0 0.0
  %2157 = vmatpush1.msra.mxu0 0.0
  %2158 = vmatprep.subr.mxu0 0.0
  %2159 = vmatpush1.msra.mxu0 0.0
  %2160 = vmatprep.subr.mxu0 0.0
  %2161 = vmatpush1.msra.mxu0 0.0
  %2162 = vmatprep.subr.mxu0 0.0
  %2163 = vmatpush1.msra.mxu0 0.0
  %2164 = vmatprep.mubr.f32.mxu0 0.0
  %2165 = vmatmul.mubr.f32.gmra.mrb[0].mxu0 %v2098
  %v2166 = vpop.f32.mrb[0].mxu0
  %v2167 = vadd.f32 %v2095, %v2166
  %v2168 = vpop.f32.mrb[0].mxu0
  %2169 = vdwg.mxu0
  %v2170 = vadd.f32 %v1325, %v2167
  %v2171 = vld [vmem:[%s67] sm:$0x1]
  %v2172 = vld [vmem:[%s69] sm:$0x1]
  %v2173 = vsel %vm1297, %v2170, 0.0
  %2174 = vadd.xlane.f32.xlu0 %v2173
  %v2175 = vpop.xlane.xlu0 %2174
  %v2176 = vmul.f32 %v2175, %v1301
  %v2177 = vsub.f32 %v2170, %v2176
  %v2178 = vmul.f32 %v2177, %v2177
  %v2179 = vsel %vm1297, %v2178, 0.0
  %2180 = vadd.xlane.f32.xlu0 %v2179
  %v2181 = vpop.xlane.xlu0 %2180
  %v2182 = vmul.f32 %v2181, %v1301
  %v2183 = vadd.f32 %v2182, 1e-05
  %v2184 = vrsqrt.pop %v2183
  %v2185 = vmul.f32 %v2177, %v2184
  %v2187 = vlaneseq
  %v2188 = vshrl.u32 %v2187, 7
  %v2189 = vsub.s32 0, %v2188
  %v2190 = vrot.slane %v2171, %v2189
  %v2192 = vmul.f32 %v2185, %v2190
  %v2194 = vlaneseq
  %v2195 = vshrl.u32 %v2194, 7
  %v2196 = vsub.s32 0, %v2195
  %v2197 = vrot.slane %v2172, %v2196
  %v2199 = vadd.f32 %v2192, %v2197
  %v2200 = vld [vmem:[%s75] sm:$0xff]
  %v2201 = vld [vmem:[%s75 + $0x8] sm:$0xff]
  %v2202 = vld [vmem:[%s75 + $0x10] sm:$0xff]
  %v2203 = vld [vmem:[%s75 + $0x18] sm:$0xff]
  %v2204 = vld [vmem:[%s75 + $0x20] sm:$0xff]
  %v2205 = vld [vmem:[%s75 + $0x28] sm:$0xff]
  %v2206 = vld [vmem:[%s75 + $0x30] sm:$0xff]
  %v2207 = vld [vmem:[%s75 + $0x38] sm:$0xff]
  %v2208 = vld [vmem:[%s77] sm:$0x1]
  %v2210 = vlaneseq
  %v2211 = vshrl.u32 %v2210, 7
  %v2212 = vsub.s32 0, %v2211
  %v2213 = vrot.slane %v2208, %v2212
  %v2216 = vsel %vm1220, %v2199, 0
  %2218 = vmatprep.subr.mxu0 0.0
  %2219 = vmatpush1.msra.mxu0 %v2200
  %2220 = vmatprep.subr.mxu0 0.0
  %2221 = vmatpush1.msra.mxu0 %v2201
  %2222 = vmatprep.subr.mxu0 0.0
  %2223 = vmatpush1.msra.mxu0 %v2202
  %2224 = vmatprep.subr.mxu0 0.0
  %2225 = vmatpush1.msra.mxu0 %v2203
  %2226 = vmatprep.subr.mxu0 0.0
  %2227 = vmatpush1.msra.mxu0 %v2204
  %2228 = vmatprep.subr.mxu0 0.0
  %2229 = vmatpush1.msra.mxu0 %v2205
  %2230 = vmatprep.subr.mxu0 0.0
  %2231 = vmatpush1.msra.mxu0 %v2206
  %2232 = vmatprep.subr.mxu0 0.0
  %2233 = vmatpush1.msra.mxu0 %v2207
  %2234 = vmatprep.subr.mxu0 0.0
  %2235 = vmatpush1.msra.mxu0 0.0
  %2236 = vmatprep.subr.mxu0 0.0
  %2237 = vmatpush1.msra.mxu0 0.0
  %2238 = vmatprep.subr.mxu0 0.0
  %2239 = vmatpush1.msra.mxu0 0.0
  %2240 = vmatprep.subr.mxu0 0.0
  %2241 = vmatpush1.msra.mxu0 0.0
  %2242 = vmatprep.subr.mxu0 0.0
  %2243 = vmatpush1.msra.mxu0 0.0
  %2244 = vmatprep.subr.mxu0 0.0
  %2245 = vmatpush1.msra.mxu0 0.0
  %2246 = vmatprep.subr.mxu0 0.0
  %2247 = vmatpush1.msra.mxu0 0.0
  %2248 = vmatprep.subr.mxu0 0.0
  %2249 = vmatpush1.msra.mxu0 0.0
  %2250 = vmatprep.subr.mxu0 0.0
  %2251 = vmatpush1.msra.mxu0 0.0
  %2252 = vmatprep.subr.mxu0 0.0
  %2253 = vmatpush1.msra.mxu0 0.0
  %2254 = vmatprep.subr.mxu0 0.0
  %2255 = vmatpush1.msra.mxu0 0.0
  %2256 = vmatprep.subr.mxu0 0.0
  %2257 = vmatpush1.msra.mxu0 0.0
  %2258 = vmatprep.subr.mxu0 0.0
  %2259 = vmatpush1.msra.mxu0 0.0
  %2260 = vmatprep.subr.mxu0 0.0
  %2261 = vmatpush1.msra.mxu0 0.0
  %2262 = vmatprep.subr.mxu0 0.0
  %2263 = vmatpush1.msra.mxu0 0.0
  %2264 = vmatprep.subr.mxu0 0.0
  %2265 = vmatpush1.msra.mxu0 0.0
  %2266 = vmatprep.subr.mxu0 0.0
  %2267 = vmatpush1.msra.mxu0 0.0
  %2268 = vmatprep.subr.mxu0 0.0
  %2269 = vmatpush1.msra.mxu0 0.0
  %2270 = vmatprep.subr.mxu0 0.0
  %2271 = vmatpush1.msra.mxu0 0.0
  %2272 = vmatprep.subr.mxu0 0.0
  %2273 = vmatpush1.msra.mxu0 0.0
  %2274 = vmatprep.subr.mxu0 0.0
  %2275 = vmatpush1.msra.mxu0 0.0
  %2276 = vmatprep.subr.mxu0 0.0
  %2277 = vmatpush1.msra.mxu0 0.0
  %2278 = vmatprep.subr.mxu0 0.0
  %2279 = vmatpush1.msra.mxu0 0.0
  %2280 = vmatprep.subr.mxu0 0.0
  %2281 = vmatpush1.msra.mxu0 0.0
  %2282 = vmatprep.mubr.f32.mxu0 0.0
  %2283 = vmatmul.mubr.f32.gmra.mrb[0].mxu0 %v2216
  %v2284 = vpop.f32.mrb[0].mxu0
  %v2285 = vadd.f32 %v2213, %v2284
  %v2286 = vpop.f32.mrb[0].mxu0
  %2287 = vdwg.mxu0
  %v2288 = vmax.f32 %v2285, 0.0
  %v2289 = vld [vmem:[%s79] sm:$0xff]
  %v2290 = vld [vmem:[%s79 + $0x8] sm:$0xff]
  %v2291 = vld [vmem:[%s79 + $0x10] sm:$0xff]
  %v2292 = vld [vmem:[%s79 + $0x18] sm:$0xff]
  %v2293 = vld [vmem:[%s81] sm:$0x1]
  %v2295 = vlaneseq
  %v2296 = vshrl.u32 %v2295, 7
  %v2297 = vsub.s32 0, %v2296
  %v2298 = vrot.slane %v2293, %v2297
  %v2301 = vsel %vm371, %v2288, 0
  %2303 = vmatprep.subr.mxu0 0.0
  %2304 = vmatpush1.msra.mxu0 %v2289
  %2305 = vmatprep.subr.mxu0 0.0
  %2306 = vmatpush1.msra.mxu0 %v2290
  %2307 = vmatprep.subr.mxu0 0.0
  %2308 = vmatpush1.msra.mxu0 %v2291
  %2309 = vmatprep.subr.mxu0 0.0
  %2310 = vmatpush1.msra.mxu0 %v2292
  %2311 = vmatprep.subr.mxu0 0.0
  %2312 = vmatpush1.msra.mxu0 0.0
  %2313 = vmatprep.subr.mxu0 0.0
  %2314 = vmatpush1.msra.mxu0 0.0
  %2315 = vmatprep.subr.mxu0 0.0
  %2316 = vmatpush1.msra.mxu0 0.0
  %2317 = vmatprep.subr.mxu0 0.0
  %2318 = vmatpush1.msra.mxu0 0.0
  %2319 = vmatprep.subr.mxu0 0.0
  %2320 = vmatpush1.msra.mxu0 0.0
  %2321 = vmatprep.subr.mxu0 0.0
  %2322 = vmatpush1.msra.mxu0 0.0
  %2323 = vmatprep.subr.mxu0 0.0
  %2324 = vmatpush1.msra.mxu0 0.0
  %2325 = vmatprep.subr.mxu0 0.0
  %2326 = vmatpush1.msra.mxu0 0.0
  %2327 = vmatprep.subr.mxu0 0.0
  %2328 = vmatpush1.msra.mxu0 0.0
  %2329 = vmatprep.subr.mxu0 0.0
  %2330 = vmatpush1.msra.mxu0 0.0
  %2331 = vmatprep.subr.mxu0 0.0
  %2332 = vmatpush1.msra.mxu0 0.0
  %2333 = vmatprep.subr.mxu0 0.0
  %2334 = vmatpush1.msra.mxu0 0.0
  %2335 = vmatprep.subr.mxu0 0.0
  %2336 = vmatpush1.msra.mxu0 0.0
  %2337 = vmatprep.subr.mxu0 0.0
  %2338 = vmatpush1.msra.mxu0 0.0
  %2339 = vmatprep.subr.mxu0 0.0
  %2340 = vmatpush1.msra.mxu0 0.0
  %2341 = vmatprep.subr.mxu0 0.0
  %2342 = vmatpush1.msra.mxu0 0.0
  %2343 = vmatprep.subr.mxu0 0.0
  %2344 = vmatpush1.msra.mxu0 0.0
  %2345 = vmatprep.subr.mxu0 0.0
  %2346 = vmatpush1.msra.mxu0 0.0
  %2347 = vmatprep.subr.mxu0 0.0
  %2348 = vmatpush1.msra.mxu0 0.0
  %2349 = vmatprep.subr.mxu0 0.0
  %2350 = vmatpush1.msra.mxu0 0.0
  %2351 = vmatprep.subr.mxu0 0.0
  %2352 = vmatpush1.msra.mxu0 0.0
  %2353 = vmatprep.subr.mxu0 0.0
  %2354 = vmatpush1.msra.mxu0 0.0
  %2355 = vmatprep.subr.mxu0 0.0
  %2356 = vmatpush1.msra.mxu0 0.0
  %2357 = vmatprep.subr.mxu0 0.0
  %2358 = vmatpush1.msra.mxu0 0.0
  %2359 = vmatprep.subr.mxu0 0.0
  %2360 = vmatpush1.msra.mxu0 0.0
  %2361 = vmatprep.subr.mxu0 0.0
  %2362 = vmatpush1.msra.mxu0 0.0
  %2363 = vmatprep.subr.mxu0 0.0
  %2364 = vmatpush1.msra.mxu0 0.0
  %2365 = vmatprep.subr.mxu0 0.0
  %2366 = vmatpush1.msra.mxu0 0.0
  %2367 = vmatprep.mubr.f32.mxu0 0.0
  %2368 = vmatmul.mubr.f32.gmra.mrb[0].mxu0 %v2301
  %v2369 = vpop.f32.mrb[0].mxu0
  %v2370 = vadd.f32 %v2298, %v2369
  %v2371 = vpop.f32.mrb[0].mxu0
  %2372 = vdwg.mxu0
  %v2373 = vadd.f32 %v2199, %v2370
  %v2374 = vld [vmem:[%s71] sm:$0x1]
  %v2375 = vld [vmem:[%s73] sm:$0x1]
  %v2376 = vsel %vm1297, %v2373, 0.0
  %2377 = vadd.xlane.f32.xlu0 %v2376
  %v2378 = vpop.xlane.xlu0 %2377
  %v2379 = vmul.f32 %v2378, %v1301
  %v2380 = vsub.f32 %v2373, %v2379
  %v2381 = vmul.f32 %v2380, %v2380
  %v2382 = vsel %vm1297, %v2381, 0.0
  %2383 = vadd.xlane.f32.xlu0 %v2382
  %v2384 = vpop.xlane.xlu0 %2383
  %v2385 = vmul.f32 %v2384, %v1301
  %v2386 = vadd.f32 %v2385, 1e-05
  %v2387 = vrsqrt.pop %v2386
  %v2388 = vmul.f32 %v2380, %v2387
  %v2390 = vlaneseq
  %v2391 = vshrl.u32 %v2390, 7
  %v2392 = vsub.s32 0, %v2391
  %v2393 = vrot.slane %v2374, %v2392
  %v2395 = vmul.f32 %v2388, %v2393
  %v2397 = vlaneseq
  %v2398 = vshrl.u32 %v2397, 7
  %v2399 = vsub.s32 0, %v2398
  %v2400 = vrot.slane %v2375, %v2399
  %v2402 = vadd.f32 %v2395, %v2400
  %s2403 = scalar_lea.vmem %s43, 64
  %v2404 = vld [vmem:[%s2403] sm:$0xff]
  %v2405 = vld [vmem:[%s2403 + $0x8] sm:$0xff]
  %v2406 = vld [vmem:[%s2403 + $0x10] sm:$0xff]
  %v2407 = vld [vmem:[%s2403 + $0x18] sm:$0xff]
  %v2408 = vld [vmem:[%s2403 + $0x20] sm:$0xff]
  %v2409 = vld [vmem:[%s2403 + $0x28] sm:$0xff]
  %v2410 = vld [vmem:[%s2403 + $0x30] sm:$0xff]
  %v2411 = vld [vmem:[%s2403 + $0x38] sm:$0xff]
  %s2412 = scalar_lea.vmem %s45, 1
  %v2413 = vld [vmem:[%s2412] sm:$0x1]
  %v2415 = vlaneseq
  %v2416 = vshrl.u32 %v2415, 7
  %v2417 = vsub.s32 0, %v2416
  %v2418 = vrot.slane %v2413, %v2417
  %v2421 = vsel %vm1220, %v2402, 0
  %2423 = vmatprep.subr.mxu0 0.0
  %2424 = vmatpush1.msra.mxu0 %v2404
  %2425 = vmatprep.subr.mxu0 0.0
  %2426 = vmatpush1.msra.mxu0 %v2405
  %2427 = vmatprep.subr.mxu0 0.0
  %2428 = vmatpush1.msra.mxu0 %v2406
  %2429 = vmatprep.subr.mxu0 0.0
  %2430 = vmatpush1.msra.mxu0 %v2407
  %2431 = vmatprep.subr.mxu0 0.0
  %2432 = vmatpush1.msra.mxu0 %v2408
  %2433 = vmatprep.subr.mxu0 0.0
  %2434 = vmatpush1.msra.mxu0 %v2409
  %2435 = vmatprep.subr.mxu0 0.0
  %2436 = vmatpush1.msra.mxu0 %v2410
  %2437 = vmatprep.subr.mxu0 0.0
  %2438 = vmatpush1.msra.mxu0 %v2411
  %2439 = vmatprep.subr.mxu0 0.0
  %2440 = vmatpush1.msra.mxu0 0.0
  %2441 = vmatprep.subr.mxu0 0.0
  %2442 = vmatpush1.msra.mxu0 0.0
  %2443 = vmatprep.subr.mxu0 0.0
  %2444 = vmatpush1.msra.mxu0 0.0
  %2445 = vmatprep.subr.mxu0 0.0
  %2446 = vmatpush1.msra.mxu0 0.0
  %2447 = vmatprep.subr.mxu0 0.0
  %2448 = vmatpush1.msra.mxu0 0.0
  %2449 = vmatprep.subr.mxu0 0.0
  %2450 = vmatpush1.msra.mxu0 0.0
  %2451 = vmatprep.subr.mxu0 0.0
  %2452 = vmatpush1.msra.mxu0 0.0
  %2453 = vmatprep.subr.mxu0 0.0
  %2454 = vmatpush1.msra.mxu0 0.0
  %2455 = vmatprep.subr.mxu0 0.0
  %2456 = vmatpush1.msra.mxu0 0.0
  %2457 = vmatprep.subr.mxu0 0.0
  %2458 = vmatpush1.msra.mxu0 0.0
  %2459 = vmatprep.subr.mxu0 0.0
  %2460 = vmatpush1.msra.mxu0 0.0
  %2461 = vmatprep.subr.mxu0 0.0
  %2462 = vmatpush1.msra.mxu0 0.0
  %2463 = vmatprep.subr.mxu0 0.0
  %2464 = vmatpush1.msra.mxu0 0.0
  %2465 = vmatprep.subr.mxu0 0.0
  %2466 = vmatpush1.msra.mxu0 0.0
  %2467 = vmatprep.subr.mxu0 0.0
  %2468 = vmatpush1.msra.mxu0 0.0
  %2469 = vmatprep.subr.mxu0 0.0
  %2470 = vmatpush1.msra.mxu0 0.0
  %2471 = vmatprep.subr.mxu0 0.0
  %2472 = vmatpush1.msra.mxu0 0.0
  %2473 = vmatprep.subr.mxu0 0.0
  %2474 = vmatpush1.msra.mxu0 0.0
  %2475 = vmatprep.subr.mxu0 0.0
  %2476 = vmatpush1.msra.mxu0 0.0
  %2477 = vmatprep.subr.mxu0 0.0
  %2478 = vmatpush1.msra.mxu0 0.0
  %2479 = vmatprep.subr.mxu0 0.0
  %2480 = vmatpush1.msra.mxu0 0.0
  %2481 = vmatprep.subr.mxu0 0.0
  %2482 = vmatpush1.msra.mxu0 0.0
  %2483 = vmatprep.subr.mxu0 0.0
  %2484 = vmatpush1.msra.mxu0 0.0
  %2485 = vmatprep.subr.mxu0 0.0
  %2486 = vmatpush1.msra.mxu0 0.0
  %2487 = vmatprep.mubr.f32.mxu0 0.0
  %2488 = vmatmul.mubr.f32.gmra.mrb[0].mxu0 %v2421
  %v2489 = vpop.f32.mrb[0].mxu0
  %v2490 = vadd.f32 %v2418, %v2489
  %v2491 = vpop.f32.mrb[0].mxu0
  %2492 = vdwg.mxu0
  %v2493 = vadd.f32 %v2402, %v2490
  %s2494 = scalar_lea.vmem %s63, 1
  %v2495 = vld [vmem:[%s2494] sm:$0x1]
  %s2496 = scalar_lea.vmem %s65, 1
  %v2497 = vld [vmem:[%s2496] sm:$0x1]
  %v2498 = vsel %vm1297, %v2493, 0.0
  %2499 = vadd.xlane.f32.xlu0 %v2498
  %v2500 = vpop.xlane.xlu0 %2499
  %v2501 = vmul.f32 %v2500, %v1301
  %v2502 = vsub.f32 %v2493, %v2501
  %v2503 = vmul.f32 %v2502, %v2502
  %v2504 = vsel %vm1297, %v2503, 0.0
  %2505 = vadd.xlane.f32.xlu0 %v2504
  %v2506 = vpop.xlane.xlu0 %2505
  %v2507 = vmul.f32 %v2506, %v1301
  %v2508 = vadd.f32 %v2507, 1e-05
  %v2509 = vrsqrt.pop %v2508
  %v2510 = vmul.f32 %v2502, %v2509
  %v2512 = vlaneseq
  %v2513 = vshrl.u32 %v2512, 7
  %v2514 = vsub.s32 0, %v2513
  %v2515 = vrot.slane %v2495, %v2514
  %v2517 = vmul.f32 %v2510, %v2515
  %v2519 = vlaneseq
  %v2520 = vshrl.u32 %v2519, 7
  %v2521 = vsub.s32 0, %v2520
  %v2522 = vrot.slane %v2497, %v2521
  %v2524 = vadd.f32 %v2517, %v2522
  %s2525 = scalar_lea.vmem %s47, 64
  %v2526 = vld [vmem:[%s2525] sm:$0xff]
  %v2527 = vld [vmem:[%s2525 + $0x8] sm:$0xff]
  %v2528 = vld [vmem:[%s2525 + $0x10] sm:$0xff]
  %v2529 = vld [vmem:[%s2525 + $0x18] sm:$0xff]
  %v2530 = vld [vmem:[%s2525 + $0x20] sm:$0xff]
  %v2531 = vld [vmem:[%s2525 + $0x28] sm:$0xff]
  %v2532 = vld [vmem:[%s2525 + $0x30] sm:$0xff]
  %v2533 = vld [vmem:[%s2525 + $0x38] sm:$0xff]
  %s2534 = scalar_lea.vmem %s49, 1
  %v2535 = vld [vmem:[%s2534] sm:$0x1]
  %v2537 = vlaneseq
  %v2538 = vshrl.u32 %v2537, 7
  %v2539 = vsub.s32 0, %v2538
  %v2540 = vrot.slane %v2535, %v2539
  %v2543 = vsel %vm1220, %v2524, 0
  %2545 = vmatprep.subr.mxu0 0.0
  %2546 = vmatpush1.msra.mxu0 %v2526
  %2547 = vmatprep.subr.mxu0 0.0
  %2548 = vmatpush1.msra.mxu0 %v2527
  %2549 = vmatprep.subr.mxu0 0.0
  %2550 = vmatpush1.msra.mxu0 %v2528
  %2551 = vmatprep.subr.mxu0 0.0
  %2552 = vmatpush1.msra.mxu0 %v2529
  %2553 = vmatprep.subr.mxu0 0.0
  %2554 = vmatpush1.msra.mxu0 %v2530
  %2555 = vmatprep.subr.mxu0 0.0
  %2556 = vmatpush1.msra.mxu0 %v2531
  %2557 = vmatprep.subr.mxu0 0.0
  %2558 = vmatpush1.msra.mxu0 %v2532
  %2559 = vmatprep.subr.mxu0 0.0
  %2560 = vmatpush1.msra.mxu0 %v2533
  %2561 = vmatprep.subr.mxu0 0.0
  %2562 = vmatpush1.msra.mxu0 0.0
  %2563 = vmatprep.subr.mxu0 0.0
  %2564 = vmatpush1.msra.mxu0 0.0
  %2565 = vmatprep.subr.mxu0 0.0
  %2566 = vmatpush1.msra.mxu0 0.0
  %2567 = vmatprep.subr.mxu0 0.0
  %2568 = vmatpush1.msra.mxu0 0.0
  %2569 = vmatprep.subr.mxu0 0.0
  %2570 = vmatpush1.msra.mxu0 0.0
  %2571 = vmatprep.subr.mxu0 0.0
  %2572 = vmatpush1.msra.mxu0 0.0
  %2573 = vmatprep.subr.mxu0 0.0
  %2574 = vmatpush1.msra.mxu0 0.0
  %2575 = vmatprep.subr.mxu0 0.0
  %2576 = vmatpush1.msra.mxu0 0.0
  %2577 = vmatprep.subr.mxu0 0.0
  %2578 = vmatpush1.msra.mxu0 0.0
  %2579 = vmatprep.subr.mxu0 0.0
  %2580 = vmatpush1.msra.mxu0 0.0
  %2581 = vmatprep.subr.mxu0 0.0
  %2582 = vmatpush1.msra.mxu0 0.0
  %2583 = vmatprep.subr.mxu0 0.0
  %2584 = vmatpush1.msra.mxu0 0.0
  %2585 = vmatprep.subr.mxu0 0.0
  %2586 = vmatpush1.msra.mxu0 0.0
  %2587 = vmatprep.subr.mxu0 0.0
  %2588 = vmatpush1.msra.mxu0 0.0
  %2589 = vmatprep.subr.mxu0 0.0
  %2590 = vmatpush1.msra.mxu0 0.0
  %2591 = vmatprep.subr.mxu0 0.0
  %2592 = vmatpush1.msra.mxu0 0.0
  %2593 = vmatprep.subr.mxu0 0.0
  %2594 = vmatpush1.msra.mxu0 0.0
  %2595 = vmatprep.subr.mxu0 0.0
  %2596 = vmatpush1.msra.mxu0 0.0
  %2597 = vmatprep.subr.mxu0 0.0
  %2598 = vmatpush1.msra.mxu0 0.0
  %2599 = vmatprep.subr.mxu0 0.0
  %2600 = vmatpush1.msra.mxu0 0.0
  %2601 = vmatprep.subr.mxu0 0.0
  %2602 = vmatpush1.msra.mxu0 0.0
  %2603 = vmatprep.subr.mxu0 0.0
  %2604 = vmatpush1.msra.mxu0 0.0
  %2605 = vmatprep.subr.mxu0 0.0
  %2606 = vmatpush1.msra.mxu0 0.0
  %2607 = vmatprep.subr.mxu0 0.0
  %2608 = vmatpush1.msra.mxu0 0.0
  %2609 = vmatprep.mubr.f32.mxu0 0.0
  %2610 = vmatmul.mubr.f32.gmra.mrb[0].mxu0 %v2543
  %v2611 = vpop.f32.mrb[0].mxu0
  %v2612 = vadd.f32 %v2540, %v2611
  %v2613 = vpop.f32.mrb[0].mxu0
  %2614 = vdwg.mxu0
  %s2615 = scalar_lea.vmem %s51, 64
  %v2616 = vld [vmem:[%s2615] sm:$0xff]
  %v2617 = vld [vmem:[%s2615 + $0x8] sm:$0xff]
  %v2618 = vld [vmem:[%s2615 + $0x10] sm:$0xff]
  %v2619 = vld [vmem:[%s2615 + $0x18] sm:$0xff]
  %v2620 = vld [vmem:[%s2615 + $0x20] sm:$0xff]
  %v2621 = vld [vmem:[%s2615 + $0x28] sm:$0xff]
  %v2622 = vld [vmem:[%s2615 + $0x30] sm:$0xff]
  %v2623 = vld [vmem:[%s2615 + $0x38] sm:$0xff]
  %s2624 = scalar_lea.vmem %s53, 1
  %v2625 = vld [vmem:[%s2624] sm:$0x1]
  %v2627 = vlaneseq
  %v2628 = vshrl.u32 %v2627, 7
  %v2629 = vsub.s32 0, %v2628
  %v2630 = vrot.slane %v2625, %v2629
  %2632 = vmatprep.subr.mxu0 0.0
  %2633 = vmatpush1.msra.mxu0 %v2616
  %2634 = vmatprep.subr.mxu0 0.0
  %2635 = vmatpush1.msra.mxu0 %v2617
  %2636 = vmatprep.subr.mxu0 0.0
  %2637 = vmatpush1.msra.mxu0 %v2618
  %2638 = vmatprep.subr.mxu0 0.0
  %2639 = vmatpush1.msra.mxu0 %v2619
  %2640 = vmatprep.subr.mxu0 0.0
  %2641 = vmatpush1.msra.mxu0 %v2620
  %2642 = vmatprep.subr.mxu0 0.0
  %2643 = vmatpush1.msra.mxu0 %v2621
  %2644 = vmatprep.subr.mxu0 0.0
  %2645 = vmatpush1.msra.mxu0 %v2622
  %2646 = vmatprep.subr.mxu0 0.0
  %2647 = vmatpush1.msra.mxu0 %v2623
  %2648 = vmatprep.subr.mxu0 0.0
  %2649 = vmatpush1.msra.mxu0 0.0
  %2650 = vmatprep.subr.mxu0 0.0
  %2651 = vmatpush1.msra.mxu0 0.0
  %2652 = vmatprep.subr.mxu0 0.0
  %2653 = vmatpush1.msra.mxu0 0.0
  %2654 = vmatprep.subr.mxu0 0.0
  %2655 = vmatpush1.msra.mxu0 0.0
  %2656 = vmatprep.subr.mxu0 0.0
  %2657 = vmatpush1.msra.mxu0 0.0
  %2658 = vmatprep.subr.mxu0 0.0
  %2659 = vmatpush1.msra.mxu0 0.0
  %2660 = vmatprep.subr.mxu0 0.0
  %2661 = vmatpush1.msra.mxu0 0.0
  %2662 = vmatprep.subr.mxu0 0.0
  %2663 = vmatpush1.msra.mxu0 0.0
  %2664 = vmatprep.subr.mxu0 0.0
  %2665 = vmatpush1.msra.mxu0 0.0
  %2666 = vmatprep.subr.mxu0 0.0
  %2667 = vmatpush1.msra.mxu0 0.0
  %2668 = vmatprep.subr.mxu0 0.0
  %2669 = vmatpush1.msra.mxu0 0.0
  %2670 = vmatprep.subr.mxu0 0.0
  %2671 = vmatpush1.msra.mxu0 0.0
  %2672 = vmatprep.subr.mxu0 0.0
  %2673 = vmatpush1.msra.mxu0 0.0
  %2674 = vmatprep.subr.mxu0 0.0
  %2675 = vmatpush1.msra.mxu0 0.0
  %2676 = vmatprep.subr.mxu0 0.0
  %2677 = vmatpush1.msra.mxu0 0.0
  %2678 = vmatprep.subr.mxu0 0.0
  %2679 = vmatpush1.msra.mxu0 0.0
  %2680 = vmatprep.subr.mxu0 0.0
  %2681 = vmatpush1.msra.mxu0 0.0
  %2682 = vmatprep.subr.mxu0 0.0
  %2683 = vmatpush1.msra.mxu0 0.0
  %2684 = vmatprep.subr.mxu0 0.0
  %2685 = vmatpush1.msra.mxu0 0.0
  %2686 = vmatprep.subr.mxu0 0.0
  %2687 = vmatpush1.msra.mxu0 0.0
  %2688 = vmatprep.subr.mxu0 0.0
  %2689 = vmatpush1.msra.mxu0 0.0
  %2690 = vmatprep.subr.mxu0 0.0
  %2691 = vmatpush1.msra.mxu0 0.0
  %2692 = vmatprep.subr.mxu0 0.0
  %2693 = vmatpush1.msra.mxu0 0.0
  %2694 = vmatprep.subr.mxu0 0.0
  %2695 = vmatpush1.msra.mxu0 0.0
  %2696 = vmatprep.mubr.f32.mxu0 0.0
  %2697 = vmatmul.mubr.f32.gmra.mrb[0].mxu0 %v1430
  %v2698 = vpop.f32.mrb[0].mxu0
  %v2699 = vadd.f32 %v2630, %v2698
  %v2700 = vpop.f32.mrb[0].mxu0
  %2701 = vmatprep.mubr.f32.mxu0 0.0
  %2702 = vmatmul.mubr.f32.gmra.mrb[0].mxu0 %v1433
  %v2703 = vpop.f32.mrb[0].mxu0
  %v2704 = vadd.f32 %v2630, %v2703
  %v2705 = vpop.f32.mrb[0].mxu0
  %2706 = vmatprep.mubr.f32.mxu0 0.0
  %2707 = vmatmul.mubr.f32.gmra.mrb[0].mxu0 %v1436
  %v2708 = vpop.f32.mrb[0].mxu0
  %v2709 = vadd.f32 %v2630, %v2708
  %v2710 = vpop.f32.mrb[0].mxu0
  %2711 = vmatprep.mubr.f32.mxu0 0.0
  %2712 = vmatmul.mubr.f32.gmra.mrb[0].mxu0 %v1439
  %v2713 = vpop.f32.mrb[0].mxu0
  %v2714 = vadd.f32 %v2630, %v2713
  %v2715 = vpop.f32.mrb[0].mxu0
  %2716 = vdwg.mxu0
  %s2717 = scalar_lea.vmem %s55, 64
  %v2718 = vld [vmem:[%s2717] sm:$0xff]
  %v2719 = vld [vmem:[%s2717 + $0x8] sm:$0xff]
  %v2720 = vld [vmem:[%s2717 + $0x10] sm:$0xff]
  %v2721 = vld [vmem:[%s2717 + $0x18] sm:$0xff]
  %v2722 = vld [vmem:[%s2717 + $0x20] sm:$0xff]
  %v2723 = vld [vmem:[%s2717 + $0x28] sm:$0xff]
  %v2724 = vld [vmem:[%s2717 + $0x30] sm:$0xff]
  %v2725 = vld [vmem:[%s2717 + $0x38] sm:$0xff]
  %s2726 = scalar_lea.vmem %s57, 1
  %v2727 = vld [vmem:[%s2726] sm:$0x1]
  %v2729 = vlaneseq
  %v2730 = vshrl.u32 %v2729, 7
  %v2731 = vsub.s32 0, %v2730
  %v2732 = vrot.slane %v2727, %v2731
  %2734 = vmatprep.subr.mxu0 0.0
  %2735 = vmatpush1.msra.mxu0 %v2718
  %2736 = vmatprep.subr.mxu0 0.0
  %2737 = vmatpush1.msra.mxu0 %v2719
  %2738 = vmatprep.subr.mxu0 0.0
  %2739 = vmatpush1.msra.mxu0 %v2720
  %2740 = vmatprep.subr.mxu0 0.0
  %2741 = vmatpush1.msra.mxu0 %v2721
  %2742 = vmatprep.subr.mxu0 0.0
  %2743 = vmatpush1.msra.mxu0 %v2722
  %2744 = vmatprep.subr.mxu0 0.0
  %2745 = vmatpush1.msra.mxu0 %v2723
  %2746 = vmatprep.subr.mxu0 0.0
  %2747 = vmatpush1.msra.mxu0 %v2724
  %2748 = vmatprep.subr.mxu0 0.0
  %2749 = vmatpush1.msra.mxu0 %v2725
  %2750 = vmatprep.subr.mxu0 0.0
  %2751 = vmatpush1.msra.mxu0 0.0
  %2752 = vmatprep.subr.mxu0 0.0
  %2753 = vmatpush1.msra.mxu0 0.0
  %2754 = vmatprep.subr.mxu0 0.0
  %2755 = vmatpush1.msra.mxu0 0.0
  %2756 = vmatprep.subr.mxu0 0.0
  %2757 = vmatpush1.msra.mxu0 0.0
  %2758 = vmatprep.subr.mxu0 0.0
  %2759 = vmatpush1.msra.mxu0 0.0
  %2760 = vmatprep.subr.mxu0 0.0
  %2761 = vmatpush1.msra.mxu0 0.0
  %2762 = vmatprep.subr.mxu0 0.0
  %2763 = vmatpush1.msra.mxu0 0.0
  %2764 = vmatprep.subr.mxu0 0.0
  %2765 = vmatpush1.msra.mxu0 0.0
  %2766 = vmatprep.subr.mxu0 0.0
  %2767 = vmatpush1.msra.mxu0 0.0
  %2768 = vmatprep.subr.mxu0 0.0
  %2769 = vmatpush1.msra.mxu0 0.0
  %2770 = vmatprep.subr.mxu0 0.0
  %2771 = vmatpush1.msra.mxu0 0.0
  %2772 = vmatprep.subr.mxu0 0.0
  %2773 = vmatpush1.msra.mxu0 0.0
  %2774 = vmatprep.subr.mxu0 0.0
  %2775 = vmatpush1.msra.mxu0 0.0
  %2776 = vmatprep.subr.mxu0 0.0
  %2777 = vmatpush1.msra.mxu0 0.0
  %2778 = vmatprep.subr.mxu0 0.0
  %2779 = vmatpush1.msra.mxu0 0.0
  %2780 = vmatprep.subr.mxu0 0.0
  %2781 = vmatpush1.msra.mxu0 0.0
  %2782 = vmatprep.subr.mxu0 0.0
  %2783 = vmatpush1.msra.mxu0 0.0
  %2784 = vmatprep.subr.mxu0 0.0
  %2785 = vmatpush1.msra.mxu0 0.0
  %2786 = vmatprep.subr.mxu0 0.0
  %2787 = vmatpush1.msra.mxu0 0.0
  %2788 = vmatprep.subr.mxu0 0.0
  %2789 = vmatpush1.msra.mxu0 0.0
  %2790 = vmatprep.subr.mxu0 0.0
  %2791 = vmatpush1.msra.mxu0 0.0
  %2792 = vmatprep.subr.mxu0 0.0
  %2793 = vmatpush1.msra.mxu0 0.0
  %2794 = vmatprep.subr.mxu0 0.0
  %2795 = vmatpush1.msra.mxu0 0.0
  %2796 = vmatprep.subr.mxu0 0.0
  %2797 = vmatpush1.msra.mxu0 0.0
  %2798 = vmatprep.mubr.f32.mxu0 0.0
  %2799 = vmatmul.mubr.f32.gmra.mrb[0].mxu0 %v1430
  %v2800 = vpop.f32.mrb[0].mxu0
  %v2801 = vadd.f32 %v2732, %v2800
  %v2802 = vpop.f32.mrb[0].mxu0
  %2803 = vmatprep.mubr.f32.mxu0 0.0
  %2804 = vmatmul.mubr.f32.gmra.mrb[0].mxu0 %v1433
  %v2805 = vpop.f32.mrb[0].mxu0
  %v2806 = vadd.f32 %v2732, %v2805
  %v2807 = vpop.f32.mrb[0].mxu0
  %2808 = vmatprep.mubr.f32.mxu0 0.0
  %2809 = vmatmul.mubr.f32.gmra.mrb[0].mxu0 %v1436
  %v2810 = vpop.f32.mrb[0].mxu0
  %v2811 = vadd.f32 %v2732, %v2810
  %v2812 = vpop.f32.mrb[0].mxu0
  %2813 = vmatprep.mubr.f32.mxu0 0.0
  %2814 = vmatmul.mubr.f32.gmra.mrb[0].mxu0 %v1439
  %v2815 = vpop.f32.mrb[0].mxu0
  %v2816 = vadd.f32 %v2732, %v2815
  %v2817 = vpop.f32.mrb[0].mxu0
  %2818 = vdwg.mxu0
  %v2819 = vlaneseq
  %v2820 = vshrl.u32 %v2819, 7
  %v2821 = vsub.s32 0, %v2820
  %v2822 = vrot.slane %v2612, %v2821
  %v2823 = vmul.f32 %v2822, %v2699
  %v2824 = vmul.f32 %v2822, %v2704
  %v2826 = vsel %vm1220, %v2823, 0
  %v2829 = vsel %vm1220, %v2824, 0
  %2831 = vmatprep.subr.mxu0 0.0
  %2832 = vmatpush1.msra.mxu0 %v1190
  %2833 = vmatprep.subr.mxu0 0.0
  %2834 = vmatpush1.msra.mxu0 %v1191
  %2835 = vmatprep.subr.mxu0 0.0
  %2836 = vmatpush1.msra.mxu0 %v1192
  %2837 = vmatprep.subr.mxu0 0.0
  %2838 = vmatpush1.msra.mxu0 %v1193
  %2839 = vmatprep.subr.mxu0 0.0
  %2840 = vmatpush1.msra.mxu0 %v1194
  %2841 = vmatprep.subr.mxu0 0.0
  %2842 = vmatpush1.msra.mxu0 %v1195
  %2843 = vmatprep.subr.mxu0 0.0
  %2844 = vmatpush1.msra.mxu0 %v1196
  %2845 = vmatprep.subr.mxu0 0.0
  %2846 = vmatpush1.msra.mxu0 %v1197
  %2847 = vmatprep.subr.mxu0 0.0
  %2848 = vmatpush1.msra.mxu0 0.0
  %2849 = vmatprep.subr.mxu0 0.0
  %2850 = vmatpush1.msra.mxu0 0.0
  %2851 = vmatprep.subr.mxu0 0.0
  %2852 = vmatpush1.msra.mxu0 0.0
  %2853 = vmatprep.subr.mxu0 0.0
  %2854 = vmatpush1.msra.mxu0 0.0
  %2855 = vmatprep.subr.mxu0 0.0
  %2856 = vmatpush1.msra.mxu0 0.0
  %2857 = vmatprep.subr.mxu0 0.0
  %2858 = vmatpush1.msra.mxu0 0.0
  %2859 = vmatprep.subr.mxu0 0.0
  %2860 = vmatpush1.msra.mxu0 0.0
  %2861 = vmatprep.subr.mxu0 0.0
  %2862 = vmatpush1.msra.mxu0 0.0
  %2863 = vmatprep.subr.mxu0 0.0
  %2864 = vmatpush1.msra.mxu0 0.0
  %2865 = vmatprep.subr.mxu0 0.0
  %2866 = vmatpush1.msra.mxu0 0.0
  %2867 = vmatprep.subr.mxu0 0.0
  %2868 = vmatpush1.msra.mxu0 0.0
  %2869 = vmatprep.subr.mxu0 0.0
  %2870 = vmatpush1.msra.mxu0 0.0
  %2871 = vmatprep.subr.mxu0 0.0
  %2872 = vmatpush1.msra.mxu0 0.0
  %2873 = vmatprep.subr.mxu0 0.0
  %2874 = vmatpush1.msra.mxu0 0.0
  %2875 = vmatprep.subr.mxu0 0.0
  %2876 = vmatpush1.msra.mxu0 0.0
  %2877 = vmatprep.subr.mxu0 0.0
  %2878 = vmatpush1.msra.mxu0 0.0
  %2879 = vmatprep.subr.mxu0 0.0
  %2880 = vmatpush1.msra.mxu0 0.0
  %2881 = vmatprep.subr.mxu0 0.0
  %2882 = vmatpush1.msra.mxu0 0.0
  %2883 = vmatprep.subr.mxu0 0.0
  %2884 = vmatpush1.msra.mxu0 0.0
  %2885 = vmatprep.subr.mxu0 0.0
  %2886 = vmatpush1.msra.mxu0 0.0
  %2887 = vmatprep.subr.mxu0 0.0
  %2888 = vmatpush1.msra.mxu0 0.0
  %2889 = vmatprep.subr.mxu0 0.0
  %2890 = vmatpush1.msra.mxu0 0.0
  %2891 = vmatprep.subr.mxu0 0.0
  %2892 = vmatpush1.msra.mxu0 0.0
  %2893 = vmatprep.subr.mxu0 0.0
  %2894 = vmatpush1.msra.mxu0 0.0
  %2895 = vmatprep.mubr.f32.mxu0 0.0
  %2896 = vmatmul.mubr.f32.gmra.mrb[0].mxu0 %v2826
  %v2897 = vpop.f32.mrb[0].mxu0
  %v2898 = vadd.f32 0.0, %v2897
  %v2899 = vpop.f32.mrb[0].mxu0
  %2900 = vmatprep.mubr.f32.mxu0 0.0
  %2901 = vmatmul.mubr.f32.gmra.mrb[0].mxu0 %v2829
  %v2902 = vpop.f32.mrb[0].mxu0
  %v2903 = vadd.f32 0.0, %v2902
  %v2904 = vpop.f32.mrb[0].mxu0
  %2905 = vdwg.mxu0
  %v2906 = vmul.f32 %v2898, 0.25
  %v2907 = vmul.f32 %v2903, 0.25
  %v2908 = vadd.f32 %v2906, %v1718
  %v2909 = vadd.f32 %v2907, %v1723
  %v2910 = vsel %vm187, %v2908, -inf
  %v2911 = vsel %vm187, %v2909, -inf
  %v2912 = vmax.f32 %v2910, %v2911
  %v2913 = vrot.slane %v2912, 4
  %v2914 = vmax.f32 %v2912, %v2913
  %v2915 = vrot.slane %v2914, 2
  %v2916 = vmax.f32 %v2914, %v2915
  %v2917 = vrot.slane %v2916, 1
  %v2918 = vmax.f32 %v2916, %v2917
  %v2919 = vsub.f32 %v2908, %v2918
  %v2920 = vsub.f32 %v2909, %v2918
  %v2921 = vmul.f32 %v2919, 1.442695
  %v2922 = vpow.pop %v2921
  %v2923 = vmul.f32 %v2920, 1.442695
  %v2924 = vpow.pop %v2923
  %v2925 = vsel %vm187, %v2922, 0.0
  %v2926 = vsel %vm187, %v2924, 0.0
  %v2927 = vadd.f32 %v2925, %v2926
  %v2928 = vrot.slane %v2927, 4
  %v2929 = vadd.f32 %v2927, %v2928
  %v2930 = vrot.slane %v2929, 2
  %v2931 = vadd.f32 %v2929, %v2930
  %v2932 = vrot.slane %v2931, 1
  %v2933 = vadd.f32 %v2931, %v2932
  %v2934 = vrcp.pop %v2933
  %v2935 = vmul.f32 %v2922, %v2934
  %v2936 = vmul.f32 %v2924, %v2934
  %v2938 = vsel %vm187, %v2935, 0
  %v2941 = vsel %vm187, %v2936, 0
  %2943 = vmatprep.subr.mxu0 0.0
  %2944 = vmatpush1.msra.mxu0 %v1761
  %2945 = vmatprep.subr.mxu0 0.0
  %2946 = vmatpush1.msra.mxu0 0.0
  %2947 = vmatprep.subr.mxu0 0.0
  %2948 = vmatpush1.msra.mxu0 0.0
  %2949 = vmatprep.subr.mxu0 0.0
  %2950 = vmatpush1.msra.mxu0 0.0
  %2951 = vmatprep.subr.mxu0 0.0
  %2952 = vmatpush1.msra.mxu0 0.0
  %2953 = vmatprep.subr.mxu0 0.0
  %2954 = vmatpush1.msra.mxu0 0.0
  %2955 = vmatprep.subr.mxu0 0.0
  %2956 = vmatpush1.msra.mxu0 0.0
  %2957 = vmatprep.subr.mxu0 0.0
  %2958 = vmatpush1.msra.mxu0 0.0
  %2959 = vmatprep.subr.mxu0 0.0
  %2960 = vmatpush1.msra.mxu0 0.0
  %2961 = vmatprep.subr.mxu0 0.0
  %2962 = vmatpush1.msra.mxu0 0.0
  %2963 = vmatprep.subr.mxu0 0.0
  %2964 = vmatpush1.msra.mxu0 0.0
  %2965 = vmatprep.subr.mxu0 0.0
  %2966 = vmatpush1.msra.mxu0 0.0
  %2967 = vmatprep.subr.mxu0 0.0
  %2968 = vmatpush1.msra.mxu0 0.0
  %2969 = vmatprep.subr.mxu0 0.0
  %2970 = vmatpush1.msra.mxu0 0.0
  %2971 = vmatprep.subr.mxu0 0.0
  %2972 = vmatpush1.msra.mxu0 0.0
  %2973 = vmatprep.subr.mxu0 0.0
  %2974 = vmatpush1.msra.mxu0 0.0
  %2975 = vmatprep.subr.mxu0 0.0
  %2976 = vmatpush1.msra.mxu0 0.0
  %2977 = vmatprep.subr.mxu0 0.0
  %2978 = vmatpush1.msra.mxu0 0.0
  %2979 = vmatprep.subr.mxu0 0.0
  %2980 = vmatpush1.msra.mxu0 0.0
  %2981 = vmatprep.subr.mxu0 0.0
  %2982 = vmatpush1.msra.mxu0 0.0
  %2983 = vmatprep.subr.mxu0 0.0
  %2984 = vmatpush1.msra.mxu0 0.0
  %2985 = vmatprep.subr.mxu0 0.0
  %2986 = vmatpush1.msra.mxu0 0.0
  %2987 = vmatprep.subr.mxu0 0.0
  %2988 = vmatpush1.msra.mxu0 0.0
  %2989 = vmatprep.subr.mxu0 0.0
  %2990 = vmatpush1.msra.mxu0 0.0
  %2991 = vmatprep.subr.mxu0 0.0
  %2992 = vmatpush1.msra.mxu0 0.0
  %2993 = vmatprep.subr.mxu0 0.0
  %2994 = vmatpush1.msra.mxu0 0.0
  %2995 = vmatprep.subr.mxu0 0.0
  %2996 = vmatpush1.msra.mxu0 0.0
  %2997 = vmatprep.subr.mxu0 0.0
  %2998 = vmatpush1.msra.mxu0 0.0
  %2999 = vmatprep.subr.mxu0 0.0
  %3000 = vmatpush1.msra.mxu0 0.0
  %3001 = vmatprep.subr.mxu0 0.0
  %3002 = vmatpush1.msra.mxu0 0.0
  %3003 = vmatprep.subr.mxu0 0.0
  %3004 = vmatpush1.msra.mxu0 0.0
  %3005 = vmatprep.subr.mxu0 0.0
  %3006 = vmatpush1.msra.mxu0 0.0
  %3007 = vmatprep.mubr.f32.mxu0 0.0
  %3008 = vmatmul.mubr.f32.gmra.mrb[0].mxu0 %v2938
  %v3009 = vpop.f32.mrb[0].mxu0
  %v3010 = vadd.f32 0.0, %v3009
  %v3011 = vpop.f32.mrb[0].mxu0
  %3012 = vmatprep.mubr.f32.mxu0 0.0
  %3013 = vmatmul.mubr.f32.gmra.mrb[0].mxu0 %v2941
  %v3014 = vpop.f32.mrb[0].mxu0
  %v3015 = vadd.f32 0.0, %v3014
  %v3016 = vpop.f32.mrb[0].mxu0
  %3017 = vdwg.mxu0
  %v3018 = vmul.f32 %v3010, %v2801
  %v3019 = vmul.f32 %v3015, %v2806
  %v3020 = vsel %vm1220, %v3018, 0.0
  %v3021 = vsel %vm1220, %v3019, 0.0
  %v3022 = vadd.f32 %v3020, %v3021
  %v3023 = vrot.slane %v3022, 4
  %v3024 = vadd.f32 %v3022, %v3023
  %v3025 = vrot.slane %v3024, 2
  %v3026 = vadd.f32 %v3024, %v3025
  %v3027 = vrot.slane %v3026, 1
  %v3028 = vadd.f32 %v3026, %v3027
  %v3029 = vmul.f32 %v1852, %v3028
  %v3030 = vadd.f32 %v3029, 0.0
  %v3031 = vlaneseq
  %v3032 = vshrl.u32 %v3031, 7
  %v3033 = vsub.s32 1, %v3032
  %v3034 = vrot.slane %v2612, %v3033
  %v3035 = vmul.f32 %v3034, %v2709
  %v3036 = vmul.f32 %v3034, %v2714
  %v3038 = vsel %vm1220, %v3035, 0
  %v3041 = vsel %vm1220, %v3036, 0
  %3043 = vmatprep.subr.mxu0 0.0
  %3044 = vmatpush1.msra.mxu0 %v1190
  %3045 = vmatprep.subr.mxu0 0.0
  %3046 = vmatpush1.msra.mxu0 %v1191
  %3047 = vmatprep.subr.mxu0 0.0
  %3048 = vmatpush1.msra.mxu0 %v1192
  %3049 = vmatprep.subr.mxu0 0.0
  %3050 = vmatpush1.msra.mxu0 %v1193
  %3051 = vmatprep.subr.mxu0 0.0
  %3052 = vmatpush1.msra.mxu0 %v1194
  %3053 = vmatprep.subr.mxu0 0.0
  %3054 = vmatpush1.msra.mxu0 %v1195
  %3055 = vmatprep.subr.mxu0 0.0
  %3056 = vmatpush1.msra.mxu0 %v1196
  %3057 = vmatprep.subr.mxu0 0.0
  %3058 = vmatpush1.msra.mxu0 %v1197
  %3059 = vmatprep.subr.mxu0 0.0
  %3060 = vmatpush1.msra.mxu0 0.0
  %3061 = vmatprep.subr.mxu0 0.0
  %3062 = vmatpush1.msra.mxu0 0.0
  %3063 = vmatprep.subr.mxu0 0.0
  %3064 = vmatpush1.msra.mxu0 0.0
  %3065 = vmatprep.subr.mxu0 0.0
  %3066 = vmatpush1.msra.mxu0 0.0
  %3067 = vmatprep.subr.mxu0 0.0
  %3068 = vmatpush1.msra.mxu0 0.0
  %3069 = vmatprep.subr.mxu0 0.0
  %3070 = vmatpush1.msra.mxu0 0.0
  %3071 = vmatprep.subr.mxu0 0.0
  %3072 = vmatpush1.msra.mxu0 0.0
  %3073 = vmatprep.subr.mxu0 0.0
  %3074 = vmatpush1.msra.mxu0 0.0
  %3075 = vmatprep.subr.mxu0 0.0
  %3076 = vmatpush1.msra.mxu0 0.0
  %3077 = vmatprep.subr.mxu0 0.0
  %3078 = vmatpush1.msra.mxu0 0.0
  %3079 = vmatprep.subr.mxu0 0.0
  %3080 = vmatpush1.msra.mxu0 0.0
  %3081 = vmatprep.subr.mxu0 0.0
  %3082 = vmatpush1.msra.mxu0 0.0
  %3083 = vmatprep.subr.mxu0 0.0
  %3084 = vmatpush1.msra.mxu0 0.0
  %3085 = vmatprep.subr.mxu0 0.0
  %3086 = vmatpush1.msra.mxu0 0.0
  %3087 = vmatprep.subr.mxu0 0.0
  %3088 = vmatpush1.msra.mxu0 0.0
  %3089 = vmatprep.subr.mxu0 0.0
  %3090 = vmatpush1.msra.mxu0 0.0
  %3091 = vmatprep.subr.mxu0 0.0
  %3092 = vmatpush1.msra.mxu0 0.0
  %3093 = vmatprep.subr.mxu0 0.0
  %3094 = vmatpush1.msra.mxu0 0.0
  %3095 = vmatprep.subr.mxu0 0.0
  %3096 = vmatpush1.msra.mxu0 0.0
  %3097 = vmatprep.subr.mxu0 0.0
  %3098 = vmatpush1.msra.mxu0 0.0
  %3099 = vmatprep.subr.mxu0 0.0
  %3100 = vmatpush1.msra.mxu0 0.0
  %3101 = vmatprep.subr.mxu0 0.0
  %3102 = vmatpush1.msra.mxu0 0.0
  %3103 = vmatprep.subr.mxu0 0.0
  %3104 = vmatpush1.msra.mxu0 0.0
  %3105 = vmatprep.subr.mxu0 0.0
  %3106 = vmatpush1.msra.mxu0 0.0
  %3107 = vmatprep.mubr.f32.mxu0 0.0
  %3108 = vmatmul.mubr.f32.gmra.mrb[0].mxu0 %v3038
  %v3109 = vpop.f32.mrb[0].mxu0
  %v3110 = vadd.f32 0.0, %v3109
  %v3111 = vpop.f32.mrb[0].mxu0
  %3112 = vmatprep.mubr.f32.mxu0 0.0
  %3113 = vmatmul.mubr.f32.gmra.mrb[0].mxu0 %v3041
  %v3114 = vpop.f32.mrb[0].mxu0
  %v3115 = vadd.f32 0.0, %v3114
  %v3116 = vpop.f32.mrb[0].mxu0
  %3117 = vdwg.mxu0
  %v3118 = vmul.f32 %v3110, 0.25
  %v3119 = vmul.f32 %v3115, 0.25
  %v3120 = vadd.f32 %v3118, %v1948
  %v3121 = vadd.f32 %v3119, %v1953
  %v3122 = vsel %vm187, %v3120, -inf
  %v3123 = vsel %vm187, %v3121, -inf
  %v3124 = vmax.f32 %v3122, %v3123
  %v3125 = vrot.slane %v3124, 4
  %v3126 = vmax.f32 %v3124, %v3125
  %v3127 = vrot.slane %v3126, 2
  %v3128 = vmax.f32 %v3126, %v3127
  %v3129 = vrot.slane %v3128, 1
  %v3130 = vmax.f32 %v3128, %v3129
  %v3131 = vsub.f32 %v3120, %v3130
  %v3132 = vsub.f32 %v3121, %v3130
  %v3133 = vmul.f32 %v3131, 1.442695
  %v3134 = vpow.pop %v3133
  %v3135 = vmul.f32 %v3132, 1.442695
  %v3136 = vpow.pop %v3135
  %v3137 = vsel %vm187, %v3134, 0.0
  %v3138 = vsel %vm187, %v3136, 0.0
  %v3139 = vadd.f32 %v3137, %v3138
  %v3140 = vrot.slane %v3139, 4
  %v3141 = vadd.f32 %v3139, %v3140
  %v3142 = vrot.slane %v3141, 2
  %v3143 = vadd.f32 %v3141, %v3142
  %v3144 = vrot.slane %v3143, 1
  %v3145 = vadd.f32 %v3143, %v3144
  %v3146 = vrcp.pop %v3145
  %v3147 = vmul.f32 %v3134, %v3146
  %v3148 = vmul.f32 %v3136, %v3146
  %v3150 = vsel %vm187, %v3147, 0
  %v3153 = vsel %vm187, %v3148, 0
  %3155 = vmatprep.subr.mxu0 0.0
  %3156 = vmatpush1.msra.mxu0 %v1761
  %3157 = vmatprep.subr.mxu0 0.0
  %3158 = vmatpush1.msra.mxu0 0.0
  %3159 = vmatprep.subr.mxu0 0.0
  %3160 = vmatpush1.msra.mxu0 0.0
  %3161 = vmatprep.subr.mxu0 0.0
  %3162 = vmatpush1.msra.mxu0 0.0
  %3163 = vmatprep.subr.mxu0 0.0
  %3164 = vmatpush1.msra.mxu0 0.0
  %3165 = vmatprep.subr.mxu0 0.0
  %3166 = vmatpush1.msra.mxu0 0.0
  %3167 = vmatprep.subr.mxu0 0.0
  %3168 = vmatpush1.msra.mxu0 0.0
  %3169 = vmatprep.subr.mxu0 0.0
  %3170 = vmatpush1.msra.mxu0 0.0
  %3171 = vmatprep.subr.mxu0 0.0
  %3172 = vmatpush1.msra.mxu0 0.0
  %3173 = vmatprep.subr.mxu0 0.0
  %3174 = vmatpush1.msra.mxu0 0.0
  %3175 = vmatprep.subr.mxu0 0.0
  %3176 = vmatpush1.msra.mxu0 0.0
  %3177 = vmatprep.subr.mxu0 0.0
  %3178 = vmatpush1.msra.mxu0 0.0
  %3179 = vmatprep.subr.mxu0 0.0
  %3180 = vmatpush1.msra.mxu0 0.0
  %3181 = vmatprep.subr.mxu0 0.0
  %3182 = vmatpush1.msra.mxu0 0.0
  %3183 = vmatprep.subr.mxu0 0.0
  %3184 = vmatpush1.msra.mxu0 0.0
  %3185 = vmatprep.subr.mxu0 0.0
  %3186 = vmatpush1.msra.mxu0 0.0
  %3187 = vmatprep.subr.mxu0 0.0
  %3188 = vmatpush1.msra.mxu0 0.0
  %3189 = vmatprep.subr.mxu0 0.0
  %3190 = vmatpush1.msra.mxu0 0.0
  %3191 = vmatprep.subr.mxu0 0.0
  %3192 = vmatpush1.msra.mxu0 0.0
  %3193 = vmatprep.subr.mxu0 0.0
  %3194 = vmatpush1.msra.mxu0 0.0
  %3195 = vmatprep.subr.mxu0 0.0
  %3196 = vmatpush1.msra.mxu0 0.0
  %3197 = vmatprep.subr.mxu0 0.0
  %3198 = vmatpush1.msra.mxu0 0.0
  %3199 = vmatprep.subr.mxu0 0.0
  %3200 = vmatpush1.msra.mxu0 0.0
  %3201 = vmatprep.subr.mxu0 0.0
  %3202 = vmatpush1.msra.mxu0 0.0
  %3203 = vmatprep.subr.mxu0 0.0
  %3204 = vmatpush1.msra.mxu0 0.0
  %3205 = vmatprep.subr.mxu0 0.0
  %3206 = vmatpush1.msra.mxu0 0.0
  %3207 = vmatprep.subr.mxu0 0.0
  %3208 = vmatpush1.msra.mxu0 0.0
  %3209 = vmatprep.subr.mxu0 0.0
  %3210 = vmatpush1.msra.mxu0 0.0
  %3211 = vmatprep.subr.mxu0 0.0
  %3212 = vmatpush1.msra.mxu0 0.0
  %3213 = vmatprep.subr.mxu0 0.0
  %3214 = vmatpush1.msra.mxu0 0.0
  %3215 = vmatprep.subr.mxu0 0.0
  %3216 = vmatpush1.msra.mxu0 0.0
  %3217 = vmatprep.subr.mxu0 0.0
  %3218 = vmatpush1.msra.mxu0 0.0
  %3219 = vmatprep.mubr.f32.mxu0 0.0
  %3220 = vmatmul.mubr.f32.gmra.mrb[0].mxu0 %v3150
  %v3221 = vpop.f32.mrb[0].mxu0
  %v3222 = vadd.f32 0.0, %v3221
  %v3223 = vpop.f32.mrb[0].mxu0
  %3224 = vmatprep.mubr.f32.mxu0 0.0
  %3225 = vmatmul.mubr.f32.gmra.mrb[0].mxu0 %v3153
  %v3226 = vpop.f32.mrb[0].mxu0
  %v3227 = vadd.f32 0.0, %v3226
  %v3228 = vpop.f32.mrb[0].mxu0
  %3229 = vdwg.mxu0
  %v3230 = vmul.f32 %v3222, %v2811
  %v3231 = vmul.f32 %v3227, %v2816
  %v3232 = vsel %vm1220, %v3230, 0.0
  %v3233 = vsel %vm1220, %v3231, 0.0
  %v3234 = vadd.f32 %v3232, %v3233
  %v3235 = vrot.slane %v3234, 4
  %v3236 = vadd.f32 %v3234, %v3235
  %v3237 = vrot.slane %v3236, 2
  %v3238 = vadd.f32 %v3236, %v3237
  %v3239 = vrot.slane %v3238, 1
  %v3240 = vadd.f32 %v3238, %v3239
  %v3241 = vmul.f32 %v2078, %v3240
  %v3242 = vadd.f32 %v3030, %v3241
  %s3243 = scalar_lea.vmem %s59, 64
  %v3244 = vld [vmem:[%s3243] sm:$0xff]
  %v3245 = vld [vmem:[%s3243 + $0x8] sm:$0xff]
  %v3246 = vld [vmem:[%s3243 + $0x10] sm:$0xff]
  %v3247 = vld [vmem:[%s3243 + $0x18] sm:$0xff]
  %v3248 = vld [vmem:[%s3243 + $0x20] sm:$0xff]
  %v3249 = vld [vmem:[%s3243 + $0x28] sm:$0xff]
  %v3250 = vld [vmem:[%s3243 + $0x30] sm:$0xff]
  %v3251 = vld [vmem:[%s3243 + $0x38] sm:$0xff]
  %s3252 = scalar_lea.vmem %s61, 1
  %v3253 = vld [vmem:[%s3252] sm:$0x1]
  %v3255 = vlaneseq
  %v3256 = vshrl.u32 %v3255, 7
  %v3257 = vsub.s32 0, %v3256
  %v3258 = vrot.slane %v3253, %v3257
  %v3261 = vsel %vm1220, %v3242, 0
  %3263 = vmatprep.subr.mxu0 0.0
  %3264 = vmatpush1.msra.mxu0 %v3244
  %3265 = vmatprep.subr.mxu0 0.0
  %3266 = vmatpush1.msra.mxu0 %v3245
  %3267 = vmatprep.subr.mxu0 0.0
  %3268 = vmatpush1.msra.mxu0 %v3246
  %3269 = vmatprep.subr.mxu0 0.0
  %3270 = vmatpush1.msra.mxu0 %v3247
  %3271 = vmatprep.subr.mxu0 0.0
  %3272 = vmatpush1.msra.mxu0 %v3248
  %3273 = vmatprep.subr.mxu0 0.0
  %3274 = vmatpush1.msra.mxu0 %v3249
  %3275 = vmatprep.subr.mxu0 0.0
  %3276 = vmatpush1.msra.mxu0 %v3250
  %3277 = vmatprep.subr.mxu0 0.0
  %3278 = vmatpush1.msra.mxu0 %v3251
  %3279 = vmatprep.subr.mxu0 0.0
  %3280 = vmatpush1.msra.mxu0 0.0
  %3281 = vmatprep.subr.mxu0 0.0
  %3282 = vmatpush1.msra.mxu0 0.0
  %3283 = vmatprep.subr.mxu0 0.0
  %3284 = vmatpush1.msra.mxu0 0.0
  %3285 = vmatprep.subr.mxu0 0.0
  %3286 = vmatpush1.msra.mxu0 0.0
  %3287 = vmatprep.subr.mxu0 0.0
  %3288 = vmatpush1.msra.mxu0 0.0
  %3289 = vmatprep.subr.mxu0 0.0
  %3290 = vmatpush1.msra.mxu0 0.0
  %3291 = vmatprep.subr.mxu0 0.0
  %3292 = vmatpush1.msra.mxu0 0.0
  %3293 = vmatprep.subr.mxu0 0.0
  %3294 = vmatpush1.msra.mxu0 0.0
  %3295 = vmatprep.subr.mxu0 0.0
  %3296 = vmatpush1.msra.mxu0 0.0
  %3297 = vmatprep.subr.mxu0 0.0
  %3298 = vmatpush1.msra.mxu0 0.0
  %3299 = vmatprep.subr.mxu0 0.0
  %3300 = vmatpush1.msra.mxu0 0.0
  %3301 = vmatprep.subr.mxu0 0.0
  %3302 = vmatpush1.msra.mxu0 0.0
  %3303 = vmatprep.subr.mxu0 0.0
  %3304 = vmatpush1.msra.mxu0 0.0
  %3305 = vmatprep.subr.mxu0 0.0
  %3306 = vmatpush1.msra.mxu0 0.0
  %3307 = vmatprep.subr.mxu0 0.0
  %3308 = vmatpush1.msra.mxu0 0.0
  %3309 = vmatprep.subr.mxu0 0.0
  %3310 = vmatpush1.msra.mxu0 0.0
  %3311 = vmatprep.subr.mxu0 0.0
  %3312 = vmatpush1.msra.mxu0 0.0
  %3313 = vmatprep.subr.mxu0 0.0
  %3314 = vmatpush1.msra.mxu0 0.0
  %3315 = vmatprep.subr.mxu0 0.0
  %3316 = vmatpush1.msra.mxu0 0.0
  %3317 = vmatprep.subr.mxu0 0.0
  %3318 = vmatpush1.msra.mxu0 0.0
  %3319 = vmatprep.subr.mxu0 0.0
  %3320 = vmatpush1.msra.mxu0 0.0
  %3321 = vmatprep.subr.mxu0 0.0
  %3322 = vmatpush1.msra.mxu0 0.0
  %3323 = vmatprep.subr.mxu0 0.0
  %3324 = vmatpush1.msra.mxu0 0.0
  %3325 = vmatprep.subr.mxu0 0.0
  %3326 = vmatpush1.msra.mxu0 0.0
  %3327 = vmatprep.mubr.f32.mxu0 0.0
  %3328 = vmatmul.mubr.f32.gmra.mrb[0].mxu0 %v3261
  %v3329 = vpop.f32.mrb[0].mxu0
  %v3330 = vadd.f32 %v3258, %v3329
  %v3331 = vpop.f32.mrb[0].mxu0
  %3332 = vdwg.mxu0
  %v3333 = vadd.f32 %v2524, %v3330
  %s3334 = scalar_lea.vmem %s67, 1
  %v3335 = vld [vmem:[%s3334] sm:$0x1]
  %s3336 = scalar_lea.vmem %s69, 1
  %v3337 = vld [vmem:[%s3336] sm:$0x1]
  %v3338 = vsel %vm1297, %v3333, 0.0
  %3339 = vadd.xlane.f32.xlu0 %v3338
  %v3340 = vpop.xlane.xlu0 %3339
  %v3341 = vmul.f32 %v3340, %v1301
  %v3342 = vsub.f32 %v3333, %v3341
  %v3343 = vmul.f32 %v3342, %v3342
  %v3344 = vsel %vm1297, %v3343, 0.0
  %3345 = vadd.xlane.f32.xlu0 %v3344
  %v3346 = vpop.xlane.xlu0 %3345
  %v3347 = vmul.f32 %v3346, %v1301
  %v3348 = vadd.f32 %v3347, 1e-05
  %v3349 = vrsqrt.pop %v3348
  %v3350 = vmul.f32 %v3342, %v3349
  %v3352 = vlaneseq
  %v3353 = vshrl.u32 %v3352, 7
  %v3354 = vsub.s32 0, %v3353
  %v3355 = vrot.slane %v3335, %v3354
  %v3357 = vmul.f32 %v3350, %v3355
  %v3359 = vlaneseq
  %v3360 = vshrl.u32 %v3359, 7
  %v3361 = vsub.s32 0, %v3360
  %v3362 = vrot.slane %v3337, %v3361
  %v3364 = vadd.f32 %v3357, %v3362
  %s3365 = scalar_lea.vmem %s75, 64
  %v3366 = vld [vmem:[%s3365] sm:$0xff]
  %v3367 = vld [vmem:[%s3365 + $0x8] sm:$0xff]
  %v3368 = vld [vmem:[%s3365 + $0x10] sm:$0xff]
  %v3369 = vld [vmem:[%s3365 + $0x18] sm:$0xff]
  %v3370 = vld [vmem:[%s3365 + $0x20] sm:$0xff]
  %v3371 = vld [vmem:[%s3365 + $0x28] sm:$0xff]
  %v3372 = vld [vmem:[%s3365 + $0x30] sm:$0xff]
  %v3373 = vld [vmem:[%s3365 + $0x38] sm:$0xff]
  %s3374 = scalar_lea.vmem %s77, 1
  %v3375 = vld [vmem:[%s3374] sm:$0x1]
  %v3377 = vlaneseq
  %v3378 = vshrl.u32 %v3377, 7
  %v3379 = vsub.s32 0, %v3378
  %v3380 = vrot.slane %v3375, %v3379
  %v3383 = vsel %vm1220, %v3364, 0
  %3385 = vmatprep.subr.mxu0 0.0
  %3386 = vmatpush1.msra.mxu0 %v3366
  %3387 = vmatprep.subr.mxu0 0.0
  %3388 = vmatpush1.msra.mxu0 %v3367
  %3389 = vmatprep.subr.mxu0 0.0
  %3390 = vmatpush1.msra.mxu0 %v3368
  %3391 = vmatprep.subr.mxu0 0.0
  %3392 = vmatpush1.msra.mxu0 %v3369
  %3393 = vmatprep.subr.mxu0 0.0
  %3394 = vmatpush1.msra.mxu0 %v3370
  %3395 = vmatprep.subr.mxu0 0.0
  %3396 = vmatpush1.msra.mxu0 %v3371
  %3397 = vmatprep.subr.mxu0 0.0
  %3398 = vmatpush1.msra.mxu0 %v3372
  %3399 = vmatprep.subr.mxu0 0.0
  %3400 = vmatpush1.msra.mxu0 %v3373
  %3401 = vmatprep.subr.mxu0 0.0
  %3402 = vmatpush1.msra.mxu0 0.0
  %3403 = vmatprep.subr.mxu0 0.0
  %3404 = vmatpush1.msra.mxu0 0.0
  %3405 = vmatprep.subr.mxu0 0.0
  %3406 = vmatpush1.msra.mxu0 0.0
  %3407 = vmatprep.subr.mxu0 0.0
  %3408 = vmatpush1.msra.mxu0 0.0
  %3409 = vmatprep.subr.mxu0 0.0
  %3410 = vmatpush1.msra.mxu0 0.0
  %3411 = vmatprep.subr.mxu0 0.0
  %3412 = vmatpush1.msra.mxu0 0.0
  %3413 = vmatprep.subr.mxu0 0.0
  %3414 = vmatpush1.msra.mxu0 0.0
  %3415 = vmatprep.subr.mxu0 0.0
  %3416 = vmatpush1.msra.mxu0 0.0
  %3417 = vmatprep.subr.mxu0 0.0
  %3418 = vmatpush1.msra.mxu0 0.0
  %3419 = vmatprep.subr.mxu0 0.0
  %3420 = vmatpush1.msra.mxu0 0.0
  %3421 = vmatprep.subr.mxu0 0.0
  %3422 = vmatpush1.msra.mxu0 0.0
  %3423 = vmatprep.subr.mxu0 0.0
  %3424 = vmatpush1.msra.mxu0 0.0
  %3425 = vmatprep.subr.mxu0 0.0
  %3426 = vmatpush1.msra.mxu0 0.0
  %3427 = vmatprep.subr.mxu0 0.0
  %3428 = vmatpush1.msra.mxu0 0.0
  %3429 = vmatprep.subr.mxu0 0.0
  %3430 = vmatpush1.msra.mxu0 0.0
  %3431 = vmatprep.subr.mxu0 0.0
  %3432 = vmatpush1.msra.mxu0 0.0
  %3433 = vmatprep.subr.mxu0 0.0
  %3434 = vmatpush1.msra.mxu0 0.0
  %3435 = vmatprep.subr.mxu0 0.0
  %3436 = vmatpush1.msra.mxu0 0.0
  %3437 = vmatprep.subr.mxu0 0.0
  %3438 = vmatpush1.msra.mxu0 0.0
  %3439 = vmatprep.subr.mxu0 0.0
  %3440 = vmatpush1.msra.mxu0 0.0
  %3441 = vmatprep.subr.mxu0 0.0
  %3442 = vmatpush1.msra.mxu0 0.0
  %3443 = vmatprep.subr.mxu0 0.0
  %3444 = vmatpush1.msra.mxu0 0.0
  %3445 = vmatprep.subr.mxu0 0.0
  %3446 = vmatpush1.msra.mxu0 0.0
  %3447 = vmatprep.subr.mxu0 0.0
  %3448 = vmatpush1.msra.mxu0 0.0
  %3449 = vmatprep.mubr.f32.mxu0 0.0
  %3450 = vmatmul.mubr.f32.gmra.mrb[0].mxu0 %v3383
  %v3451 = vpop.f32.mrb[0].mxu0
  %v3452 = vadd.f32 %v3380, %v3451
  %v3453 = vpop.f32.mrb[0].mxu0
  %3454 = vdwg.mxu0
  %v3455 = vmax.f32 %v3452, 0.0
  %s3456 = scalar_lea.vmem %s79, 32
  %v3457 = vld [vmem:[%s3456] sm:$0xff]
  %v3458 = vld [vmem:[%s3456 + $0x8] sm:$0xff]
  %v3459 = vld [vmem:[%s3456 + $0x10] sm:$0xff]
  %v3460 = vld [vmem:[%s3456 + $0x18] sm:$0xff]
  %s3461 = scalar_lea.vmem %s81, 1
  %v3462 = vld [vmem:[%s3461] sm:$0x1]
  %v3464 = vlaneseq
  %v3465 = vshrl.u32 %v3464, 7
  %v3466 = vsub.s32 0, %v3465
  %v3467 = vrot.slane %v3462, %v3466
  %v3470 = vsel %vm371, %v3455, 0
  %3472 = vmatprep.subr.mxu0 0.0
  %3473 = vmatpush1.msra.mxu0 %v3457
  %3474 = vmatprep.subr.mxu0 0.0
  %3475 = vmatpush1.msra.mxu0 %v3458
  %3476 = vmatprep.subr.mxu0 0.0
  %3477 = vmatpush1.msra.mxu0 %v3459
  %3478 = vmatprep.subr.mxu0 0.0
  %3479 = vmatpush1.msra.mxu0 %v3460
  %3480 = vmatprep.subr.mxu0 0.0
  %3481 = vmatpush1.msra.mxu0 0.0
  %3482 = vmatprep.subr.mxu0 0.0
  %3483 = vmatpush1.msra.mxu0 0.0
  %3484 = vmatprep.subr.mxu0 0.0
  %3485 = vmatpush1.msra.mxu0 0.0
  %3486 = vmatprep.subr.mxu0 0.0
  %3487 = vmatpush1.msra.mxu0 0.0
  %3488 = vmatprep.subr.mxu0 0.0
  %3489 = vmatpush1.msra.mxu0 0.0
  %3490 = vmatprep.subr.mxu0 0.0
  %3491 = vmatpush1.msra.mxu0 0.0
  %3492 = vmatprep.subr.mxu0 0.0
  %3493 = vmatpush1.msra.mxu0 0.0
  %3494 = vmatprep.subr.mxu0 0.0
  %3495 = vmatpush1.msra.mxu0 0.0
  %3496 = vmatprep.subr.mxu0 0.0
  %3497 = vmatpush1.msra.mxu0 0.0
  %3498 = vmatprep.subr.mxu0 0.0
  %3499 = vmatpush1.msra.mxu0 0.0
  %3500 = vmatprep.subr.mxu0 0.0
  %3501 = vmatpush1.msra.mxu0 0.0
  %3502 = vmatprep.subr.mxu0 0.0
  %3503 = vmatpush1.msra.mxu0 0.0
  %3504 = vmatprep.subr.mxu0 0.0
  %3505 = vmatpush1.msra.mxu0 0.0
  %3506 = vmatprep.subr.mxu0 0.0
  %3507 = vmatpush1.msra.mxu0 0.0
  %3508 = vmatprep.subr.mxu0 0.0
  %3509 = vmatpush1.msra.mxu0 0.0
  %3510 = vmatprep.subr.mxu0 0.0
  %3511 = vmatpush1.msra.mxu0 0.0
  %3512 = vmatprep.subr.mxu0 0.0
  %3513 = vmatpush1.msra.mxu0 0.0
  %3514 = vmatprep.subr.mxu0 0.0
  %3515 = vmatpush1.msra.mxu0 0.0
  %3516 = vmatprep.subr.mxu0 0.0
  %3517 = vmatpush1.msra.mxu0 0.0
  %3518 = vmatprep.subr.mxu0 0.0
  %3519 = vmatpush1.msra.mxu0 0.0
  %3520 = vmatprep.subr.mxu0 0.0
  %3521 = vmatpush1.msra.mxu0 0.0
  %3522 = vmatprep.subr.mxu0 0.0
  %3523 = vmatpush1.msra.mxu0 0.0
  %3524 = vmatprep.subr.mxu0 0.0
  %3525 = vmatpush1.msra.mxu0 0.0
  %3526 = vmatprep.subr.mxu0 0.0
  %3527 = vmatpush1.msra.mxu0 0.0
  %3528 = vmatprep.subr.mxu0 0.0
  %3529 = vmatpush1.msra.mxu0 0.0
  %3530 = vmatprep.subr.mxu0 0.0
  %3531 = vmatpush1.msra.mxu0 0.0
  %3532 = vmatprep.subr.mxu0 0.0
  %3533 = vmatpush1.msra.mxu0 0.0
  %3534 = vmatprep.subr.mxu0 0.0
  %3535 = vmatpush1.msra.mxu0 0.0
  %3536 = vmatprep.mubr.f32.mxu0 0.0
  %3537 = vmatmul.mubr.f32.gmra.mrb[0].mxu0 %v3470
  %v3538 = vpop.f32.mrb[0].mxu0
  %v3539 = vadd.f32 %v3467, %v3538
  %v3540 = vpop.f32.mrb[0].mxu0
  %3541 = vdwg.mxu0
  %v3542 = vadd.f32 %v3364, %v3539
  %s3543 = scalar_lea.vmem %s71, 1
  %v3544 = vld [vmem:[%s3543] sm:$0x1]
  %s3545 = scalar_lea.vmem %s73, 1
  %v3546 = vld [vmem:[%s3545] sm:$0x1]
  %v3547 = vsel %vm1297, %v3542, 0.0
  %3548 = vadd.xlane.f32.xlu0 %v3547
  %v3549 = vpop.xlane.xlu0 %3548
  %v3550 = vmul.f32 %v3549, %v1301
  %v3551 = vsub.f32 %v3542, %v3550
  %v3552 = vmul.f32 %v3551, %v3551
  %v3553 = vsel %vm1297, %v3552, 0.0
  %3554 = vadd.xlane.f32.xlu0 %v3553
  %v3555 = vpop.xlane.xlu0 %3554
  %v3556 = vmul.f32 %v3555, %v1301
  %v3557 = vadd.f32 %v3556, 1e-05
  %v3558 = vrsqrt.pop %v3557
  %v3559 = vmul.f32 %v3551, %v3558
  %v3561 = vlaneseq
  %v3562 = vshrl.u32 %v3561, 7
  %v3563 = vsub.s32 0, %v3562
  %v3564 = vrot.slane %v3544, %v3563
  %v3566 = vmul.f32 %v3559, %v3564
  %v3568 = vlaneseq
  %v3569 = vshrl.u32 %v3568, 7
  %v3570 = vsub.s32 0, %v3569
  %v3571 = vrot.slane %v3546, %v3570
  %v3573 = vadd.f32 %v3566, %v3571
  %v3574 = vld [vmem:[%s83] sm:$0xff]
  %v3575 = vld [vmem:[%s83 + $0x8] sm:$0xff]
  %v3576 = vld [vmem:[%s83 + $0x10] sm:$0xff]
  %v3577 = vld [vmem:[%s83 + $0x18] sm:$0xff]
  %v3578 = vld [vmem:[%s83 + $0x20] sm:$0xff]
  %v3579 = vld [vmem:[%s83 + $0x28] sm:$0xff]
  %v3580 = vld [vmem:[%s83 + $0x30] sm:$0xff]
  %v3581 = vld [vmem:[%s83 + $0x38] sm:$0xff]
  %v3582 = vld [vmem:[%s85] sm:$0x1]
  %v3584 = vlaneseq
  %v3585 = vshrl.u32 %v3584, 7
  %v3586 = vsub.s32 0, %v3585
  %v3587 = vrot.slane %v3582, %v3586
  %v3590 = vsel %vm1220, %v3573, 0
  %3592 = vmatprep.subr.mxu0 0.0
  %3593 = vmatpush1.msra.mxu0 %v3574
  %3594 = vmatprep.subr.mxu0 0.0
  %3595 = vmatpush1.msra.mxu0 %v3575
  %3596 = vmatprep.subr.mxu0 0.0
  %3597 = vmatpush1.msra.mxu0 %v3576
  %3598 = vmatprep.subr.mxu0 0.0
  %3599 = vmatpush1.msra.mxu0 %v3577
  %3600 = vmatprep.subr.mxu0 0.0
  %3601 = vmatpush1.msra.mxu0 %v3578
  %3602 = vmatprep.subr.mxu0 0.0
  %3603 = vmatpush1.msra.mxu0 %v3579
  %3604 = vmatprep.subr.mxu0 0.0
  %3605 = vmatpush1.msra.mxu0 %v3580
  %3606 = vmatprep.subr.mxu0 0.0
  %3607 = vmatpush1.msra.mxu0 %v3581
  %3608 = vmatprep.subr.mxu0 0.0
  %3609 = vmatpush1.msra.mxu0 0.0
  %3610 = vmatprep.subr.mxu0 0.0
  %3611 = vmatpush1.msra.mxu0 0.0
  %3612 = vmatprep.subr.mxu0 0.0
  %3613 = vmatpush1.msra.mxu0 0.0
  %3614 = vmatprep.subr.mxu0 0.0
  %3615 = vmatpush1.msra.mxu0 0.0
  %3616 = vmatprep.subr.mxu0 0.0
  %3617 = vmatpush1.msra.mxu0 0.0
  %3618 = vmatprep.subr.mxu0 0.0
  %3619 = vmatpush1.msra.mxu0 0.0
  %3620 = vmatprep.subr.mxu0 0.0
  %3621 = vmatpush1.msra.mxu0 0.0
  %3622 = vmatprep.subr.mxu0 0.0
  %3623 = vmatpush1.msra.mxu0 0.0
  %3624 = vmatprep.subr.mxu0 0.0
  %3625 = vmatpush1.msra.mxu0 0.0
  %3626 = vmatprep.subr.mxu0 0.0
  %3627 = vmatpush1.msra.mxu0 0.0
  %3628 = vmatprep.subr.mxu0 0.0
  %3629 = vmatpush1.msra.mxu0 0.0
  %3630 = vmatprep.subr.mxu0 0.0
  %3631 = vmatpush1.msra.mxu0 0.0
  %3632 = vmatprep.subr.mxu0 0.0
  %3633 = vmatpush1.msra.mxu0 0.0
  %3634 = vmatprep.subr.mxu0 0.0
  %3635 = vmatpush1.msra.mxu0 0.0
  %3636 = vmatprep.subr.mxu0 0.0
  %3637 = vmatpush1.msra.mxu0 0.0
  %3638 = vmatprep.subr.mxu0 0.0
  %3639 = vmatpush1.msra.mxu0 0.0
  %3640 = vmatprep.subr.mxu0 0.0
  %3641 = vmatpush1.msra.mxu0 0.0
  %3642 = vmatprep.subr.mxu0 0.0
  %3643 = vmatpush1.msra.mxu0 0.0
  %3644 = vmatprep.subr.mxu0 0.0
  %3645 = vmatpush1.msra.mxu0 0.0
  %3646 = vmatprep.subr.mxu0 0.0
  %3647 = vmatpush1.msra.mxu0 0.0
  %3648 = vmatprep.subr.mxu0 0.0
  %3649 = vmatpush1.msra.mxu0 0.0
  %3650 = vmatprep.subr.mxu0 0.0
  %3651 = vmatpush1.msra.mxu0 0.0
  %3652 = vmatprep.subr.mxu0 0.0
  %3653 = vmatpush1.msra.mxu0 0.0
  %3654 = vmatprep.subr.mxu0 0.0
  %3655 = vmatpush1.msra.mxu0 0.0
  %3656 = vmatprep.mubr.f32.mxu0 0.0
  %3657 = vmatmul.mubr.f32.gmra.mrb[0].mxu0 %v3590
  %v3658 = vpop.f32.mrb[0].mxu0
  %v3659 = vadd.f32 %v3587, %v3658
  %v3660 = vpop.f32.mrb[0].mxu0
  %3661 = vdwg.mxu0
  %v3662 = vld [vmem:[%s87] sm:$0x3]
  %vm3663 = vcmp.gt.f32.partialorder %v3662, 0.0
  %v3664 = vsel %vm3663, %v3659, -inf
  %3665 = vst [vmem:[%s89] sm:$0x3] %v3664
  // Predicated region
  $region178: #{circuit_builder_forward.1} parent=0 // pred_check
    _
  $region179: #{circuit_builder_forward.1} parent=0 // pred_check_branch
    %3667 = sbr.rel (0) target = $region181
  $region180: #{circuit_builder_forward.1} parent=0 // pred_region
    _
  $region181: #{circuit_builder_forward.1} parent=0 // pred_fallthru
    _
  // Predicated region
  $region182: #{circuit_builder_forward.1} parent=0 // pred_check
    _
  $region183: #{circuit_builder_forward.1} parent=0 // pred_check_branch
    %3669 = sbr.rel (0) target = $region185
  $region184: #{circuit_builder_forward.1} parent=0 // pred_region
    _
  $region185: #{circuit_builder_forward.1} parent=0 // pred_fallthru
    _

</llo_original>
